<compile_context>
chip_gen: v7x
topology: tpu7x:2x2x1
jax: 0.10.0
libtpu: 0.0.40
codegen_flags: <defaults>
</compile_context>

<pallas_src>
import math

import jax
import jax.numpy as jnp
from jax.experimental import pallas as pl
from jax.experimental.pallas import tpu as pltpu

# ---------------- configuration (small synthetic shapes) ----------------
VOCAB = 50
HIDDEN = 32
N_HEADS = 2
HEAD_DIM = HIDDEN // N_HEADS
FFN = 64
N_LAYERS = 2
MAX_POS = 16
B = 2
S = 8
NUM_SENTIMENT = 3
NUM_TASK = 4
ALPHA = 0.45
BETA = 0.55
LN_EPS = 1e-12

# single lane-dense output slab: rows [0,B) sentiment logits, rows [B,2B) task
# logits, row 2B col 0 holds the scalar loss.
OUT_ROWS = 8
OUT_COLS = 128
LOSS_ROW = 2 * B

# data slab row layout (per-call small data, packed lane-dense)
D_MASK_R0 = 0                      # (B*S, S) additive mask, expanded per query row
D_SENT_R0 = B * S                  # (B, NUM_SENTIMENT) one-hot sentiment labels
D_TASK_R0 = B * S + B              # (B, NUM_TASK) one-hot task labels
DATA_ROWS = ((B * S + 2 * B + 7) // 8) * 8


# ---------------- parameter slab layout (built once, static offsets) ----------------
def _build_param_layout():
    layout = {}
    cur = 0

    def reg(name, rows, cols):
        nonlocal cur
        layout[name] = (cur, rows, cols)
        cur += rows

    reg("emb_ln_g", 1, HIDDEN)
    reg("emb_ln_b", 1, HIDDEN)
    for li in range(N_LAYERS):
        reg(f"bqkv{li}", 1, 3 * HIDDEN)
        reg(f"bo{li}", 1, HIDDEN)
        reg(f"ln1_g{li}", 1, HIDDEN)
        reg(f"ln1_b{li}", 1, HIDDEN)
        reg(f"b1{li}", 1, FFN)
        reg(f"b2{li}", 1, HIDDEN)
        reg(f"ln2_g{li}", 1, HIDDEN)
        reg(f"ln2_b{li}", 1, HIDDEN)
    reg("pool_w", HIDDEN, HIDDEN)
    reg("pool_b", 1, HIDDEN)
    reg("sent_w", HIDDEN, NUM_SENTIMENT)
    reg("sent_b", 1, NUM_SENTIMENT)
    reg("task_w", HIDDEN, NUM_TASK)
    reg("task_b", 1, NUM_TASK)
    reg("pos_emb", B * S, HIDDEN)     # pre-tiled positional embedding
    rows = ((cur + 7) // 8) * 8
    return layout, rows


PARAM_LAYOUT, PARAM_ROWS = _build_param_layout()


# ---------------- in-kernel helpers ----------------
def _layernorm(x, g, b):
    mu = jnp.mean(x, axis=-1, keepdims=True)
    var = jnp.mean((x - mu) ** 2, axis=-1, keepdims=True)
    return (x - mu) * jax.lax.rsqrt(var + LN_EPS) * g + b


def _ce_mean(logits, onehot):
    # logits, onehot: (B, C) f32 -> (1, 1) mean cross-entropy over the batch
    m = jnp.max(logits, axis=-1, keepdims=True)
    lse = jnp.log(jnp.sum(jnp.exp(logits - m), axis=-1, keepdims=True)) + m
    picked = jnp.sum(logits * onehot, axis=-1, keepdims=True)
    return jnp.sum(lse - picked, axis=0, keepdims=True) * (1.0 / B)


# ---------------- the fused forward kernel ----------------
def _fused_forward_kernel(ids_ref, we_ref, wqkv_ref, wo_ref, w1_ref, w2_ref,
                          p_ref, d_ref, out_ref):
    f32 = jnp.float32
    scale = 1.0 / math.sqrt(HEAD_DIM)

    def pslab(name, cols=None):
        r0, nr, nc = PARAM_LAYOUT[name]
        c = nc if cols is None else cols
        return p_ref[r0:r0 + nr, 0:c]

    # ---- embeddings: one-hot token gather on the MXU + pre-tiled positional add + LN ----
    ids = ids_ref[...]                                               # (B*S, 1) int32
    tok_iota = jax.lax.broadcasted_iota(jnp.int32, (B * S, VOCAB), 1)
    tok_oh = (tok_iota == ids).astype(f32)                           # (B*S, VOCAB)
    emb = jnp.dot(tok_oh, we_ref[...], preferred_element_type=f32)
    emb = emb + pslab("pos_emb")                                     # (B*S, H)
    x = _layernorm(emb, pslab("emb_ln_g"), pslab("emb_ln_b"))

    # additive attention mask, already expanded to (B*S, S) on the host
    mask3 = d_ref[D_MASK_R0:D_MASK_R0 + B * S, 0:S].reshape(B, S, S)

    # ---- transformer encoder layers (unrolled; weights stay in VMEM) ----
    for li in range(N_LAYERS):
        # fused Q|K|V projection: one (B*S,H) @ (H,3H) MXU pass
        qkv = jnp.dot(x, wqkv_ref[li], preferred_element_type=f32) + pslab(f"bqkv{li}")
        q3 = qkv[:, 0:HIDDEN].reshape(B, S, HIDDEN)
        k3 = qkv[:, HIDDEN:2 * HIDDEN].reshape(B, S, HIDDEN)
        v3 = qkv[:, 2 * HIDDEN:3 * HIDDEN].reshape(B, S, HIDDEN)
        wo_l = wo_ref[li]                                            # (H, H)

        # attention: batched over the batch dim, short unrolled head loop;
        # per-head context stays in registers and is folded into Wo:
        #   sum_h ctx_h @ Wo[h*D:(h+1)*D, :]  ==  concat(heads, -1) @ Wo
        attn_out = pslab(f"bo{li}")                                  # (1, H) broadcast
        for h in range(N_HEADS):
            c0, c1 = h * HEAD_DIM, (h + 1) * HEAD_DIM
            qh, kh, vh = q3[:, :, c0:c1], k3[:, :, c0:c1], v3[:, :, c0:c1]
            s = jnp.einsum("bqd,bkd->bqk", qh, kh,
                           preferred_element_type=f32) * scale        # (B, S, S)
            s = s + mask3
            s = s - jnp.max(s, axis=-1, keepdims=True)
            p = jnp.exp(s)
            p = p * pl.reciprocal(jnp.sum(p, axis=-1, keepdims=True), approx=True)
            ctx_h = jnp.einsum("bqk,bkd->bqd", p, vh,
                               preferred_element_type=f32)             # (B, S, D)
            attn_out = attn_out + jnp.dot(ctx_h.reshape(B * S, HEAD_DIM),
                                          wo_l[c0:c1, :],
                                          preferred_element_type=f32)

        h1 = _layernorm(x + attn_out, pslab(f"ln1_g{li}"), pslab(f"ln1_b{li}"))

        # TODO(synk): HuggingFace BERT uses exact (erf) GELU; tanh approximation used here.
        ffn = jax.nn.gelu(jnp.dot(h1, w1_ref[li], preferred_element_type=f32)
                          + pslab(f"b1{li}"))
        ffn = jnp.dot(ffn, w2_ref[li], preferred_element_type=f32) + pslab(f"b2{li}")
        x = _layernorm(h1 + ffn, pslab(f"ln2_g{li}"), pslab(f"ln2_b{li}"))

    # ---- pooler (tanh on CLS) + heads + weighted CE loss, vectorized over batch ----
    # CLS-select one-hot: rows 0..B-1 and rows B..2B-1 both pick CLS of batch 0..B-1.
    r16 = jax.lax.broadcasted_iota(jnp.int32, (OUT_ROWS, B * S), 0)
    c16 = jax.lax.broadcasted_iota(jnp.int32, (OUT_ROWS, B * S), 1)
    b_of_r = jnp.where(r16 < B, r16, r16 - B)
    cls_sel = ((c16 == b_of_r * S) & (r16 < 2 * B)).astype(f32)       # (8, B*S)
    cls8 = jnp.dot(cls_sel, x, preferred_element_type=f32)            # (8, H)
    pooled8 = jnp.tanh(jnp.dot(cls8, pslab("pool_w"), preferred_element_type=f32)
                       + pslab("pool_b"))                             # (8, H)

    # head weights stored zero-padded to 128 lanes -> lane-dense logit rows.
    sent8 = (jnp.dot(pooled8, pslab("sent_w", OUT_COLS), preferred_element_type=f32)
             + pslab("sent_b", OUT_COLS))                             # (8, 128)
    task8 = (jnp.dot(pooled8, pslab("task_w", OUT_COLS), preferred_element_type=f32)
             + pslab("task_b", OUT_COLS))                             # (8, 128)

    sent_loss = _ce_mean(sent8[0:B, 0:NUM_SENTIMENT],
                         d_ref[D_SENT_R0:D_SENT_R0 + B, 0:NUM_SENTIMENT])
    task_loss = _ce_mean(task8[B:2 * B, 0:NUM_TASK],
                         d_ref[D_TASK_R0:D_TASK_R0 + B, 0:NUM_TASK])
    total = ALPHA * sent_loss + BETA * task_loss                      # (1, 1)

    # assemble the full (8, 128) output slab in registers; single unmasked store.
    row8 = jax.lax.broadcasted_iota(jnp.int32, (OUT_ROWS, OUT_COLS), 0)
    lane8 = jax.lax.broadcasted_iota(jnp.int32, (OUT_ROWS, OUT_COLS), 1)
    loss_full = jnp.where((row8 == LOSS_ROW) & (lane8 == 0),
                          jnp.broadcast_to(total, (OUT_ROWS, OUT_COLS)),
                          jnp.zeros((OUT_ROWS, OUT_COLS), f32))
    out_ref[...] = jnp.where(row8 < B, sent8,
                             jnp.where(row8 < 2 * B, task8, loss_full))


# ---------------- deterministic parameter construction ----------------
def init_params(key):
    def dense(k, fan_in, fan_out):
        w = 0.02 * jax.random.normal(k, (fan_in, fan_out), jnp.float32)
        b = jnp.zeros((1, fan_out), jnp.float32)
        return w, b

    keys = jax.random.split(key, 4 + N_LAYERS)
    word_emb = 0.02 * jax.random.normal(keys[0], (VOCAB, HIDDEN), jnp.float32)
    pos_emb = 0.02 * jax.random.normal(keys[1], (MAX_POS, HIDDEN), jnp.float32)

    pslab = jnp.zeros((PARAM_ROWS, OUT_COLS), jnp.float32)

    def put(slab, name, val):
        r0, _, _ = PARAM_LAYOUT[name]
        return slab.at[r0:r0 + val.shape[0], 0:val.shape[1]].set(val)

    pslab = put(pslab, "emb_ln_g", jnp.ones((1, HIDDEN), jnp.float32))
    pslab = put(pslab, "emb_ln_b", jnp.zeros((1, HIDDEN), jnp.float32))

    wqkv, wo, w1s, w2s = [], [], [], []
    for li in range(N_LAYERS):
        lkeys = jax.random.split(keys[2 + li], 6)
        wq, bq = dense(lkeys[0], HIDDEN, HIDDEN)
        wk, bk = dense(lkeys[1], HIDDEN, HIDDEN)
        wv, bv = dense(lkeys[2], HIDDEN, HIDDEN)
        wqkv.append(jnp.concatenate([wq, wk, wv], axis=1))     # fused QKV weight (H, 3H)
        pslab = put(pslab, f"bqkv{li}", jnp.concatenate([bq, bk, bv], axis=1))
        w, b_ = dense(lkeys[3], HIDDEN, HIDDEN); wo.append(w);  pslab = put(pslab, f"bo{li}", b_)
        w, b_ = dense(lkeys[4], HIDDEN, FFN);    w1s.append(w); pslab = put(pslab, f"b1{li}", b_)
        w, b_ = dense(lkeys[5], FFN, HIDDEN);    w2s.append(w); pslab = put(pslab, f"b2{li}", b_)
        pslab = put(pslab, f"ln1_g{li}", jnp.ones((1, HIDDEN), jnp.float32))
        pslab = put(pslab, f"ln1_b{li}", jnp.zeros((1, HIDDEN), jnp.float32))
        pslab = put(pslab, f"ln2_g{li}", jnp.ones((1, HIDDEN), jnp.float32))
        pslab = put(pslab, f"ln2_b{li}", jnp.zeros((1, HIDDEN), jnp.float32))

    pw, pb = dense(keys[2 + N_LAYERS], HIDDEN, HIDDEN)
    hkeys = jax.random.split(keys[3 + N_LAYERS], 2)
    sw, sb = dense(hkeys[0], HIDDEN, NUM_SENTIMENT)
    tw, tb = dense(hkeys[1], HIDDEN, NUM_TASK)
    pslab = put(pslab, "pool_w", pw); pslab = put(pslab, "pool_b", pb)
    pslab = put(pslab, "sent_w", sw); pslab = put(pslab, "sent_b", sb)
    pslab = put(pslab, "task_w", tw); pslab = put(pslab, "task_b", tb)
    pslab = put(pslab, "pos_emb", jnp.tile(pos_emb[0:S], (B, 1)))    # pre-tiled (B*S, H)

    return {"word_emb": word_emb,
            "wqkv": jnp.stack(wqkv), "wo": jnp.stack(wo),
            "w1": jnp.stack(w1s), "w2": jnp.stack(w2s),
            "pslab": pslab}


# ---------------- forward pass (MultiTaskModel.forward) ----------------
def multitask_forward(params, input_ids, attention_mask, sentiment_label, task_label):
    Bx, Sx = input_ids.shape

    ids = input_ids.reshape(Bx * Sx, 1).astype(jnp.int32)

    # per-call small data slab: expanded additive mask + one-hot labels (lane-dense)
    add_mask = (1.0 - attention_mask.astype(jnp.float32)) * -1e9       # (B, S) additive
    mask_exp = jnp.repeat(add_mask, Sx, axis=0)                        # (B*S, S)
    sent_oh = jax.nn.one_hot(sentiment_label.astype(jnp.int32), NUM_SENTIMENT,
                             dtype=jnp.float32)
    task_oh = jax.nn.one_hot(task_label.astype(jnp.int32), NUM_TASK, dtype=jnp.float32)

    dslab = jnp.zeros((DATA_ROWS, OUT_COLS), jnp.float32)
    dslab = dslab.at[D_MASK_R0:D_MASK_R0 + Bx * Sx, 0:Sx].set(mask_exp)
    dslab = dslab.at[D_SENT_R0:D_SENT_R0 + Bx, 0:NUM_SENTIMENT].set(sent_oh)
    dslab = dslab.at[D_TASK_R0:D_TASK_R0 + Bx, 0:NUM_TASK].set(task_oh)

    inputs = (ids, params["word_emb"], params["wqkv"], params["wo"],
              params["w1"], params["w2"], params["pslab"], dslab)
    in_specs = [pl.BlockSpec(memory_space=pltpu.MemorySpace.VMEM) for _ in inputs]

    slab = pl.pallas_call(
        _fused_forward_kernel,
        out_shape=jax.ShapeDtypeStruct((OUT_ROWS, OUT_COLS), jnp.float32),
        in_specs=in_specs,
        out_specs=pl.BlockSpec(memory_space=pltpu.MemorySpace.VMEM),
    )(*inputs)

    sentiment_logits = slab[0:Bx, 0:NUM_SENTIMENT]
    task_logits = slab[Bx:2 * Bx, 0:NUM_TASK]
    loss = slab[LOSS_ROW, 0]
    return {"loss": loss, "sentiment_logits": sentiment_logits, "task_logits": task_logits}


# ---------------- main ----------------
if __name__ == "__main__":
    key = jax.random.PRNGKey(0)
    pkey, ikey, mkey, skey, tkey = jax.random.split(key, 5)

    params = init_params(pkey)

    input_ids = jax.random.randint(ikey, (B, S), 0, VOCAB, dtype=jnp.int32)
    attention_mask = jnp.ones((B, S), dtype=jnp.int32).at[:, S - 2:].set(0)
    sentiment_label = jax.random.randint(skey, (B,), 0, NUM_SENTIMENT, dtype=jnp.int32)
    task_label = jax.random.randint(tkey, (B,), 0, NUM_TASK, dtype=jnp.int32)

    out = jax.jit(multitask_forward)(
        params, input_ids, attention_mask, sentiment_label, task_label
    )
    jax.block_until_ready(out)

    assert out["sentiment_logits"].shape == (B, NUM_SENTIMENT)
    assert out["task_logits"].shape == (B, NUM_TASK)
    assert out["loss"].shape == ()
    assert bool(jnp.isfinite(out["loss"]))
    print("KERNEL_OK")
</pallas_src>

<mosaic_0001>
module attributes {stable_mosaic.version = 11 : i64} {
  func.func @_fused_forward_kernel(%arg0: memref<16x1xi32, #tpu.memory_space<vmem>>, %arg1: memref<50x32xf32, #tpu.memory_space<vmem>>, %arg2: memref<2x32x96xf32, #tpu.memory_space<vmem>>, %arg3: memref<2x32x32xf32, #tpu.memory_space<vmem>>, %arg4: memref<2x32x64xf32, #tpu.memory_space<vmem>>, %arg5: memref<2x64x32xf32, #tpu.memory_space<vmem>>, %arg6: memref<136x128xf32, #tpu.memory_space<vmem>>, %arg7: memref<24x128xf32, #tpu.memory_space<vmem>>, %arg8: memref<8x128xf32, #tpu.memory_space<vmem>>) attributes {dimension_semantics = [], scalar_prefetch = 0 : i64, scratch_operands = 0 : i64, tpu.core_type = #tpu.core_type<tc>} {
    %c0 = arith.constant 0 : index
    %c0_0 = arith.constant 0 : index
    %0 = vector.load %arg0[%c0, %c0_0] : memref<16x1xi32, #tpu.memory_space<vmem>>, vector<16x1xi32>
    %1 = tpu.iota {dimensions = array<i32: 1>} : vector<16x50xi32>
    %2 = vector.broadcast %0 : vector<16x1xi32> to vector<16x50xi32>
    %3 = arith.cmpi eq, %1, %2 : vector<16x50xi32>
    %4 = arith.extui %3 : vector<16x50xi1> to vector<16x50xi32>
    %5 = arith.sitofp %4 : vector<16x50xi32> to vector<16x50xf32>
    %c0_1 = arith.constant 0 : index
    %c0_2 = arith.constant 0 : index
    %6 = vector.load %arg1[%c0_1, %c0_2] : memref<50x32xf32, #tpu.memory_space<vmem>>, vector<50x32xf32>
    %cst = arith.constant dense<0.000000e+00> : vector<16x32xf32>
    %7 = tpu.matmul %5, %6, %cst {dimension_numbers = #tpu.dot_dimension_numbers<[1], [0], [0], [1], [0, 0, 1, 1], [], []>} : vector<16x50xf32>, vector<50x32xf32>, vector<16x32xf32> -> vector<16x32xf32>
    %c117 = arith.constant 117 : index
    %c0_3 = arith.constant 0 : index
    %8 = vector.load %arg6[%c117, %c0_3] : memref<136x128xf32, #tpu.memory_space<vmem>>, vector<16x32xf32>
    %9 = arith.addf %7, %8 : vector<16x32xf32>
    %c0_4 = arith.constant 0 : index
    %c0_5 = arith.constant 0 : index
    %10 = vector.load %arg6[%c0_4, %c0_5] : memref<136x128xf32, #tpu.memory_space<vmem>>, vector<1x32xf32>
    %c1 = arith.constant 1 : index
    %c0_6 = arith.constant 0 : index
    %11 = vector.load %arg6[%c1, %c0_6] : memref<136x128xf32, #tpu.memory_space<vmem>>, vector<1x32xf32>
    %cst_7 = arith.constant dense<0.000000e+00> : vector<16xf32>
    %12 = vector.multi_reduction <add>, %9, %cst_7 [1] : vector<16x32xf32> to vector<16xf32>
    %13 = vector.shape_cast %12 : vector<16xf32> to vector<16x1xf32>
    %cst_8 = arith.constant 3.200000e+01 : f32
    %14 = vector.broadcast %cst_8 : f32 to vector<16x1xf32>
    %15 = arith.divf %13, %14 : vector<16x1xf32>
    %16 = vector.broadcast %15 : vector<16x1xf32> to vector<16x32xf32>
    %17 = arith.subf %9, %16 : vector<16x32xf32>
    %18 = arith.mulf %17, %17 : vector<16x32xf32>
    %cst_9 = arith.constant dense<0.000000e+00> : vector<16xf32>
    %19 = vector.multi_reduction <add>, %18, %cst_9 [1] : vector<16x32xf32> to vector<16xf32>
    %20 = vector.shape_cast %19 : vector<16xf32> to vector<16x1xf32>
    %cst_10 = arith.constant 3.200000e+01 : f32
    %21 = vector.broadcast %cst_10 : f32 to vector<16x1xf32>
    %22 = arith.divf %20, %21 : vector<16x1xf32>
    %23 = vector.broadcast %15 : vector<16x1xf32> to vector<16x32xf32>
    %24 = arith.subf %9, %23 : vector<16x32xf32>
    %cst_11 = arith.constant 9.99999996E-13 : f32
    %25 = vector.broadcast %cst_11 : f32 to vector<16x1xf32>
    %26 = arith.addf %22, %25 : vector<16x1xf32>
    %27 = math.rsqrt %26 : vector<16x1xf32>
    %28 = vector.broadcast %27 : vector<16x1xf32> to vector<16x32xf32>
    %29 = arith.mulf %24, %28 : vector<16x32xf32>
    %30 = vector.broadcast %10 : vector<1x32xf32> to vector<16x32xf32>
    %31 = arith.mulf %29, %30 : vector<16x32xf32>
    %32 = vector.broadcast %11 : vector<1x32xf32> to vector<16x32xf32>
    %33 = arith.addf %31, %32 : vector<16x32xf32>
    %c0_12 = arith.constant 0 : index
    %c0_13 = arith.constant 0 : index
    %34 = vector.load %arg7[%c0_12, %c0_13] : memref<24x128xf32, #tpu.memory_space<vmem>>, vector<16x8xf32>
    %35 = vector.shape_cast %34 : vector<16x8xf32> to vector<2x8x8xf32>
    %c0_14 = arith.constant 0 : index
    %c0_15 = arith.constant 0 : index
    %c0_16 = arith.constant 0 : index
    %36 = vector.load %arg2[%c0_14, %c0_15, %c0_16] : memref<2x32x96xf32, #tpu.memory_space<vmem>>, vector<1x32x96xf32>
    %37 = vector.shape_cast %36 : vector<1x32x96xf32> to vector<32x96xf32>
    %cst_17 = arith.constant dense<0.000000e+00> : vector<16x96xf32>
    %38 = tpu.matmul %33, %37, %cst_17 {dimension_numbers = #tpu.dot_dimension_numbers<[1], [0], [0], [1], [0, 0, 1, 1], [], []>} : vector<16x32xf32>, vector<32x96xf32>, vector<16x96xf32> -> vector<16x96xf32>
    %c2 = arith.constant 2 : index
    %c0_18 = arith.constant 0 : index
    %39 = vector.load %arg6[%c2, %c0_18] : memref<136x128xf32, #tpu.memory_space<vmem>>, vector<1x96xf32>
    %40 = vector.broadcast %39 : vector<1x96xf32> to vector<16x96xf32>
    %41 = arith.addf %38, %40 : vector<16x96xf32>
    %42 = vector.extract_strided_slice %41 {offsets = [0, 0], sizes = [16, 32], strides = [1, 1]} : vector<16x96xf32> to vector<16x32xf32>
    %43 = vector.shape_cast %42 : vector<16x32xf32> to vector<2x8x32xf32>
    %44 = vector.extract_strided_slice %41 {offsets = [0, 32], sizes = [16, 32], strides = [1, 1]} : vector<16x96xf32> to vector<16x32xf32>
    %45 = vector.shape_cast %44 : vector<16x32xf32> to vector<2x8x32xf32>
    %46 = vector.extract_strided_slice %41 {offsets = [0, 64], sizes = [16, 32], strides = [1, 1]} : vector<16x96xf32> to vector<16x32xf32>
    %47 = vector.shape_cast %46 : vector<16x32xf32> to vector<2x8x32xf32>
    %c0_19 = arith.constant 0 : index
    %c0_20 = arith.constant 0 : index
    %c0_21 = arith.constant 0 : index
    %48 = vector.load %arg3[%c0_19, %c0_20, %c0_21] : memref<2x32x32xf32, #tpu.memory_space<vmem>>, vector<1x32x32xf32>
    %49 = vector.shape_cast %48 : vector<1x32x32xf32> to vector<32x32xf32>
    %c3 = arith.constant 3 : index
    %c0_22 = arith.constant 0 : index
    %50 = vector.load %arg6[%c3, %c0_22] : memref<136x128xf32, #tpu.memory_space<vmem>>, vector<1x32xf32>
    %51 = vector.extract_strided_slice %43 {offsets = [0, 0, 0], sizes = [2, 8, 16], strides = [1, 1, 1]} : vector<2x8x32xf32> to vector<2x8x16xf32>
    %52 = vector.extract_strided_slice %45 {offsets = [0, 0, 0], sizes = [2, 8, 16], strides = [1, 1, 1]} : vector<2x8x32xf32> to vector<2x8x16xf32>
    %53 = vector.extract_strided_slice %47 {offsets = [0, 0, 0], sizes = [2, 8, 16], strides = [1, 1, 1]} : vector<2x8x32xf32> to vector<2x8x16xf32>
    "tpu.trace_start"() <{level = 10 : i32, message = "bqd,bkd->bqk"}> : () -> ()
    %cst_23 = arith.constant dense<0.000000e+00> : vector<2x8x8xf32>
    %54 = tpu.matmul %51, %52, %cst_23 {dimension_numbers = #tpu.dot_dimension_numbers<[2], [2], [1], [1], [0, 0, 0, 1, 1, 1], [0], [0]>} : vector<2x8x16xf32>, vector<2x8x16xf32>, vector<2x8x8xf32> -> vector<2x8x8xf32>
    "tpu.trace_stop"() : () -> ()
    %cst_24 = arith.constant 2.500000e-01 : f32
    %55 = vector.broadcast %cst_24 : f32 to vector<2x8x8xf32>
    %56 = arith.mulf %54, %55 : vector<2x8x8xf32>
    %57 = arith.addf %56, %35 : vector<2x8x8xf32>
    %cst_25 = arith.constant dense<0xFF800000> : vector<2x8xf32>
    %58 = vector.multi_reduction <maximumf>, %57, %cst_25 [2] : vector<2x8x8xf32> to vector<2x8xf32>
    %59 = vector.shape_cast %58 : vector<2x8xf32> to vector<2x8x1xf32>
    %60 = vector.broadcast %59 : vector<2x8x1xf32> to vector<2x8x8xf32>
    %61 = arith.subf %57, %60 : vector<2x8x8xf32>
    %62 = math.exp %61 : vector<2x8x8xf32>
    %cst_26 = arith.constant dense<0.000000e+00> : vector<2x8xf32>
    %63 = vector.multi_reduction <add>, %62, %cst_26 [2] : vector<2x8x8xf32> to vector<2x8xf32>
    %64 = vector.shape_cast %63 : vector<2x8xf32> to vector<2x8x1xf32>
    %65 = tpu.reciprocal %64 {approx = true} : vector<2x8x1xf32> -> vector<2x8x1xf32>
    %66 = vector.broadcast %65 : vector<2x8x1xf32> to vector<2x8x8xf32>
    %67 = arith.mulf %62, %66 : vector<2x8x8xf32>
    "tpu.trace_start"() <{level = 10 : i32, message = "bqk,bkd->bqd"}> : () -> ()
    %cst_27 = arith.constant dense<0.000000e+00> : vector<2x8x16xf32>
    %68 = tpu.matmul %67, %53, %cst_27 {dimension_numbers = #tpu.dot_dimension_numbers<[2], [1], [1], [2], [0, 0, 0, 1, 1, 2], [0], [0]>} : vector<2x8x8xf32>, vector<2x8x16xf32>, vector<2x8x16xf32> -> vector<2x8x16xf32>
    "tpu.trace_stop"() : () -> ()
    %69 = vector.shape_cast %68 : vector<2x8x16xf32> to vector<16x16xf32>
    %70 = vector.extract_strided_slice %49 {offsets = [0, 0], sizes = [16, 32], strides = [1, 1]} : vector<32x32xf32> to vector<16x32xf32>
    %cst_28 = arith.constant dense<0.000000e+00> : vector<16x32xf32>
    %71 = tpu.matmul %69, %70, %cst_28 {dimension_numbers = #tpu.dot_dimension_numbers<[1], [0], [0], [1], [0, 0, 1, 1], [], []>} : vector<16x16xf32>, vector<16x32xf32>, vector<16x32xf32> -> vector<16x32xf32>
    %72 = vector.broadcast %50 : vector<1x32xf32> to vector<16x32xf32>
    %73 = arith.addf %72, %71 : vector<16x32xf32>
    %74 = vector.extract_strided_slice %43 {offsets = [0, 0, 16], sizes = [2, 8, 16], strides = [1, 1, 1]} : vector<2x8x32xf32> to vector<2x8x16xf32>
    %75 = vector.extract_strided_slice %45 {offsets = [0, 0, 16], sizes = [2, 8, 16], strides = [1, 1, 1]} : vector<2x8x32xf32> to vector<2x8x16xf32>
    %76 = vector.extract_strided_slice %47 {offsets = [0, 0, 16], sizes = [2, 8, 16], strides = [1, 1, 1]} : vector<2x8x32xf32> to vector<2x8x16xf32>
    "tpu.trace_start"() <{level = 10 : i32, message = "bqd,bkd->bqk"}> : () -> ()
    %cst_29 = arith.constant dense<0.000000e+00> : vector<2x8x8xf32>
    %77 = tpu.matmul %74, %75, %cst_29 {dimension_numbers = #tpu.dot_dimension_numbers<[2], [2], [1], [1], [0, 0, 0, 1, 1, 1], [0], [0]>} : vector<2x8x16xf32>, vector<2x8x16xf32>, vector<2x8x8xf32> -> vector<2x8x8xf32>
    "tpu.trace_stop"() : () -> ()
    %cst_30 = arith.constant 2.500000e-01 : f32
    %78 = vector.broadcast %cst_30 : f32 to vector<2x8x8xf32>
    %79 = arith.mulf %77, %78 : vector<2x8x8xf32>
    %80 = arith.addf %79, %35 : vector<2x8x8xf32>
    %cst_31 = arith.constant dense<0xFF800000> : vector<2x8xf32>
    %81 = vector.multi_reduction <maximumf>, %80, %cst_31 [2] : vector<2x8x8xf32> to vector<2x8xf32>
    %82 = vector.shape_cast %81 : vector<2x8xf32> to vector<2x8x1xf32>
    %83 = vector.broadcast %82 : vector<2x8x1xf32> to vector<2x8x8xf32>
    %84 = arith.subf %80, %83 : vector<2x8x8xf32>
    %85 = math.exp %84 : vector<2x8x8xf32>
    %cst_32 = arith.constant dense<0.000000e+00> : vector<2x8xf32>
    %86 = vector.multi_reduction <add>, %85, %cst_32 [2] : vector<2x8x8xf32> to vector<2x8xf32>
    %87 = vector.shape_cast %86 : vector<2x8xf32> to vector<2x8x1xf32>
    %88 = tpu.reciprocal %87 {approx = true} : vector<2x8x1xf32> -> vector<2x8x1xf32>
    %89 = vector.broadcast %88 : vector<2x8x1xf32> to vector<2x8x8xf32>
    %90 = arith.mulf %85, %89 : vector<2x8x8xf32>
    "tpu.trace_start"() <{level = 10 : i32, message = "bqk,bkd->bqd"}> : () -> ()
    %cst_33 = arith.constant dense<0.000000e+00> : vector<2x8x16xf32>
    %91 = tpu.matmul %90, %76, %cst_33 {dimension_numbers = #tpu.dot_dimension_numbers<[2], [1], [1], [2], [0, 0, 0, 1, 1, 2], [0], [0]>} : vector<2x8x8xf32>, vector<2x8x16xf32>, vector<2x8x16xf32> -> vector<2x8x16xf32>
    "tpu.trace_stop"() : () -> ()
    %92 = vector.shape_cast %91 : vector<2x8x16xf32> to vector<16x16xf32>
    %93 = vector.extract_strided_slice %49 {offsets = [16, 0], sizes = [16, 32], strides = [1, 1]} : vector<32x32xf32> to vector<16x32xf32>
    %cst_34 = arith.constant dense<0.000000e+00> : vector<16x32xf32>
    %94 = tpu.matmul %92, %93, %cst_34 {dimension_numbers = #tpu.dot_dimension_numbers<[1], [0], [0], [1], [0, 0, 1, 1], [], []>} : vector<16x16xf32>, vector<16x32xf32>, vector<16x32xf32> -> vector<16x32xf32>
    %95 = arith.addf %73, %94 : vector<16x32xf32>
    %96 = arith.addf %33, %95 : vector<16x32xf32>
    %c4 = arith.constant 4 : index
    %c0_35 = arith.constant 0 : index
    %97 = vector.load %arg6[%c4, %c0_35] : memref<136x128xf32, #tpu.memory_space<vmem>>, vector<1x32xf32>
    %c5 = arith.constant 5 : index
    %c0_36 = arith.constant 0 : index
    %98 = vector.load %arg6[%c5, %c0_36] : memref<136x128xf32, #tpu.memory_space<vmem>>, vector<1x32xf32>
    %cst_37 = arith.constant dense<0.000000e+00> : vector<16xf32>
    %99 = vector.multi_reduction <add>, %96, %cst_37 [1] : vector<16x32xf32> to vector<16xf32>
    %100 = vector.shape_cast %99 : vector<16xf32> to vector<16x1xf32>
    %cst_38 = arith.constant 3.200000e+01 : f32
    %101 = vector.broadcast %cst_38 : f32 to vector<16x1xf32>
    %102 = arith.divf %100, %101 : vector<16x1xf32>
    %103 = vector.broadcast %102 : vector<16x1xf32> to vector<16x32xf32>
    %104 = arith.subf %96, %103 : vector<16x32xf32>
    %105 = arith.mulf %104, %104 : vector<16x32xf32>
    %cst_39 = arith.constant dense<0.000000e+00> : vector<16xf32>
    %106 = vector.multi_reduction <add>, %105, %cst_39 [1] : vector<16x32xf32> to vector<16xf32>
    %107 = vector.shape_cast %106 : vector<16xf32> to vector<16x1xf32>
    %cst_40 = arith.constant 3.200000e+01 : f32
    %108 = vector.broadcast %cst_40 : f32 to vector<16x1xf32>
    %109 = arith.divf %107, %108 : vector<16x1xf32>
    %110 = vector.broadcast %102 : vector<16x1xf32> to vector<16x32xf32>
    %111 = arith.subf %96, %110 : vector<16x32xf32>
    %cst_41 = arith.constant 9.99999996E-13 : f32
    %112 = vector.broadcast %cst_41 : f32 to vector<16x1xf32>
    %113 = arith.addf %109, %112 : vector<16x1xf32>
    %114 = math.rsqrt %113 : vector<16x1xf32>
    %115 = vector.broadcast %114 : vector<16x1xf32> to vector<16x32xf32>
    %116 = arith.mulf %111, %115 : vector<16x32xf32>
    %117 = vector.broadcast %97 : vector<1x32xf32> to vector<16x32xf32>
    %118 = arith.mulf %116, %117 : vector<16x32xf32>
    %119 = vector.broadcast %98 : vector<1x32xf32> to vector<16x32xf32>
    %120 = arith.addf %118, %119 : vector<16x32xf32>
    %c0_42 = arith.constant 0 : index
    %c0_43 = arith.constant 0 : index
    %c0_44 = arith.constant 0 : index
    %121 = vector.load %arg4[%c0_42, %c0_43, %c0_44] : memref<2x32x64xf32, #tpu.memory_space<vmem>>, vector<1x32x64xf32>
    %122 = vector.shape_cast %121 : vector<1x32x64xf32> to vector<32x64xf32>
    %cst_45 = arith.constant dense<0.000000e+00> : vector<16x64xf32>
    %123 = tpu.matmul %120, %122, %cst_45 {dimension_numbers = #tpu.dot_dimension_numbers<[1], [0], [0], [1], [0, 0, 1, 1], [], []>} : vector<16x32xf32>, vector<32x64xf32>, vector<16x64xf32> -> vector<16x64xf32>
    %c6 = arith.constant 6 : index
    %c0_46 = arith.constant 0 : index
    %124 = vector.load %arg6[%c6, %c0_46] : memref<136x128xf32, #tpu.memory_space<vmem>>, vector<1x64xf32>
    %125 = vector.broadcast %124 : vector<1x64xf32> to vector<16x64xf32>
    %126 = arith.addf %123, %125 : vector<16x64xf32>
    %127 = arith.mulf %126, %126 : vector<16x64xf32>
    %128 = arith.mulf %126, %127 : vector<16x64xf32>
    %cst_47 = arith.constant 4.471500e-02 : f32
    %129 = vector.broadcast %cst_47 : f32 to vector<16x64xf32>
    %130 = arith.mulf %129, %128 : vector<16x64xf32>
    %131 = arith.addf %126, %130 : vector<16x64xf32>
    %cst_48 = arith.constant 0.797884583 : f32
    %132 = vector.broadcast %cst_48 : f32 to vector<16x64xf32>
    %133 = arith.mulf %132, %131 : vector<16x64xf32>
    %134 = math.tanh %133 : vector<16x64xf32>
    %cst_49 = arith.constant 1.000000e+00 : f32
    %135 = vector.broadcast %cst_49 : f32 to vector<16x64xf32>
    %136 = arith.addf %135, %134 : vector<16x64xf32>
    %cst_50 = arith.constant 5.000000e-01 : f32
    %137 = vector.broadcast %cst_50 : f32 to vector<16x64xf32>
    %138 = arith.mulf %137, %136 : vector<16x64xf32>
    %139 = arith.mulf %126, %138 : vector<16x64xf32>
    %c0_51 = arith.constant 0 : index
    %c0_52 = arith.constant 0 : index
    %c0_53 = arith.constant 0 : index
    %140 = vector.load %arg5[%c0_51, %c0_52, %c0_53] : memref<2x64x32xf32, #tpu.memory_space<vmem>>, vector<1x64x32xf32>
    %141 = vector.shape_cast %140 : vector<1x64x32xf32> to vector<64x32xf32>
    %cst_54 = arith.constant dense<0.000000e+00> : vector<16x32xf32>
    %142 = tpu.matmul %139, %141, %cst_54 {dimension_numbers = #tpu.dot_dimension_numbers<[1], [0], [0], [1], [0, 0, 1, 1], [], []>} : vector<16x64xf32>, vector<64x32xf32>, vector<16x32xf32> -> vector<16x32xf32>
    %c7 = arith.constant 7 : index
    %c0_55 = arith.constant 0 : index
    %143 = vector.load %arg6[%c7, %c0_55] : memref<136x128xf32, #tpu.memory_space<vmem>>, vector<1x32xf32>
    %144 = vector.broadcast %143 : vector<1x32xf32> to vector<16x32xf32>
    %145 = arith.addf %142, %144 : vector<16x32xf32>
    %146 = arith.addf %120, %145 : vector<16x32xf32>
    %c8 = arith.constant 8 : index
    %c0_56 = arith.constant 0 : index
    %147 = vector.load %arg6[%c8, %c0_56] : memref<136x128xf32, #tpu.memory_space<vmem>>, vector<1x32xf32>
    %c9 = arith.constant 9 : index
    %c0_57 = arith.constant 0 : index
    %148 = vector.load %arg6[%c9, %c0_57] : memref<136x128xf32, #tpu.memory_space<vmem>>, vector<1x32xf32>
    %cst_58 = arith.constant dense<0.000000e+00> : vector<16xf32>
    %149 = vector.multi_reduction <add>, %146, %cst_58 [1] : vector<16x32xf32> to vector<16xf32>
    %150 = vector.shape_cast %149 : vector<16xf32> to vector<16x1xf32>
    %cst_59 = arith.constant 3.200000e+01 : f32
    %151 = vector.broadcast %cst_59 : f32 to vector<16x1xf32>
    %152 = arith.divf %150, %151 : vector<16x1xf32>
    %153 = vector.broadcast %152 : vector<16x1xf32> to vector<16x32xf32>
    %154 = arith.subf %146, %153 : vector<16x32xf32>
    %155 = arith.mulf %154, %154 : vector<16x32xf32>
    %cst_60 = arith.constant dense<0.000000e+00> : vector<16xf32>
    %156 = vector.multi_reduction <add>, %155, %cst_60 [1] : vector<16x32xf32> to vector<16xf32>
    %157 = vector.shape_cast %156 : vector<16xf32> to vector<16x1xf32>
    %cst_61 = arith.constant 3.200000e+01 : f32
    %158 = vector.broadcast %cst_61 : f32 to vector<16x1xf32>
    %159 = arith.divf %157, %158 : vector<16x1xf32>
    %160 = vector.broadcast %152 : vector<16x1xf32> to vector<16x32xf32>
    %161 = arith.subf %146, %160 : vector<16x32xf32>
    %cst_62 = arith.constant 9.99999996E-13 : f32
    %162 = vector.broadcast %cst_62 : f32 to vector<16x1xf32>
    %163 = arith.addf %159, %162 : vector<16x1xf32>
    %164 = math.rsqrt %163 : vector<16x1xf32>
    %165 = vector.broadcast %164 : vector<16x1xf32> to vector<16x32xf32>
    %166 = arith.mulf %161, %165 : vector<16x32xf32>
    %167 = vector.broadcast %147 : vector<1x32xf32> to vector<16x32xf32>
    %168 = arith.mulf %166, %167 : vector<16x32xf32>
    %169 = vector.broadcast %148 : vector<1x32xf32> to vector<16x32xf32>
    %170 = arith.addf %168, %169 : vector<16x32xf32>
    %c1_63 = arith.constant 1 : index
    %c0_64 = arith.constant 0 : index
    %c0_65 = arith.constant 0 : index
    %171 = vector.load %arg2[%c1_63, %c0_64, %c0_65] : memref<2x32x96xf32, #tpu.memory_space<vmem>>, vector<1x32x96xf32>
    %172 = vector.shape_cast %171 : vector<1x32x96xf32> to vector<32x96xf32>
    %cst_66 = arith.constant dense<0.000000e+00> : vector<16x96xf32>
    %173 = tpu.matmul %170, %172, %cst_66 {dimension_numbers = #tpu.dot_dimension_numbers<[1], [0], [0], [1], [0, 0, 1, 1], [], []>} : vector<16x32xf32>, vector<32x96xf32>, vector<16x96xf32> -> vector<16x96xf32>
    %c10 = arith.constant 10 : index
    %c0_67 = arith.constant 0 : index
    %174 = vector.load %arg6[%c10, %c0_67] : memref<136x128xf32, #tpu.memory_space<vmem>>, vector<1x96xf32>
    %175 = vector.broadcast %174 : vector<1x96xf32> to vector<16x96xf32>
    %176 = arith.addf %173, %175 : vector<16x96xf32>
    %177 = vector.extract_strided_slice %176 {offsets = [0, 0], sizes = [16, 32], strides = [1, 1]} : vector<16x96xf32> to vector<16x32xf32>
    %178 = vector.shape_cast %177 : vector<16x32xf32> to vector<2x8x32xf32>
    %179 = vector.extract_strided_slice %176 {offsets = [0, 32], sizes = [16, 32], strides = [1, 1]} : vector<16x96xf32> to vector<16x32xf32>
    %180 = vector.shape_cast %179 : vector<16x32xf32> to vector<2x8x32xf32>
    %181 = vector.extract_strided_slice %176 {offsets = [0, 64], sizes = [16, 32], strides = [1, 1]} : vector<16x96xf32> to vector<16x32xf32>
    %182 = vector.shape_cast %181 : vector<16x32xf32> to vector<2x8x32xf32>
    %c1_68 = arith.constant 1 : index
    %c0_69 = arith.constant 0 : index
    %c0_70 = arith.constant 0 : index
    %183 = vector.load %arg3[%c1_68, %c0_69, %c0_70] : memref<2x32x32xf32, #tpu.memory_space<vmem>>, vector<1x32x32xf32>
    %184 = vector.shape_cast %183 : vector<1x32x32xf32> to vector<32x32xf32>
    %c11 = arith.constant 11 : index
    %c0_71 = arith.constant 0 : index
    %185 = vector.load %arg6[%c11, %c0_71] : memref<136x128xf32, #tpu.memory_space<vmem>>, vector<1x32xf32>
    %186 = vector.extract_strided_slice %178 {offsets = [0, 0, 0], sizes = [2, 8, 16], strides = [1, 1, 1]} : vector<2x8x32xf32> to vector<2x8x16xf32>
    %187 = vector.extract_strided_slice %180 {offsets = [0, 0, 0], sizes = [2, 8, 16], strides = [1, 1, 1]} : vector<2x8x32xf32> to vector<2x8x16xf32>
    %188 = vector.extract_strided_slice %182 {offsets = [0, 0, 0], sizes = [2, 8, 16], strides = [1, 1, 1]} : vector<2x8x32xf32> to vector<2x8x16xf32>
    "tpu.trace_start"() <{level = 10 : i32, message = "bqd,bkd->bqk"}> : () -> ()
    %cst_72 = arith.constant dense<0.000000e+00> : vector<2x8x8xf32>
    %189 = tpu.matmul %186, %187, %cst_72 {dimension_numbers = #tpu.dot_dimension_numbers<[2], [2], [1], [1], [0, 0, 0, 1, 1, 1], [0], [0]>} : vector<2x8x16xf32>, vector<2x8x16xf32>, vector<2x8x8xf32> -> vector<2x8x8xf32>
    "tpu.trace_stop"() : () -> ()
    %cst_73 = arith.constant 2.500000e-01 : f32
    %190 = vector.broadcast %cst_73 : f32 to vector<2x8x8xf32>
    %191 = arith.mulf %189, %190 : vector<2x8x8xf32>
    %192 = arith.addf %191, %35 : vector<2x8x8xf32>
    %cst_74 = arith.constant dense<0xFF800000> : vector<2x8xf32>
    %193 = vector.multi_reduction <maximumf>, %192, %cst_74 [2] : vector<2x8x8xf32> to vector<2x8xf32>
    %194 = vector.shape_cast %193 : vector<2x8xf32> to vector<2x8x1xf32>
    %195 = vector.broadcast %194 : vector<2x8x1xf32> to vector<2x8x8xf32>
    %196 = arith.subf %192, %195 : vector<2x8x8xf32>
    %197 = math.exp %196 : vector<2x8x8xf32>
    %cst_75 = arith.constant dense<0.000000e+00> : vector<2x8xf32>
    %198 = vector.multi_reduction <add>, %197, %cst_75 [2] : vector<2x8x8xf32> to vector<2x8xf32>
    %199 = vector.shape_cast %198 : vector<2x8xf32> to vector<2x8x1xf32>
    %200 = tpu.reciprocal %199 {approx = true} : vector<2x8x1xf32> -> vector<2x8x1xf32>
    %201 = vector.broadcast %200 : vector<2x8x1xf32> to vector<2x8x8xf32>
    %202 = arith.mulf %197, %201 : vector<2x8x8xf32>
    "tpu.trace_start"() <{level = 10 : i32, message = "bqk,bkd->bqd"}> : () -> ()
    %cst_76 = arith.constant dense<0.000000e+00> : vector<2x8x16xf32>
    %203 = tpu.matmul %202, %188, %cst_76 {dimension_numbers = #tpu.dot_dimension_numbers<[2], [1], [1], [2], [0, 0, 0, 1, 1, 2], [0], [0]>} : vector<2x8x8xf32>, vector<2x8x16xf32>, vector<2x8x16xf32> -> vector<2x8x16xf32>
    "tpu.trace_stop"() : () -> ()
    %204 = vector.shape_cast %203 : vector<2x8x16xf32> to vector<16x16xf32>
    %205 = vector.extract_strided_slice %184 {offsets = [0, 0], sizes = [16, 32], strides = [1, 1]} : vector<32x32xf32> to vector<16x32xf32>
    %cst_77 = arith.constant dense<0.000000e+00> : vector<16x32xf32>
    %206 = tpu.matmul %204, %205, %cst_77 {dimension_numbers = #tpu.dot_dimension_numbers<[1], [0], [0], [1], [0, 0, 1, 1], [], []>} : vector<16x16xf32>, vector<16x32xf32>, vector<16x32xf32> -> vector<16x32xf32>
    %207 = vector.broadcast %185 : vector<1x32xf32> to vector<16x32xf32>
    %208 = arith.addf %207, %206 : vector<16x32xf32>
    %209 = vector.extract_strided_slice %178 {offsets = [0, 0, 16], sizes = [2, 8, 16], strides = [1, 1, 1]} : vector<2x8x32xf32> to vector<2x8x16xf32>
    %210 = vector.extract_strided_slice %180 {offsets = [0, 0, 16], sizes = [2, 8, 16], strides = [1, 1, 1]} : vector<2x8x32xf32> to vector<2x8x16xf32>
    %211 = vector.extract_strided_slice %182 {offsets = [0, 0, 16], sizes = [2, 8, 16], strides = [1, 1, 1]} : vector<2x8x32xf32> to vector<2x8x16xf32>
    "tpu.trace_start"() <{level = 10 : i32, message = "bqd,bkd->bqk"}> : () -> ()
    %cst_78 = arith.constant dense<0.000000e+00> : vector<2x8x8xf32>
    %212 = tpu.matmul %209, %210, %cst_78 {dimension_numbers = #tpu.dot_dimension_numbers<[2], [2], [1], [1], [0, 0, 0, 1, 1, 1], [0], [0]>} : vector<2x8x16xf32>, vector<2x8x16xf32>, vector<2x8x8xf32> -> vector<2x8x8xf32>
    "tpu.trace_stop"() : () -> ()
    %cst_79 = arith.constant 2.500000e-01 : f32
    %213 = vector.broadcast %cst_79 : f32 to vector<2x8x8xf32>
    %214 = arith.mulf %212, %213 : vector<2x8x8xf32>
    %215 = arith.addf %214, %35 : vector<2x8x8xf32>
    %cst_80 = arith.constant dense<0xFF800000> : vector<2x8xf32>
    %216 = vector.multi_reduction <maximumf>, %215, %cst_80 [2] : vector<2x8x8xf32> to vector<2x8xf32>
    %217 = vector.shape_cast %216 : vector<2x8xf32> to vector<2x8x1xf32>
    %218 = vector.broadcast %217 : vector<2x8x1xf32> to vector<2x8x8xf32>
    %219 = arith.subf %215, %218 : vector<2x8x8xf32>
    %220 = math.exp %219 : vector<2x8x8xf32>
    %cst_81 = arith.constant dense<0.000000e+00> : vector<2x8xf32>
    %221 = vector.multi_reduction <add>, %220, %cst_81 [2] : vector<2x8x8xf32> to vector<2x8xf32>
    %222 = vector.shape_cast %221 : vector<2x8xf32> to vector<2x8x1xf32>
    %223 = tpu.reciprocal %222 {approx = true} : vector<2x8x1xf32> -> vector<2x8x1xf32>
    %224 = vector.broadcast %223 : vector<2x8x1xf32> to vector<2x8x8xf32>
    %225 = arith.mulf %220, %224 : vector<2x8x8xf32>
    "tpu.trace_start"() <{level = 10 : i32, message = "bqk,bkd->bqd"}> : () -> ()
    %cst_82 = arith.constant dense<0.000000e+00> : vector<2x8x16xf32>
    %226 = tpu.matmul %225, %211, %cst_82 {dimension_numbers = #tpu.dot_dimension_numbers<[2], [1], [1], [2], [0, 0, 0, 1, 1, 2], [0], [0]>} : vector<2x8x8xf32>, vector<2x8x16xf32>, vector<2x8x16xf32> -> vector<2x8x16xf32>
    "tpu.trace_stop"() : () -> ()
    %227 = vector.shape_cast %226 : vector<2x8x16xf32> to vector<16x16xf32>
    %228 = vector.extract_strided_slice %184 {offsets = [16, 0], sizes = [16, 32], strides = [1, 1]} : vector<32x32xf32> to vector<16x32xf32>
    %cst_83 = arith.constant dense<0.000000e+00> : vector<16x32xf32>
    %229 = tpu.matmul %227, %228, %cst_83 {dimension_numbers = #tpu.dot_dimension_numbers<[1], [0], [0], [1], [0, 0, 1, 1], [], []>} : vector<16x16xf32>, vector<16x32xf32>, vector<16x32xf32> -> vector<16x32xf32>
    %230 = arith.addf %208, %229 : vector<16x32xf32>
    %231 = arith.addf %170, %230 : vector<16x32xf32>
    %c12 = arith.constant 12 : index
    %c0_84 = arith.constant 0 : index
    %232 = vector.load %arg6[%c12, %c0_84] : memref<136x128xf32, #tpu.memory_space<vmem>>, vector<1x32xf32>
    %c13 = arith.constant 13 : index
    %c0_85 = arith.constant 0 : index
    %233 = vector.load %arg6[%c13, %c0_85] : memref<136x128xf32, #tpu.memory_space<vmem>>, vector<1x32xf32>
    %cst_86 = arith.constant dense<0.000000e+00> : vector<16xf32>
    %234 = vector.multi_reduction <add>, %231, %cst_86 [1] : vector<16x32xf32> to vector<16xf32>
    %235 = vector.shape_cast %234 : vector<16xf32> to vector<16x1xf32>
    %cst_87 = arith.constant 3.200000e+01 : f32
    %236 = vector.broadcast %cst_87 : f32 to vector<16x1xf32>
    %237 = arith.divf %235, %236 : vector<16x1xf32>
    %238 = vector.broadcast %237 : vector<16x1xf32> to vector<16x32xf32>
    %239 = arith.subf %231, %238 : vector<16x32xf32>
    %240 = arith.mulf %239, %239 : vector<16x32xf32>
    %cst_88 = arith.constant dense<0.000000e+00> : vector<16xf32>
    %241 = vector.multi_reduction <add>, %240, %cst_88 [1] : vector<16x32xf32> to vector<16xf32>
    %242 = vector.shape_cast %241 : vector<16xf32> to vector<16x1xf32>
    %cst_89 = arith.constant 3.200000e+01 : f32
    %243 = vector.broadcast %cst_89 : f32 to vector<16x1xf32>
    %244 = arith.divf %242, %243 : vector<16x1xf32>
    %245 = vector.broadcast %237 : vector<16x1xf32> to vector<16x32xf32>
    %246 = arith.subf %231, %245 : vector<16x32xf32>
    %cst_90 = arith.constant 9.99999996E-13 : f32
    %247 = vector.broadcast %cst_90 : f32 to vector<16x1xf32>
    %248 = arith.addf %244, %247 : vector<16x1xf32>
    %249 = math.rsqrt %248 : vector<16x1xf32>
    %250 = vector.broadcast %249 : vector<16x1xf32> to vector<16x32xf32>
    %251 = arith.mulf %246, %250 : vector<16x32xf32>
    %252 = vector.broadcast %232 : vector<1x32xf32> to vector<16x32xf32>
    %253 = arith.mulf %251, %252 : vector<16x32xf32>
    %254 = vector.broadcast %233 : vector<1x32xf32> to vector<16x32xf32>
    %255 = arith.addf %253, %254 : vector<16x32xf32>
    %c1_91 = arith.constant 1 : index
    %c0_92 = arith.constant 0 : index
    %c0_93 = arith.constant 0 : index
    %256 = vector.load %arg4[%c1_91, %c0_92, %c0_93] : memref<2x32x64xf32, #tpu.memory_space<vmem>>, vector<1x32x64xf32>
    %257 = vector.shape_cast %256 : vector<1x32x64xf32> to vector<32x64xf32>
    %cst_94 = arith.constant dense<0.000000e+00> : vector<16x64xf32>
    %258 = tpu.matmul %255, %257, %cst_94 {dimension_numbers = #tpu.dot_dimension_numbers<[1], [0], [0], [1], [0, 0, 1, 1], [], []>} : vector<16x32xf32>, vector<32x64xf32>, vector<16x64xf32> -> vector<16x64xf32>
    %c14 = arith.constant 14 : index
    %c0_95 = arith.constant 0 : index
    %259 = vector.load %arg6[%c14, %c0_95] : memref<136x128xf32, #tpu.memory_space<vmem>>, vector<1x64xf32>
    %260 = vector.broadcast %259 : vector<1x64xf32> to vector<16x64xf32>
    %261 = arith.addf %258, %260 : vector<16x64xf32>
    %262 = arith.mulf %261, %261 : vector<16x64xf32>
    %263 = arith.mulf %261, %262 : vector<16x64xf32>
    %cst_96 = arith.constant 4.471500e-02 : f32
    %264 = vector.broadcast %cst_96 : f32 to vector<16x64xf32>
    %265 = arith.mulf %264, %263 : vector<16x64xf32>
    %266 = arith.addf %261, %265 : vector<16x64xf32>
    %cst_97 = arith.constant 0.797884583 : f32
    %267 = vector.broadcast %cst_97 : f32 to vector<16x64xf32>
    %268 = arith.mulf %267, %266 : vector<16x64xf32>
    %269 = math.tanh %268 : vector<16x64xf32>
    %cst_98 = arith.constant 1.000000e+00 : f32
    %270 = vector.broadcast %cst_98 : f32 to vector<16x64xf32>
    %271 = arith.addf %270, %269 : vector<16x64xf32>
    %cst_99 = arith.constant 5.000000e-01 : f32
    %272 = vector.broadcast %cst_99 : f32 to vector<16x64xf32>
    %273 = arith.mulf %272, %271 : vector<16x64xf32>
    %274 = arith.mulf %261, %273 : vector<16x64xf32>
    %c1_100 = arith.constant 1 : index
    %c0_101 = arith.constant 0 : index
    %c0_102 = arith.constant 0 : index
    %275 = vector.load %arg5[%c1_100, %c0_101, %c0_102] : memref<2x64x32xf32, #tpu.memory_space<vmem>>, vector<1x64x32xf32>
    %276 = vector.shape_cast %275 : vector<1x64x32xf32> to vector<64x32xf32>
    %cst_103 = arith.constant dense<0.000000e+00> : vector<16x32xf32>
    %277 = tpu.matmul %274, %276, %cst_103 {dimension_numbers = #tpu.dot_dimension_numbers<[1], [0], [0], [1], [0, 0, 1, 1], [], []>} : vector<16x64xf32>, vector<64x32xf32>, vector<16x32xf32> -> vector<16x32xf32>
    %c15 = arith.constant 15 : index
    %c0_104 = arith.constant 0 : index
    %278 = vector.load %arg6[%c15, %c0_104] : memref<136x128xf32, #tpu.memory_space<vmem>>, vector<1x32xf32>
    %279 = vector.broadcast %278 : vector<1x32xf32> to vector<16x32xf32>
    %280 = arith.addf %277, %279 : vector<16x32xf32>
    %281 = arith.addf %255, %280 : vector<16x32xf32>
    %c16 = arith.constant 16 : index
    %c0_105 = arith.constant 0 : index
    %282 = vector.load %arg6[%c16, %c0_105] : memref<136x128xf32, #tpu.memory_space<vmem>>, vector<1x32xf32>
    %c17 = arith.constant 17 : index
    %c0_106 = arith.constant 0 : index
    %283 = vector.load %arg6[%c17, %c0_106] : memref<136x128xf32, #tpu.memory_space<vmem>>, vector<1x32xf32>
    %cst_107 = arith.constant dense<0.000000e+00> : vector<16xf32>
    %284 = vector.multi_reduction <add>, %281, %cst_107 [1] : vector<16x32xf32> to vector<16xf32>
    %285 = vector.shape_cast %284 : vector<16xf32> to vector<16x1xf32>
    %cst_108 = arith.constant 3.200000e+01 : f32
    %286 = vector.broadcast %cst_108 : f32 to vector<16x1xf32>
    %287 = arith.divf %285, %286 : vector<16x1xf32>
    %288 = vector.broadcast %287 : vector<16x1xf32> to vector<16x32xf32>
    %289 = arith.subf %281, %288 : vector<16x32xf32>
    %290 = arith.mulf %289, %289 : vector<16x32xf32>
    %cst_109 = arith.constant dense<0.000000e+00> : vector<16xf32>
    %291 = vector.multi_reduction <add>, %290, %cst_109 [1] : vector<16x32xf32> to vector<16xf32>
    %292 = vector.shape_cast %291 : vector<16xf32> to vector<16x1xf32>
    %cst_110 = arith.constant 3.200000e+01 : f32
    %293 = vector.broadcast %cst_110 : f32 to vector<16x1xf32>
    %294 = arith.divf %292, %293 : vector<16x1xf32>
    %295 = vector.broadcast %287 : vector<16x1xf32> to vector<16x32xf32>
    %296 = arith.subf %281, %295 : vector<16x32xf32>
    %cst_111 = arith.constant 9.99999996E-13 : f32
    %297 = vector.broadcast %cst_111 : f32 to vector<16x1xf32>
    %298 = arith.addf %294, %297 : vector<16x1xf32>
    %299 = math.rsqrt %298 : vector<16x1xf32>
    %300 = vector.broadcast %299 : vector<16x1xf32> to vector<16x32xf32>
    %301 = arith.mulf %296, %300 : vector<16x32xf32>
    %302 = vector.broadcast %282 : vector<1x32xf32> to vector<16x32xf32>
    %303 = arith.mulf %301, %302 : vector<16x32xf32>
    %304 = vector.broadcast %283 : vector<1x32xf32> to vector<16x32xf32>
    %305 = arith.addf %303, %304 : vector<16x32xf32>
    %306 = tpu.iota {dimensions = array<i32: 0>} : vector<8x16xi32>
    %307 = tpu.iota {dimensions = array<i32: 1>} : vector<8x16xi32>
    %c2_i32 = arith.constant 2 : i32
    %308 = vector.broadcast %c2_i32 : i32 to vector<8x16xi32>
    %309 = arith.cmpi slt, %306, %308 : vector<8x16xi32>
    %c2_i32_112 = arith.constant 2 : i32
    %310 = vector.broadcast %c2_i32_112 : i32 to vector<8x16xi32>
    %311 = arith.subi %306, %310 : vector<8x16xi32>
    %312 = arith.select %309, %306, %311 : vector<8x16xi1>, vector<8x16xi32>
    %c8_i32 = arith.constant 8 : i32
    %313 = vector.broadcast %c8_i32 : i32 to vector<8x16xi32>
    %314 = arith.muli %312, %313 : vector<8x16xi32>
    %315 = arith.cmpi eq, %307, %314 : vector<8x16xi32>
    %c4_i32 = arith.constant 4 : i32
    %316 = vector.broadcast %c4_i32 : i32 to vector<8x16xi32>
    %317 = arith.cmpi slt, %306, %316 : vector<8x16xi32>
    %318 = arith.andi %315, %317 : vector<8x16xi1>
    %319 = arith.extui %318 : vector<8x16xi1> to vector<8x16xi32>
    %320 = arith.sitofp %319 : vector<8x16xi32> to vector<8x16xf32>
    %cst_113 = arith.constant dense<0.000000e+00> : vector<8x32xf32>
    %321 = tpu.matmul %320, %305, %cst_113 {dimension_numbers = #tpu.dot_dimension_numbers<[1], [0], [0], [1], [0, 0, 1, 1], [], []>} : vector<8x16xf32>, vector<16x32xf32>, vector<8x32xf32> -> vector<8x32xf32>
    %c18 = arith.constant 18 : index
    %c0_114 = arith.constant 0 : index
    %322 = vector.load %arg6[%c18, %c0_114] : memref<136x128xf32, #tpu.memory_space<vmem>>, vector<32x32xf32>
    %cst_115 = arith.constant dense<0.000000e+00> : vector<8x32xf32>
    %323 = tpu.matmul %321, %322, %cst_115 {dimension_numbers = #tpu.dot_dimension_numbers<[1], [0], [0], [1], [0, 0, 1, 1], [], []>} : vector<8x32xf32>, vector<32x32xf32>, vector<8x32xf32> -> vector<8x32xf32>
    %c50 = arith.constant 50 : index
    %c0_116 = arith.constant 0 : index
    %324 = vector.load %arg6[%c50, %c0_116] : memref<136x128xf32, #tpu.memory_space<vmem>>, vector<1x32xf32>
    %325 = vector.broadcast %324 : vector<1x32xf32> to vector<8x32xf32>
    %326 = arith.addf %323, %325 : vector<8x32xf32>
    %327 = math.tanh %326 : vector<8x32xf32>
    %c51 = arith.constant 51 : index
    %c0_117 = arith.constant 0 : index
    %328 = vector.load %arg6[%c51, %c0_117] : memref<136x128xf32, #tpu.memory_space<vmem>>, vector<32x128xf32>
    %cst_118 = arith.constant dense<0.000000e+00> : vector<8x128xf32>
    %329 = tpu.matmul %327, %328, %cst_118 {dimension_numbers = #tpu.dot_dimension_numbers<[1], [0], [0], [1], [0, 0, 1, 1], [], []>} : vector<8x32xf32>, vector<32x128xf32>, vector<8x128xf32> -> vector<8x128xf32>
    %c83 = arith.constant 83 : index
    %c0_119 = arith.constant 0 : index
    %330 = vector.load %arg6[%c83, %c0_119] : memref<136x128xf32, #tpu.memory_space<vmem>>, vector<1x128xf32>
    %331 = vector.broadcast %330 : vector<1x128xf32> to vector<8x128xf32>
    %332 = arith.addf %329, %331 : vector<8x128xf32>
    %c84 = arith.constant 84 : index
    %c0_120 = arith.constant 0 : index
    %333 = vector.load %arg6[%c84, %c0_120] : memref<136x128xf32, #tpu.memory_space<vmem>>, vector<32x128xf32>
    %cst_121 = arith.constant dense<0.000000e+00> : vector<8x128xf32>
    %334 = tpu.matmul %327, %333, %cst_121 {dimension_numbers = #tpu.dot_dimension_numbers<[1], [0], [0], [1], [0, 0, 1, 1], [], []>} : vector<8x32xf32>, vector<32x128xf32>, vector<8x128xf32> -> vector<8x128xf32>
    %c116 = arith.constant 116 : index
    %c0_122 = arith.constant 0 : index
    %335 = vector.load %arg6[%c116, %c0_122] : memref<136x128xf32, #tpu.memory_space<vmem>>, vector<1x128xf32>
    %336 = vector.broadcast %335 : vector<1x128xf32> to vector<8x128xf32>
    %337 = arith.addf %334, %336 : vector<8x128xf32>
    %338 = vector.extract_strided_slice %332 {offsets = [0, 0], sizes = [2, 3], strides = [1, 1]} : vector<8x128xf32> to vector<2x3xf32>
    %c16_123 = arith.constant 16 : index
    %c0_124 = arith.constant 0 : index
    %339 = vector.load %arg7[%c16_123, %c0_124] : memref<24x128xf32, #tpu.memory_space<vmem>>, vector<2x3xf32>
    %cst_125 = arith.constant dense<0xFF800000> : vector<2xf32>
    %340 = vector.multi_reduction <maximumf>, %338, %cst_125 [1] : vector<2x3xf32> to vector<2xf32>
    %341 = vector.shape_cast %340 : vector<2xf32> to vector<2x1xf32>
    %342 = vector.broadcast %341 : vector<2x1xf32> to vector<2x3xf32>
    %343 = arith.subf %338, %342 : vector<2x3xf32>
    %344 = math.exp %343 : vector<2x3xf32>
    %cst_126 = arith.constant dense<0.000000e+00> : vector<2xf32>
    %345 = vector.multi_reduction <add>, %344, %cst_126 [1] : vector<2x3xf32> to vector<2xf32>
    %346 = vector.shape_cast %345 : vector<2xf32> to vector<2x1xf32>
    %347 = math.log %346 : vector<2x1xf32>
    %348 = arith.addf %347, %341 : vector<2x1xf32>
    %349 = arith.mulf %338, %339 : vector<2x3xf32>
    %cst_127 = arith.constant dense<0.000000e+00> : vector<2xf32>
    %350 = vector.multi_reduction <add>, %349, %cst_127 [1] : vector<2x3xf32> to vector<2xf32>
    %351 = vector.shape_cast %350 : vector<2xf32> to vector<2x1xf32>
    %352 = arith.subf %348, %351 : vector<2x1xf32>
    %cst_128 = arith.constant dense<0.000000e+00> : vector<1xf32>
    %353 = vector.multi_reduction <add>, %352, %cst_128 [0] : vector<2x1xf32> to vector<1xf32>
    %354 = vector.shape_cast %353 : vector<1xf32> to vector<1x1xf32>
    %cst_129 = arith.constant 5.000000e-01 : f32
    %355 = vector.broadcast %cst_129 : f32 to vector<1x1xf32>
    %356 = arith.mulf %354, %355 : vector<1x1xf32>
    %357 = vector.extract_strided_slice %337 {offsets = [2, 0], sizes = [2, 4], strides = [1, 1]} : vector<8x128xf32> to vector<2x4xf32>
    %c18_130 = arith.constant 18 : index
    %c0_131 = arith.constant 0 : index
    %358 = vector.load %arg7[%c18_130, %c0_131] : memref<24x128xf32, #tpu.memory_space<vmem>>, vector<2x4xf32>
    %cst_132 = arith.constant dense<0xFF800000> : vector<2xf32>
    %359 = vector.multi_reduction <maximumf>, %357, %cst_132 [1] : vector<2x4xf32> to vector<2xf32>
    %360 = vector.shape_cast %359 : vector<2xf32> to vector<2x1xf32>
    %361 = vector.broadcast %360 : vector<2x1xf32> to vector<2x4xf32>
    %362 = arith.subf %357, %361 : vector<2x4xf32>
    %363 = math.exp %362 : vector<2x4xf32>
    %cst_133 = arith.constant dense<0.000000e+00> : vector<2xf32>
    %364 = vector.multi_reduction <add>, %363, %cst_133 [1] : vector<2x4xf32> to vector<2xf32>
    %365 = vector.shape_cast %364 : vector<2xf32> to vector<2x1xf32>
    %366 = math.log %365 : vector<2x1xf32>
    %367 = arith.addf %366, %360 : vector<2x1xf32>
    %368 = arith.mulf %357, %358 : vector<2x4xf32>
    %cst_134 = arith.constant dense<0.000000e+00> : vector<2xf32>
    %369 = vector.multi_reduction <add>, %368, %cst_134 [1] : vector<2x4xf32> to vector<2xf32>
    %370 = vector.shape_cast %369 : vector<2xf32> to vector<2x1xf32>
    %371 = arith.subf %367, %370 : vector<2x1xf32>
    %cst_135 = arith.constant dense<0.000000e+00> : vector<1xf32>
    %372 = vector.multi_reduction <add>, %371, %cst_135 [0] : vector<2x1xf32> to vector<1xf32>
    %373 = vector.shape_cast %372 : vector<1xf32> to vector<1x1xf32>
    %cst_136 = arith.constant 5.000000e-01 : f32
    %374 = vector.broadcast %cst_136 : f32 to vector<1x1xf32>
    %375 = arith.mulf %373, %374 : vector<1x1xf32>
    %cst_137 = arith.constant 4.500000e-01 : f32
    %376 = vector.broadcast %cst_137 : f32 to vector<1x1xf32>
    %377 = arith.mulf %376, %356 : vector<1x1xf32>
    %cst_138 = arith.constant 5.500000e-01 : f32
    %378 = vector.broadcast %cst_138 : f32 to vector<1x1xf32>
    %379 = arith.mulf %378, %375 : vector<1x1xf32>
    %380 = arith.addf %377, %379 : vector<1x1xf32>
    %381 = tpu.iota {dimensions = array<i32: 0>} : vector<8x128xi32>
    %382 = tpu.iota {dimensions = array<i32: 1>} : vector<8x128xi32>
    %c4_i32_139 = arith.constant 4 : i32
    %383 = vector.broadcast %c4_i32_139 : i32 to vector<8x128xi32>
    %384 = arith.cmpi eq, %381, %383 : vector<8x128xi32>
    %c0_i32 = arith.constant 0 : i32
    %385 = vector.broadcast %c0_i32 : i32 to vector<8x128xi32>
    %386 = arith.cmpi eq, %382, %385 : vector<8x128xi32>
    %387 = arith.andi %384, %386 : vector<8x128xi1>
    %388 = vector.shape_cast %380 : vector<1x1xf32> to vector<1x1xf32>
    %389 = vector.broadcast %388 : vector<1x1xf32> to vector<8x128xf32>
    %cst_140 = arith.constant 0.000000e+00 : f32
    %390 = vector.broadcast %cst_140 : f32 to vector<8x128xf32>
    %391 = arith.select %387, %389, %390 : vector<8x128xi1>, vector<8x128xf32>
    %c2_i32_141 = arith.constant 2 : i32
    %392 = vector.broadcast %c2_i32_141 : i32 to vector<8x128xi32>
    %393 = arith.cmpi slt, %381, %392 : vector<8x128xi32>
    %c4_i32_142 = arith.constant 4 : i32
    %394 = vector.broadcast %c4_i32_142 : i32 to vector<8x128xi32>
    %395 = arith.cmpi slt, %381, %394 : vector<8x128xi32>
    %396 = arith.select %395, %337, %391 : vector<8x128xi1>, vector<8x128xf32>
    %397 = arith.select %393, %332, %396 : vector<8x128xi1>, vector<8x128xf32>
    %c0_143 = arith.constant 0 : index
    %c0_144 = arith.constant 0 : index
    %398 = vector.load %arg8[%c0_143, %c0_144] : memref<8x128xf32, #tpu.memory_space<vmem>>, vector<8x128xf32>
    tpu.vector_store %arg8[%c0_143, %c0_144], %397 {strides = array<i32>} : memref<8x128xf32, #tpu.memory_space<vmem>>, vector<8x128xf32>,
    return
  }
}

</mosaic_0001>

<llo_original>
// kernel: multitask_forward.1
$region0: #{multitask_forward.1}
  #allocation0 [shape = 'u32[]', space=smem, size = 0x4, offset = 0x4, fixed_abs, tag = 'smem constant byte address 0x4 - core index']
  #allocation1 [shape = 'u32[144,128]{1,0:T(1,128)}', space=vmem, size = 0x12000, scoped, tag = 'internal scratch']
  %s0 = inlined_call_operand.vmem [shape: s32[16,1], index: 0, kind: input, shape index: {}]
  %s1 = inlined_call_operand.vmem [shape: f32[50,32], index: 1, kind: input, shape index: {}]
  %s2 = inlined_call_operand.vmem [shape: f32[2,32,96], index: 2, kind: input, shape index: {}]
  %s3 = inlined_call_operand.vmem [shape: f32[2,32,32], index: 3, kind: input, shape index: {}]
  %s4 = inlined_call_operand.hbm [shape: f32[2,32,64], index: 4, kind: input, shape index: {}]
  %s5 = inlined_call_operand.vmem [shape: f32[2,64,32], index: 5, kind: input, shape index: {}]
  %s6 = inlined_call_operand.vmem [shape: f32[136,128], index: 6, kind: input, shape index: {}]
  %s7 = inlined_call_operand.vmem [shape: f32[24,128], index: 7, kind: input, shape index: {}]
  %s8 = inlined_call_operand.vmem [shape: f32[8,128], index: 8, kind: output, shape index: {}]
  %s9 = sld [smem:[#allocation0]]
  $region46: #{multitask_forward.1} parent=0
    _
  %s11 = ssub.s32 1, %s9
  %s12 = scalar_select 0, %s11, %s9
  $region1: #{multitask_forward.1} parent=0
    #allocation2 [shape = 'u8[32768]{0}', space=vmem, size = 0x8000, scoped, tag = 'input window, operand 4, single buffered']
    #allocation3 [shape = 's32[1]{0}', space=sflag, size = 0x4, scoped, tag = 'scoped memory for multitask_forward.1']
    %13 = vsyncpa [#allocation3], 0
    // Predicated region
    $region2: #{multitask_forward.1} parent=1 // pred_check
      _
    $region3: #{multitask_forward.1} parent=1 // pred_check_branch
      %15 = sbr.rel (0) target = $region5
    $region4: #{multitask_forward.1} parent=1 // pred_region
      _
    $region5: #{multitask_forward.1} parent=1 // pred_fallthru
      _
    // Predicated region
    $region6: #{multitask_forward.1} parent=1 // pred_check
      _
    $region7: #{multitask_forward.1} parent=1 // pred_check_branch
      %17 = sbr.rel (0) target = $region9
    $region8: #{multitask_forward.1} parent=1 // pred_region
      _
    $region9: #{multitask_forward.1} parent=1 // pred_fallthru
      _
    // Predicated region
    $region10: #{multitask_forward.1} parent=1 // pred_check
      _
    $region11: #{multitask_forward.1} parent=1 // pred_check_branch
      %19 = sbr.rel (0) target = $region13
    $region12: #{multitask_forward.1} parent=1 // pred_region
      _
    $region13: #{multitask_forward.1} parent=1 // pred_fallthru
      _
    // Predicated region
    $region14: #{multitask_forward.1} parent=1 // pred_check
      _
    $region15: #{multitask_forward.1} parent=1 // pred_check_branch
      %21 = sbr.rel (0) target = $region17
    $region16: #{multitask_forward.1} parent=1 // pred_region
      _
    $region17: #{multitask_forward.1} parent=1 // pred_fallthru
      _
    // Predicated region
    $region18: #{multitask_forward.1} parent=1 // pred_check
      _
    $region19: #{multitask_forward.1} parent=1 // pred_check_branch
      %23 = sbr.rel (0) target = $region21
    $region20: #{multitask_forward.1} parent=1 // pred_region
      %s25 = ssub.s32 1024, 1024
      %26 = vsyncadd [#allocation3], %s25
      %s27 = sshll.u32 [#allocation2], 4
      %s28 = int_to_ptr.vmem [resolvable:$true] %s27
      %33 = dma.hbm_to_vmem [thread:$0]  %s4, 1024, %s28, [#allocation3], 128, 128, 8
    $region21: #{multitask_forward.1} parent=1 // pred_fallthru
      _
    // Predicated region
    $region22: #{multitask_forward.1} parent=1 // pred_check
      _
    $region23: #{multitask_forward.1} parent=1 // pred_check_branch
      %35 = sbr.rel (0) target = $region25
    $region24: #{multitask_forward.1} parent=1 // pred_region
      _
    $region25: #{multitask_forward.1} parent=1 // pred_fallthru
      _
    // Predicated region
    $region26: #{multitask_forward.1} parent=1 // pred_check
      _
    $region27: #{multitask_forward.1} parent=1 // pred_check_branch
      %37 = sbr.rel (0) target = $region29
    $region28: #{multitask_forward.1} parent=1 // pred_region
      _
    $region29: #{multitask_forward.1} parent=1 // pred_fallthru
      _
    // Predicated region
    $region30: #{multitask_forward.1} parent=1 // pred_check
      _
    $region31: #{multitask_forward.1} parent=1 // pred_check_branch
      %39 = sbr.rel (0) target = $region33
    $region32: #{multitask_forward.1} parent=1 // pred_region
      _
    $region33: #{multitask_forward.1} parent=1 // pred_fallthru
      _
    // Predicated region
    $region34: #{multitask_forward.1} parent=1 // pred_check
      _
    $region35: #{multitask_forward.1} parent=1 // pred_check_branch
      %41 = sbr.rel (0) target = $region37
    $region36: #{multitask_forward.1} parent=1 // pred_region
      %42 = dma.done [#allocation3], 1024
    $region37: #{multitask_forward.1} parent=1 // pred_fallthru
      _
    %v43 = vld [vmem:[%s0] sm:$0xff]
    %v44 = vld [vmem:[%s0 + $0x8] sm:$0xff]
    %v45 = vlaneseq
    %v46 = vand.u32 %v45, 127
    %47 = vset.pattern.permute.xlu0 0
    %48 = vperm.xlu0 %47, %v43
    %v49 = vpop.permute.xlu0 %48
    %50 = vset.pattern.permute.xlu0 0
    %51 = vperm.xlu0 %50, %v44
    %v52 = vpop.permute.xlu0 %51
    %vm53 = vcmp.eq.s32.totalorder %v46, %v49
    %vm54 = vcmp.eq.s32.totalorder %v46, %v52
    %v55 = vsel %vm53, 1, 0
    %v56 = vsel %vm54, 1, 0
    %v57 = vcvt.s32.f32 %v55
    %v58 = vcvt.s32.f32 %v56
    %v59 = vld [vmem:[%s1] sm:$0xff]
    %v60 = vld [vmem:[%s1 + $0x8] sm:$0xff]
    %v61 = vld [vmem:[%s1 + $0x10] sm:$0xff]
    %v62 = vld [vmem:[%s1 + $0x18] sm:$0xff]
    %v63 = vld [vmem:[%s1 + $0x20] sm:$0xff]
    %v64 = vld [vmem:[%s1 + $0x28] sm:$0xff]
    %v65 = vld [vmem:[%s1 + $0x30] sm:$0x3]
    %v66 = vld [vmem:[%s6 + $0x75] sm:$0xff]
    %v67 = vld [vmem:[%s6 + $0x7d] sm:$0xff]
    %vm68 = vcmask 408576
    %v70 = vsel %vm68, %v57, 0
    %v73 = vsel %vm68, %v58, 0
    %vm75 = vcmask 1041408
    %v77 = vsel %vm75, %v65, 0
    %79 = vmatprep.subr.mxu0 0.0
    %80 = vmatpush1.msra.mxu0 %v59
    %81 = vmatprep.subr.mxu0 0.0
    %82 = vmatpush1.msra.mxu0 %v60
    %83 = vmatprep.subr.mxu0 0.0
    %84 = vmatpush1.msra.mxu0 %v61
    %85 = vmatprep.subr.mxu0 0.0
    %86 = vmatpush1.msra.mxu0 %v62
    %87 = vmatprep.subr.mxu0 0.0
    %88 = vmatpush1.msra.mxu0 %v63
    %89 = vmatprep.subr.mxu0 0.0
    %90 = vmatpush1.msra.mxu0 %v64
    %91 = vmatprep.subr.mxu0 0.0
    %92 = vmatpush1.msra.mxu0 %v77
    %93 = vmatprep.subr.mxu0 0.0
    %94 = vmatpush1.msra.mxu0 0.0
    %95 = vmatprep.subr.mxu0 0.0
    %96 = vmatpush1.msra.mxu0 0.0
    %97 = vmatprep.subr.mxu0 0.0
    %98 = vmatpush1.msra.mxu0 0.0
    %99 = vmatprep.subr.mxu0 0.0
    %100 = vmatpush1.msra.mxu0 0.0
    %101 = vmatprep.subr.mxu0 0.0
    %102 = vmatpush1.msra.mxu0 0.0
    %103 = vmatprep.subr.mxu0 0.0
    %104 = vmatpush1.msra.mxu0 0.0
    %105 = vmatprep.subr.mxu0 0.0
    %106 = vmatpush1.msra.mxu0 0.0
    %107 = vmatprep.subr.mxu0 0.0
    %108 = vmatpush1.msra.mxu0 0.0
    %109 = vmatprep.subr.mxu0 0.0
    %110 = vmatpush1.msra.mxu0 0.0
    %111 = vmatprep.subr.mxu0 0.0
    %112 = vmatpush1.msra.mxu0 0.0
    %113 = vmatprep.subr.mxu0 0.0
    %114 = vmatpush1.msra.mxu0 0.0
    %115 = vmatprep.subr.mxu0 0.0
    %116 = vmatpush1.msra.mxu0 0.0
    %117 = vmatprep.subr.mxu0 0.0
    %118 = vmatpush1.msra.mxu0 0.0
    %119 = vmatprep.subr.mxu0 0.0
    %120 = vmatpush1.msra.mxu0 0.0
    %121 = vmatprep.subr.mxu0 0.0
    %122 = vmatpush1.msra.mxu0 0.0
    %123 = vmatprep.subr.mxu0 0.0
    %124 = vmatpush1.msra.mxu0 0.0
    %125 = vmatprep.subr.mxu0 0.0
    %126 = vmatpush1.msra.mxu0 0.0
    %127 = vmatprep.subr.mxu0 0.0
    %128 = vmatpush1.msra.mxu0 0.0
    %129 = vmatprep.subr.mxu0 0.0
    %130 = vmatpush1.msra.mxu0 0.0
    %131 = vmatprep.subr.mxu0 0.0
    %132 = vmatpush1.msra.mxu0 0.0
    %133 = vmatprep.subr.mxu0 0.0
    %134 = vmatpush1.msra.mxu0 0.0
    %135 = vmatprep.subr.mxu0 0.0
    %136 = vmatpush1.msra.mxu0 0.0
    %137 = vmatprep.subr.mxu0 0.0
    %138 = vmatpush1.msra.mxu0 0.0
    %139 = vmatprep.subr.mxu0 0.0
    %140 = vmatpush1.msra.mxu0 0.0
    %141 = vmatprep.subr.mxu0 0.0
    %142 = vmatpush1.msra.mxu0 0.0
    %143 = vmatprep.mubr.f32.mxu0 0.0
    %144 = vmatmul.mubr.f32.gmra.mrb[0].mxu0 %v70
    %v145 = vpop.f32.mrb[0].mxu0
    %v146 = vadd.f32 %v66, %v145
    %v147 = vpop.f32.mrb[0].mxu0
    %148 = vmatprep.mubr.f32.mxu0 0.0
    %149 = vmatmul.mubr.f32.gmra.mrb[0].mxu0 %v73
    %v150 = vpop.f32.mrb[0].mxu0
    %v151 = vadd.f32 %v67, %v150
    %v152 = vpop.f32.mrb[0].mxu0
    %153 = vdwg.mxu0
    %v154 = vld [vmem:[%s6] sm:$0x1]
    %v155 = vld [vmem:[%s6 + $0x1] sm:$0x1]
    %vm156 = vcmask 261120
    %v157 = vsel %vm156, %v146, 0.0
    %158 = vadd.xlane.f32.xlu0 %v157
    %v159 = vpop.xlane.xlu0 %158
    %v160 = vsel %vm156, %v151, 0.0
    %161 = vadd.xlane.f32.xlu0 %v160
    %v162 = vpop.xlane.xlu0 %161
    %v163 = vrcp.pop 32.0
    %v164 = vmul.f32 %v159, %v163
    %v165 = vmul.f32 %v162, %v163
    %v166 = vsub.f32 %v146, %v164
    %v167 = vsub.f32 %v151, %v165
    %v168 = vmul.f32 %v166, %v166
    %v169 = vmul.f32 %v167, %v167
    %v170 = vsel %vm156, %v168, 0.0
    %171 = vadd.xlane.f32.xlu0 %v170
    %v172 = vpop.xlane.xlu0 %171
    %v173 = vsel %vm156, %v169, 0.0
    %174 = vadd.xlane.f32.xlu0 %v173
    %v175 = vpop.xlane.xlu0 %174
    %v176 = vmul.f32 %v172, %v163
    %v177 = vmul.f32 %v175, %v163
    %v178 = vadd.f32 %v176, 1e-12
    %v179 = vadd.f32 %v177, 1e-12
    %v180 = vrsqrt.pop %v178
    %v181 = vrsqrt.pop %v179
    %v182 = vmul.f32 %v166, %v180
    %v183 = vmul.f32 %v167, %v181
    %v184 = vlaneseq
    %v185 = vshrl.u32 %v184, 7
    %v186 = vsub.s32 0, %v185
    %v187 = vrot.slane %v154, %v186
    %v188 = vmul.f32 %v182, %v187
    %v189 = vmul.f32 %v183, %v187
    %v190 = vlaneseq
    %v191 = vshrl.u32 %v190, 7
    %v192 = vsub.s32 0, %v191
    %v193 = vrot.slane %v155, %v192
    %v194 = vadd.f32 %v188, %v193
    %v195 = vadd.f32 %v189, %v193
    %v196 = vld [vmem:[%s7] sm:$0xff]
    %v197 = vld [vmem:[%s7 + $0x8] sm:$0xff]
    %v198 = vld [vmem:[%s2] sm:$0xff]
    %v199 = vld [vmem:[%s2 + $0x8] sm:$0xff]
    %v200 = vld [vmem:[%s2 + $0x10] sm:$0xff]
    %v201 = vld [vmem:[%s2 + $0x18] sm:$0xff]
    %v202 = vld [vmem:[%s6 + $0x2] sm:$0x1]
    %v203 = vlaneseq
    %v204 = vshrl.u32 %v203, 7
    %v205 = vsub.s32 0, %v204
    %v206 = vrot.slane %v202, %v205
    %v208 = vsel %vm156, %v194, 0
    %v211 = vsel %vm156, %v195, 0
    %213 = vmatprep.subr.mxu0 0.0
    %214 = vmatpush1.msra.mxu0 %v198
    %215 = vmatprep.subr.mxu0 0.0
    %216 = vmatpush1.msra.mxu0 %v199
    %217 = vmatprep.subr.mxu0 0.0
    %218 = vmatpush1.msra.mxu0 %v200
    %219 = vmatprep.subr.mxu0 0.0
    %220 = vmatpush1.msra.mxu0 %v201
    %221 = vmatprep.subr.mxu0 0.0
    %222 = vmatpush1.msra.mxu0 0.0
    %223 = vmatprep.subr.mxu0 0.0
    %224 = vmatpush1.msra.mxu0 0.0
    %225 = vmatprep.subr.mxu0 0.0
    %226 = vmatpush1.msra.mxu0 0.0
    %227 = vmatprep.subr.mxu0 0.0
    %228 = vmatpush1.msra.mxu0 0.0
    %229 = vmatprep.subr.mxu0 0.0
    %230 = vmatpush1.msra.mxu0 0.0
    %231 = vmatprep.subr.mxu0 0.0
    %232 = vmatpush1.msra.mxu0 0.0
    %233 = vmatprep.subr.mxu0 0.0
    %234 = vmatpush1.msra.mxu0 0.0
    %235 = vmatprep.subr.mxu0 0.0
    %236 = vmatpush1.msra.mxu0 0.0
    %237 = vmatprep.subr.mxu0 0.0
    %238 = vmatpush1.msra.mxu0 0.0
    %239 = vmatprep.subr.mxu0 0.0
    %240 = vmatpush1.msra.mxu0 0.0
    %241 = vmatprep.subr.mxu0 0.0
    %242 = vmatpush1.msra.mxu0 0.0
    %243 = vmatprep.subr.mxu0 0.0
    %244 = vmatpush1.msra.mxu0 0.0
    %245 = vmatprep.subr.mxu0 0.0
    %246 = vmatpush1.msra.mxu0 0.0
    %247 = vmatprep.subr.mxu0 0.0
    %248 = vmatpush1.msra.mxu0 0.0
    %249 = vmatprep.subr.mxu0 0.0
    %250 = vmatpush1.msra.mxu0 0.0
    %251 = vmatprep.subr.mxu0 0.0
    %252 = vmatpush1.msra.mxu0 0.0
    %253 = vmatprep.subr.mxu0 0.0
    %254 = vmatpush1.msra.mxu0 0.0
    %255 = vmatprep.subr.mxu0 0.0
    %256 = vmatpush1.msra.mxu0 0.0
    %257 = vmatprep.subr.mxu0 0.0
    %258 = vmatpush1.msra.mxu0 0.0
    %259 = vmatprep.subr.mxu0 0.0
    %260 = vmatpush1.msra.mxu0 0.0
    %261 = vmatprep.subr.mxu0 0.0
    %262 = vmatpush1.msra.mxu0 0.0
    %263 = vmatprep.subr.mxu0 0.0
    %264 = vmatpush1.msra.mxu0 0.0
    %265 = vmatprep.subr.mxu0 0.0
    %266 = vmatpush1.msra.mxu0 0.0
    %267 = vmatprep.subr.mxu0 0.0
    %268 = vmatpush1.msra.mxu0 0.0
    %269 = vmatprep.subr.mxu0 0.0
    %270 = vmatpush1.msra.mxu0 0.0
    %271 = vmatprep.subr.mxu0 0.0
    %272 = vmatpush1.msra.mxu0 0.0
    %273 = vmatprep.subr.mxu0 0.0
    %274 = vmatpush1.msra.mxu0 0.0
    %275 = vmatprep.subr.mxu0 0.0
    %276 = vmatpush1.msra.mxu0 0.0
    %277 = vmatprep.mubr.f32.mxu0 0.0
    %278 = vmatmul.mubr.f32.gmra.mrb[0].mxu0 %v208
    %v279 = vpop.f32.mrb[0].mxu0
    %v280 = vadd.f32 %v206, %v279
    %v281 = vpop.f32.mrb[0].mxu0
    %282 = vmatprep.mubr.f32.mxu0 0.0
    %283 = vmatmul.mubr.f32.gmra.mrb[0].mxu0 %v211
    %v284 = vpop.f32.mrb[0].mxu0
    %v285 = vadd.f32 %v206, %v284
    %v286 = vpop.f32.mrb[0].mxu0
    %287 = vdwg.mxu0
    %v288 = vld [vmem:[%s3] sm:$0xff]
    %v289 = vld [vmem:[%s3 + $0x8] sm:$0xff]
    %v290 = vld [vmem:[%s3 + $0x10] sm:$0xff]
    %v291 = vld [vmem:[%s3 + $0x18] sm:$0xff]
    %v292 = vld [vmem:[%s6 + $0x3] sm:$0x1]
    %294 = vrot.lane.b32.xlu0 %v280, 96
    %v295 = vpop.permute.xlu0 %294
    %vm296 = vcmask 130048
    %v297 = vsel %vm296, %v280, 0
    %v299 = vsel %vm296, %v295, 0
    %301 = vmatprep.subr.mxu0 0.0
    %302 = vmatpush1.xpose.msra.mxu0 %v299
    %303 = vmatprep.subr.mxu0 0.0
    %304 = vmatpush1.xpose.msra.mxu0 0.0
    %305 = vmatprep.subr.mxu0 0.0
    %306 = vmatpush1.xpose.msra.mxu0 0.0
    %307 = vmatprep.subr.mxu0 0.0
    %308 = vmatpush1.xpose.msra.mxu0 0.0
    %309 = vmatprep.subr.mxu0 0.0
    %310 = vmatpush1.xpose.msra.mxu0 0.0
    %311 = vmatprep.subr.mxu0 0.0
    %312 = vmatpush1.xpose.msra.mxu0 0.0
    %313 = vmatprep.subr.mxu0 0.0
    %314 = vmatpush1.xpose.msra.mxu0 0.0
    %315 = vmatprep.subr.mxu0 0.0
    %316 = vmatpush1.xpose.msra.mxu0 0.0
    %317 = vmatprep.subr.mxu0 0.0
    %318 = vmatpush1.xpose.msra.mxu0 0.0
    %319 = vmatprep.subr.mxu0 0.0
    %320 = vmatpush1.xpose.msra.mxu0 0.0
    %321 = vmatprep.subr.mxu0 0.0
    %322 = vmatpush1.xpose.msra.mxu0 0.0
    %323 = vmatprep.subr.mxu0 0.0
    %324 = vmatpush1.xpose.msra.mxu0 0.0
    %325 = vmatprep.subr.mxu0 0.0
    %326 = vmatpush1.xpose.msra.mxu0 0.0
    %327 = vmatprep.subr.mxu0 0.0
    %328 = vmatpush1.xpose.msra.mxu0 0.0
    %329 = vmatprep.subr.mxu0 0.0
    %330 = vmatpush1.xpose.msra.mxu0 0.0
    %331 = vmatprep.subr.mxu0 0.0
    %332 = vmatpush1.xpose.msra.mxu0 0.0
    %333 = vmatprep.subr.mxu0 0.0
    %334 = vmatpush1.xpose.msra.mxu0 0.0
    %335 = vmatprep.subr.mxu0 0.0
    %336 = vmatpush1.xpose.msra.mxu0 0.0
    %337 = vmatprep.subr.mxu0 0.0
    %338 = vmatpush1.xpose.msra.mxu0 0.0
    %339 = vmatprep.subr.mxu0 0.0
    %340 = vmatpush1.xpose.msra.mxu0 0.0
    %341 = vmatprep.subr.mxu0 0.0
    %342 = vmatpush1.xpose.msra.mxu0 0.0
    %343 = vmatprep.subr.mxu0 0.0
    %344 = vmatpush1.xpose.msra.mxu0 0.0
    %345 = vmatprep.subr.mxu0 0.0
    %346 = vmatpush1.xpose.msra.mxu0 0.0
    %347 = vmatprep.subr.mxu0 0.0
    %348 = vmatpush1.xpose.msra.mxu0 0.0
    %349 = vmatprep.subr.mxu0 0.0
    %350 = vmatpush1.xpose.msra.mxu0 0.0
    %351 = vmatprep.subr.mxu0 0.0
    %352 = vmatpush1.xpose.msra.mxu0 0.0
    %353 = vmatprep.subr.mxu0 0.0
    %354 = vmatpush1.xpose.msra.mxu0 0.0
    %355 = vmatprep.subr.mxu0 0.0
    %356 = vmatpush1.xpose.msra.mxu0 0.0
    %357 = vmatprep.subr.mxu0 0.0
    %358 = vmatpush1.xpose.msra.mxu0 0.0
    %359 = vmatprep.subr.mxu0 0.0
    %360 = vmatpush1.xpose.msra.mxu0 0.0
    %361 = vmatprep.subr.mxu0 0.0
    %362 = vmatpush1.xpose.msra.mxu0 0.0
    %363 = vmatprep.subr.mxu0 0.0
    %364 = vmatpush1.xpose.msra.mxu0 0.0
    %365 = vmatprep.mubr.f32.mxu0 0.0
    %366 = vmatmul.mubr.f32.gmra.mrb[0].mxu0 %v297
    %v367 = vpop.f32.mrb[0].mxu0
    %v368 = vadd.f32 0.0, %v367
    %v369 = vpop.f32.mrb[0].mxu0
    %370 = vdwg.mxu0
    %372 = vrot.lane.b32.xlu0 %v285, 96
    %v373 = vpop.permute.xlu0 %372
    %v374 = vsel %vm296, %v285, 0
    %v376 = vsel %vm296, %v373, 0
    %378 = vmatprep.subr.mxu0 0.0
    %379 = vmatpush1.xpose.msra.mxu0 %v376
    %380 = vmatprep.subr.mxu0 0.0
    %381 = vmatpush1.xpose.msra.mxu0 0.0
    %382 = vmatprep.subr.mxu0 0.0
    %383 = vmatpush1.xpose.msra.mxu0 0.0
    %384 = vmatprep.subr.mxu0 0.0
    %385 = vmatpush1.xpose.msra.mxu0 0.0
    %386 = vmatprep.subr.mxu0 0.0
    %387 = vmatpush1.xpose.msra.mxu0 0.0
    %388 = vmatprep.subr.mxu0 0.0
    %389 = vmatpush1.xpose.msra.mxu0 0.0
    %390 = vmatprep.subr.mxu0 0.0
    %391 = vmatpush1.xpose.msra.mxu0 0.0
    %392 = vmatprep.subr.mxu0 0.0
    %393 = vmatpush1.xpose.msra.mxu0 0.0
    %394 = vmatprep.subr.mxu0 0.0
    %395 = vmatpush1.xpose.msra.mxu0 0.0
    %396 = vmatprep.subr.mxu0 0.0
    %397 = vmatpush1.xpose.msra.mxu0 0.0
    %398 = vmatprep.subr.mxu0 0.0
    %399 = vmatpush1.xpose.msra.mxu0 0.0
    %400 = vmatprep.subr.mxu0 0.0
    %401 = vmatpush1.xpose.msra.mxu0 0.0
    %402 = vmatprep.subr.mxu0 0.0
    %403 = vmatpush1.xpose.msra.mxu0 0.0
    %404 = vmatprep.subr.mxu0 0.0
    %405 = vmatpush1.xpose.msra.mxu0 0.0
    %406 = vmatprep.subr.mxu0 0.0
    %407 = vmatpush1.xpose.msra.mxu0 0.0
    %408 = vmatprep.subr.mxu0 0.0
    %409 = vmatpush1.xpose.msra.mxu0 0.0
    %410 = vmatprep.subr.mxu0 0.0
    %411 = vmatpush1.xpose.msra.mxu0 0.0
    %412 = vmatprep.subr.mxu0 0.0
    %413 = vmatpush1.xpose.msra.mxu0 0.0
    %414 = vmatprep.subr.mxu0 0.0
    %415 = vmatpush1.xpose.msra.mxu0 0.0
    %416 = vmatprep.subr.mxu0 0.0
    %417 = vmatpush1.xpose.msra.mxu0 0.0
    %418 = vmatprep.subr.mxu0 0.0
    %419 = vmatpush1.xpose.msra.mxu0 0.0
    %420 = vmatprep.subr.mxu0 0.0
    %421 = vmatpush1.xpose.msra.mxu0 0.0
    %422 = vmatprep.subr.mxu0 0.0
    %423 = vmatpush1.xpose.msra.mxu0 0.0
    %424 = vmatprep.subr.mxu0 0.0
    %425 = vmatpush1.xpose.msra.mxu0 0.0
    %426 = vmatprep.subr.mxu0 0.0
    %427 = vmatpush1.xpose.msra.mxu0 0.0
    %428 = vmatprep.subr.mxu0 0.0
    %429 = vmatpush1.xpose.msra.mxu0 0.0
    %430 = vmatprep.subr.mxu0 0.0
    %431 = vmatpush1.xpose.msra.mxu0 0.0
    %432 = vmatprep.subr.mxu0 0.0
    %433 = vmatpush1.xpose.msra.mxu0 0.0
    %434 = vmatprep.subr.mxu0 0.0
    %435 = vmatpush1.xpose.msra.mxu0 0.0
    %436 = vmatprep.subr.mxu0 0.0
    %437 = vmatpush1.xpose.msra.mxu0 0.0
    %438 = vmatprep.subr.mxu0 0.0
    %439 = vmatpush1.xpose.msra.mxu0 0.0
    %440 = vmatprep.subr.mxu0 0.0
    %441 = vmatpush1.xpose.msra.mxu0 0.0
    %442 = vmatprep.mubr.f32.mxu0 0.0
    %443 = vmatmul.mubr.f32.gmra.mrb[0].mxu0 %v374
    %v444 = vpop.f32.mrb[0].mxu0
    %v445 = vadd.f32 0.0, %v444
    %v446 = vpop.f32.mrb[0].mxu0
    %447 = vdwg.mxu0
    %v448 = vmul.f32 %v368, 0.25
    %v449 = vmul.f32 %v445, 0.25
    %v450 = vadd.f32 %v448, %v196
    %v451 = vadd.f32 %v449, %v197
    %vm452 = vcmask 64512
    %v453 = vsel %vm452, %v450, -inf
    %454 = vmax.xlane.f32.xlu0 %v453
    %v455 = vpop.xlane.xlu0 %454
    %v456 = vsel %vm452, %v451, -inf
    %457 = vmax.xlane.f32.xlu0 %v456
    %v458 = vpop.xlane.xlu0 %457
    %v459 = vsub.f32 %v450, %v455
    %v460 = vsub.f32 %v451, %v458
    %v461 = vmul.f32 %v459, 1.442695
    %v462 = vpow.pop %v461
    %v463 = vmul.f32 %v460, 1.442695
    %v464 = vpow.pop %v463
    %v465 = vsel %vm452, %v462, 0.0
    %466 = vadd.xlane.f32.xlu0 %v465
    %v467 = vpop.xlane.xlu0 %466
    %v468 = vsel %vm452, %v464, 0.0
    %469 = vadd.xlane.f32.xlu0 %v468
    %v470 = vpop.xlane.xlu0 %469
    %v471 = vrcp.pop %v467
    %v472 = vrcp.pop %v470
    %v473 = vmul.f32 %v462, %v471
    %v474 = vmul.f32 %v464, %v472
    %475 = vrot.lane.b32.xlu0 %v280, 64
    %v476 = vpop.permute.xlu0 %475
    %v479 = vsel %vm452, %v473, 0
    %481 = vmatprep.subr.mxu0 0.0
    %482 = vmatpush1.msra.mxu0 %v476
    %483 = vmatprep.subr.mxu0 0.0
    %484 = vmatpush1.msra.mxu0 0.0
    %485 = vmatprep.subr.mxu0 0.0
    %486 = vmatpush1.msra.mxu0 0.0
    %487 = vmatprep.subr.mxu0 0.0
    %488 = vmatpush1.msra.mxu0 0.0
    %489 = vmatprep.subr.mxu0 0.0
    %490 = vmatpush1.msra.mxu0 0.0
    %491 = vmatprep.subr.mxu0 0.0
    %492 = vmatpush1.msra.mxu0 0.0
    %493 = vmatprep.subr.mxu0 0.0
    %494 = vmatpush1.msra.mxu0 0.0
    %495 = vmatprep.subr.mxu0 0.0
    %496 = vmatpush1.msra.mxu0 0.0
    %497 = vmatprep.subr.mxu0 0.0
    %498 = vmatpush1.msra.mxu0 0.0
    %499 = vmatprep.subr.mxu0 0.0
    %500 = vmatpush1.msra.mxu0 0.0
    %501 = vmatprep.subr.mxu0 0.0
    %502 = vmatpush1.msra.mxu0 0.0
    %503 = vmatprep.subr.mxu0 0.0
    %504 = vmatpush1.msra.mxu0 0.0
    %505 = vmatprep.subr.mxu0 0.0
    %506 = vmatpush1.msra.mxu0 0.0
    %507 = vmatprep.subr.mxu0 0.0
    %508 = vmatpush1.msra.mxu0 0.0
    %509 = vmatprep.subr.mxu0 0.0
    %510 = vmatpush1.msra.mxu0 0.0
    %511 = vmatprep.subr.mxu0 0.0
    %512 = vmatpush1.msra.mxu0 0.0
    %513 = vmatprep.subr.mxu0 0.0
    %514 = vmatpush1.msra.mxu0 0.0
    %515 = vmatprep.subr.mxu0 0.0
    %516 = vmatpush1.msra.mxu0 0.0
    %517 = vmatprep.subr.mxu0 0.0
    %518 = vmatpush1.msra.mxu0 0.0
    %519 = vmatprep.subr.mxu0 0.0
    %520 = vmatpush1.msra.mxu0 0.0
    %521 = vmatprep.subr.mxu0 0.0
    %522 = vmatpush1.msra.mxu0 0.0
    %523 = vmatprep.subr.mxu0 0.0
    %524 = vmatpush1.msra.mxu0 0.0
    %525 = vmatprep.subr.mxu0 0.0
    %526 = vmatpush1.msra.mxu0 0.0
    %527 = vmatprep.subr.mxu0 0.0
    %528 = vmatpush1.msra.mxu0 0.0
    %529 = vmatprep.subr.mxu0 0.0
    %530 = vmatpush1.msra.mxu0 0.0
    %531 = vmatprep.subr.mxu0 0.0
    %532 = vmatpush1.msra.mxu0 0.0
    %533 = vmatprep.subr.mxu0 0.0
    %534 = vmatpush1.msra.mxu0 0.0
    %535 = vmatprep.subr.mxu0 0.0
    %536 = vmatpush1.msra.mxu0 0.0
    %537 = vmatprep.subr.mxu0 0.0
    %538 = vmatpush1.msra.mxu0 0.0
    %539 = vmatprep.subr.mxu0 0.0
    %540 = vmatpush1.msra.mxu0 0.0
    %541 = vmatprep.subr.mxu0 0.0
    %542 = vmatpush1.msra.mxu0 0.0
    %543 = vmatprep.subr.mxu0 0.0
    %544 = vmatpush1.msra.mxu0 0.0
    %545 = vmatprep.mubr.f32.mxu0 0.0
    %546 = vmatmul.mubr.f32.gmra.mrb[0].mxu0 %v479
    %v547 = vpop.f32.mrb[0].mxu0
    %v548 = vadd.f32 0.0, %v547
    %v549 = vpop.f32.mrb[0].mxu0
    %550 = vdwg.mxu0
    %551 = vrot.lane.b32.xlu0 %v285, 64
    %v552 = vpop.permute.xlu0 %551
    %v555 = vsel %vm452, %v474, 0
    %557 = vmatprep.subr.mxu0 0.0
    %558 = vmatpush1.msra.mxu0 %v552
    %559 = vmatprep.subr.mxu0 0.0
    %560 = vmatpush1.msra.mxu0 0.0
    %561 = vmatprep.subr.mxu0 0.0
    %562 = vmatpush1.msra.mxu0 0.0
    %563 = vmatprep.subr.mxu0 0.0
    %564 = vmatpush1.msra.mxu0 0.0
    %565 = vmatprep.subr.mxu0 0.0
    %566 = vmatpush1.msra.mxu0 0.0
    %567 = vmatprep.subr.mxu0 0.0
    %568 = vmatpush1.msra.mxu0 0.0
    %569 = vmatprep.subr.mxu0 0.0
    %570 = vmatpush1.msra.mxu0 0.0
    %571 = vmatprep.subr.mxu0 0.0
    %572 = vmatpush1.msra.mxu0 0.0
    %573 = vmatprep.subr.mxu0 0.0
    %574 = vmatpush1.msra.mxu0 0.0
    %575 = vmatprep.subr.mxu0 0.0
    %576 = vmatpush1.msra.mxu0 0.0
    %577 = vmatprep.subr.mxu0 0.0
    %578 = vmatpush1.msra.mxu0 0.0
    %579 = vmatprep.subr.mxu0 0.0
    %580 = vmatpush1.msra.mxu0 0.0
    %581 = vmatprep.subr.mxu0 0.0
    %582 = vmatpush1.msra.mxu0 0.0
    %583 = vmatprep.subr.mxu0 0.0
    %584 = vmatpush1.msra.mxu0 0.0
    %585 = vmatprep.subr.mxu0 0.0
    %586 = vmatpush1.msra.mxu0 0.0
    %587 = vmatprep.subr.mxu0 0.0
    %588 = vmatpush1.msra.mxu0 0.0
    %589 = vmatprep.subr.mxu0 0.0
    %590 = vmatpush1.msra.mxu0 0.0
    %591 = vmatprep.subr.mxu0 0.0
    %592 = vmatpush1.msra.mxu0 0.0
    %593 = vmatprep.subr.mxu0 0.0
    %594 = vmatpush1.msra.mxu0 0.0
    %595 = vmatprep.subr.mxu0 0.0
    %596 = vmatpush1.msra.mxu0 0.0
    %597 = vmatprep.subr.mxu0 0.0
    %598 = vmatpush1.msra.mxu0 0.0
    %599 = vmatprep.subr.mxu0 0.0
    %600 = vmatpush1.msra.mxu0 0.0
    %601 = vmatprep.subr.mxu0 0.0
    %602 = vmatpush1.msra.mxu0 0.0
    %603 = vmatprep.subr.mxu0 0.0
    %604 = vmatpush1.msra.mxu0 0.0
    %605 = vmatprep.subr.mxu0 0.0
    %606 = vmatpush1.msra.mxu0 0.0
    %607 = vmatprep.subr.mxu0 0.0
    %608 = vmatpush1.msra.mxu0 0.0
    %609 = vmatprep.subr.mxu0 0.0
    %610 = vmatpush1.msra.mxu0 0.0
    %611 = vmatprep.subr.mxu0 0.0
    %612 = vmatpush1.msra.mxu0 0.0
    %613 = vmatprep.subr.mxu0 0.0
    %614 = vmatpush1.msra.mxu0 0.0
    %615 = vmatprep.subr.mxu0 0.0
    %616 = vmatpush1.msra.mxu0 0.0
    %617 = vmatprep.subr.mxu0 0.0
    %618 = vmatpush1.msra.mxu0 0.0
    %619 = vmatprep.subr.mxu0 0.0
    %620 = vmatpush1.msra.mxu0 0.0
    %621 = vmatprep.mubr.f32.mxu0 0.0
    %622 = vmatmul.mubr.f32.gmra.mrb[0].mxu0 %v555
    %v623 = vpop.f32.mrb[0].mxu0
    %v624 = vadd.f32 0.0, %v623
    %v625 = vpop.f32.mrb[0].mxu0
    %626 = vdwg.mxu0
    %v628 = vsel %vm296, %v548, 0
    %v631 = vsel %vm296, %v624, 0
    %633 = vmatprep.subr.mxu0 0.0
    %634 = vmatpush1.msra.mxu0 %v288
    %635 = vmatprep.subr.mxu0 0.0
    %636 = vmatpush1.msra.mxu0 %v289
    %637 = vmatprep.subr.mxu0 0.0
    %638 = vmatpush1.msra.mxu0 0.0
    %639 = vmatprep.subr.mxu0 0.0
    %640 = vmatpush1.msra.mxu0 0.0
    %641 = vmatprep.subr.mxu0 0.0
    %642 = vmatpush1.msra.mxu0 0.0
    %643 = vmatprep.subr.mxu0 0.0
    %644 = vmatpush1.msra.mxu0 0.0
    %645 = vmatprep.subr.mxu0 0.0
    %646 = vmatpush1.msra.mxu0 0.0
    %647 = vmatprep.subr.mxu0 0.0
    %648 = vmatpush1.msra.mxu0 0.0
    %649 = vmatprep.subr.mxu0 0.0
    %650 = vmatpush1.msra.mxu0 0.0
    %651 = vmatprep.subr.mxu0 0.0
    %652 = vmatpush1.msra.mxu0 0.0
    %653 = vmatprep.subr.mxu0 0.0
    %654 = vmatpush1.msra.mxu0 0.0
    %655 = vmatprep.subr.mxu0 0.0
    %656 = vmatpush1.msra.mxu0 0.0
    %657 = vmatprep.subr.mxu0 0.0
    %658 = vmatpush1.msra.mxu0 0.0
    %659 = vmatprep.subr.mxu0 0.0
    %660 = vmatpush1.msra.mxu0 0.0
    %661 = vmatprep.subr.mxu0 0.0
    %662 = vmatpush1.msra.mxu0 0.0
    %663 = vmatprep.subr.mxu0 0.0
    %664 = vmatpush1.msra.mxu0 0.0
    %665 = vmatprep.subr.mxu0 0.0
    %666 = vmatpush1.msra.mxu0 0.0
    %667 = vmatprep.subr.mxu0 0.0
    %668 = vmatpush1.msra.mxu0 0.0
    %669 = vmatprep.subr.mxu0 0.0
    %670 = vmatpush1.msra.mxu0 0.0
    %671 = vmatprep.subr.mxu0 0.0
    %672 = vmatpush1.msra.mxu0 0.0
    %673 = vmatprep.subr.mxu0 0.0
    %674 = vmatpush1.msra.mxu0 0.0
    %675 = vmatprep.subr.mxu0 0.0
    %676 = vmatpush1.msra.mxu0 0.0
    %677 = vmatprep.subr.mxu0 0.0
    %678 = vmatpush1.msra.mxu0 0.0
    %679 = vmatprep.subr.mxu0 0.0
    %680 = vmatpush1.msra.mxu0 0.0
    %681 = vmatprep.subr.mxu0 0.0
    %682 = vmatpush1.msra.mxu0 0.0
    %683 = vmatprep.subr.mxu0 0.0
    %684 = vmatpush1.msra.mxu0 0.0
    %685 = vmatprep.subr.mxu0 0.0
    %686 = vmatpush1.msra.mxu0 0.0
    %687 = vmatprep.subr.mxu0 0.0
    %688 = vmatpush1.msra.mxu0 0.0
    %689 = vmatprep.subr.mxu0 0.0
    %690 = vmatpush1.msra.mxu0 0.0
    %691 = vmatprep.subr.mxu0 0.0
    %692 = vmatpush1.msra.mxu0 0.0
    %693 = vmatprep.subr.mxu0 0.0
    %694 = vmatpush1.msra.mxu0 0.0
    %695 = vmatprep.subr.mxu0 0.0
    %696 = vmatpush1.msra.mxu0 0.0
    %697 = vmatprep.mubr.f32.mxu0 0.0
    %698 = vmatmul.mubr.f32.gmra.mrb[0].mxu0 %v628
    %v699 = vpop.f32.mrb[0].mxu0
    %v700 = vadd.f32 0.0, %v699
    %v701 = vpop.f32.mrb[0].mxu0
    %702 = vmatprep.mubr.f32.mxu0 0.0
    %703 = vmatmul.mubr.f32.gmra.mrb[0].mxu0 %v631
    %v704 = vpop.f32.mrb[0].mxu0
    %v705 = vadd.f32 0.0, %v704
    %v706 = vpop.f32.mrb[0].mxu0
    %707 = vdwg.mxu0
    %v708 = vlaneseq
    %v709 = vshrl.u32 %v708, 7
    %v710 = vsub.s32 0, %v709
    %v711 = vrot.slane %v292, %v710
    %v712 = vadd.f32 %v711, %v700
    %v713 = vadd.f32 %v711, %v705
    %714 = vrot.lane.b32.xlu0 %v280, 112
    %v715 = vpop.permute.xlu0 %714
    %716 = vrot.lane.b32.xlu0 %v280, 80
    %v717 = vpop.permute.xlu0 %716
    %v718 = vsel %vm296, %v715, 0
    %v720 = vsel %vm296, %v717, 0
    %722 = vmatprep.subr.mxu0 0.0
    %723 = vmatpush1.xpose.msra.mxu0 %v720
    %724 = vmatprep.subr.mxu0 0.0
    %725 = vmatpush1.xpose.msra.mxu0 0.0
    %726 = vmatprep.subr.mxu0 0.0
    %727 = vmatpush1.xpose.msra.mxu0 0.0
    %728 = vmatprep.subr.mxu0 0.0
    %729 = vmatpush1.xpose.msra.mxu0 0.0
    %730 = vmatprep.subr.mxu0 0.0
    %731 = vmatpush1.xpose.msra.mxu0 0.0
    %732 = vmatprep.subr.mxu0 0.0
    %733 = vmatpush1.xpose.msra.mxu0 0.0
    %734 = vmatprep.subr.mxu0 0.0
    %735 = vmatpush1.xpose.msra.mxu0 0.0
    %736 = vmatprep.subr.mxu0 0.0
    %737 = vmatpush1.xpose.msra.mxu0 0.0
    %738 = vmatprep.subr.mxu0 0.0
    %739 = vmatpush1.xpose.msra.mxu0 0.0
    %740 = vmatprep.subr.mxu0 0.0
    %741 = vmatpush1.xpose.msra.mxu0 0.0
    %742 = vmatprep.subr.mxu0 0.0
    %743 = vmatpush1.xpose.msra.mxu0 0.0
    %744 = vmatprep.subr.mxu0 0.0
    %745 = vmatpush1.xpose.msra.mxu0 0.0
    %746 = vmatprep.subr.mxu0 0.0
    %747 = vmatpush1.xpose.msra.mxu0 0.0
    %748 = vmatprep.subr.mxu0 0.0
    %749 = vmatpush1.xpose.msra.mxu0 0.0
    %750 = vmatprep.subr.mxu0 0.0
    %751 = vmatpush1.xpose.msra.mxu0 0.0
    %752 = vmatprep.subr.mxu0 0.0
    %753 = vmatpush1.xpose.msra.mxu0 0.0
    %754 = vmatprep.subr.mxu0 0.0
    %755 = vmatpush1.xpose.msra.mxu0 0.0
    %756 = vmatprep.subr.mxu0 0.0
    %757 = vmatpush1.xpose.msra.mxu0 0.0
    %758 = vmatprep.subr.mxu0 0.0
    %759 = vmatpush1.xpose.msra.mxu0 0.0
    %760 = vmatprep.subr.mxu0 0.0
    %761 = vmatpush1.xpose.msra.mxu0 0.0
    %762 = vmatprep.subr.mxu0 0.0
    %763 = vmatpush1.xpose.msra.mxu0 0.0
    %764 = vmatprep.subr.mxu0 0.0
    %765 = vmatpush1.xpose.msra.mxu0 0.0
    %766 = vmatprep.subr.mxu0 0.0
    %767 = vmatpush1.xpose.msra.mxu0 0.0
    %768 = vmatprep.subr.mxu0 0.0
    %769 = vmatpush1.xpose.msra.mxu0 0.0
    %770 = vmatprep.subr.mxu0 0.0
    %771 = vmatpush1.xpose.msra.mxu0 0.0
    %772 = vmatprep.subr.mxu0 0.0
    %773 = vmatpush1.xpose.msra.mxu0 0.0
    %774 = vmatprep.subr.mxu0 0.0
    %775 = vmatpush1.xpose.msra.mxu0 0.0
    %776 = vmatprep.subr.mxu0 0.0
    %777 = vmatpush1.xpose.msra.mxu0 0.0
    %778 = vmatprep.subr.mxu0 0.0
    %779 = vmatpush1.xpose.msra.mxu0 0.0
    %780 = vmatprep.subr.mxu0 0.0
    %781 = vmatpush1.xpose.msra.mxu0 0.0
    %782 = vmatprep.subr.mxu0 0.0
    %783 = vmatpush1.xpose.msra.mxu0 0.0
    %784 = vmatprep.subr.mxu0 0.0
    %785 = vmatpush1.xpose.msra.mxu0 0.0
    %786 = vmatprep.mubr.f32.mxu0 0.0
    %787 = vmatmul.mubr.f32.gmra.mrb[0].mxu0 %v718
    %v788 = vpop.f32.mrb[0].mxu0
    %v789 = vadd.f32 0.0, %v788
    %v790 = vpop.f32.mrb[0].mxu0
    %791 = vdwg.mxu0
    %792 = vrot.lane.b32.xlu0 %v285, 112
    %v793 = vpop.permute.xlu0 %792
    %794 = vrot.lane.b32.xlu0 %v285, 80
    %v795 = vpop.permute.xlu0 %794
    %v796 = vsel %vm296, %v793, 0
    %v798 = vsel %vm296, %v795, 0
    %800 = vmatprep.subr.mxu0 0.0
    %801 = vmatpush1.xpose.msra.mxu0 %v798
    %802 = vmatprep.subr.mxu0 0.0
    %803 = vmatpush1.xpose.msra.mxu0 0.0
    %804 = vmatprep.subr.mxu0 0.0
    %805 = vmatpush1.xpose.msra.mxu0 0.0
    %806 = vmatprep.subr.mxu0 0.0
    %807 = vmatpush1.xpose.msra.mxu0 0.0
    %808 = vmatprep.subr.mxu0 0.0
    %809 = vmatpush1.xpose.msra.mxu0 0.0
    %810 = vmatprep.subr.mxu0 0.0
    %811 = vmatpush1.xpose.msra.mxu0 0.0
    %812 = vmatprep.subr.mxu0 0.0
    %813 = vmatpush1.xpose.msra.mxu0 0.0
    %814 = vmatprep.subr.mxu0 0.0
    %815 = vmatpush1.xpose.msra.mxu0 0.0
    %816 = vmatprep.subr.mxu0 0.0
    %817 = vmatpush1.xpose.msra.mxu0 0.0
    %818 = vmatprep.subr.mxu0 0.0
    %819 = vmatpush1.xpose.msra.mxu0 0.0
    %820 = vmatprep.subr.mxu0 0.0
    %821 = vmatpush1.xpose.msra.mxu0 0.0
    %822 = vmatprep.subr.mxu0 0.0
    %823 = vmatpush1.xpose.msra.mxu0 0.0
    %824 = vmatprep.subr.mxu0 0.0
    %825 = vmatpush1.xpose.msra.mxu0 0.0
    %826 = vmatprep.subr.mxu0 0.0
    %827 = vmatpush1.xpose.msra.mxu0 0.0
    %828 = vmatprep.subr.mxu0 0.0
    %829 = vmatpush1.xpose.msra.mxu0 0.0
    %830 = vmatprep.subr.mxu0 0.0
    %831 = vmatpush1.xpose.msra.mxu0 0.0
    %832 = vmatprep.subr.mxu0 0.0
    %833 = vmatpush1.xpose.msra.mxu0 0.0
    %834 = vmatprep.subr.mxu0 0.0
    %835 = vmatpush1.xpose.msra.mxu0 0.0
    %836 = vmatprep.subr.mxu0 0.0
    %837 = vmatpush1.xpose.msra.mxu0 0.0
    %838 = vmatprep.subr.mxu0 0.0
    %839 = vmatpush1.xpose.msra.mxu0 0.0
    %840 = vmatprep.subr.mxu0 0.0
    %841 = vmatpush1.xpose.msra.mxu0 0.0
    %842 = vmatprep.subr.mxu0 0.0
    %843 = vmatpush1.xpose.msra.mxu0 0.0
    %844 = vmatprep.subr.mxu0 0.0
    %845 = vmatpush1.xpose.msra.mxu0 0.0
    %846 = vmatprep.subr.mxu0 0.0
    %847 = vmatpush1.xpose.msra.mxu0 0.0
    %848 = vmatprep.subr.mxu0 0.0
    %849 = vmatpush1.xpose.msra.mxu0 0.0
    %850 = vmatprep.subr.mxu0 0.0
    %851 = vmatpush1.xpose.msra.mxu0 0.0
    %852 = vmatprep.subr.mxu0 0.0
    %853 = vmatpush1.xpose.msra.mxu0 0.0
    %854 = vmatprep.subr.mxu0 0.0
    %855 = vmatpush1.xpose.msra.mxu0 0.0
    %856 = vmatprep.subr.mxu0 0.0
    %857 = vmatpush1.xpose.msra.mxu0 0.0
    %858 = vmatprep.subr.mxu0 0.0
    %859 = vmatpush1.xpose.msra.mxu0 0.0
    %860 = vmatprep.subr.mxu0 0.0
    %861 = vmatpush1.xpose.msra.mxu0 0.0
    %862 = vmatprep.subr.mxu0 0.0
    %863 = vmatpush1.xpose.msra.mxu0 0.0
    %864 = vmatprep.mubr.f32.mxu0 0.0
    %865 = vmatmul.mubr.f32.gmra.mrb[0].mxu0 %v796
    %v866 = vpop.f32.mrb[0].mxu0
    %v867 = vadd.f32 0.0, %v866
    %v868 = vpop.f32.mrb[0].mxu0
    %869 = vdwg.mxu0
    %v870 = vmul.f32 %v789, 0.25
    %v871 = vmul.f32 %v867, 0.25
    %v872 = vadd.f32 %v870, %v196
    %v873 = vadd.f32 %v871, %v197
    %v874 = vsel %vm452, %v872, -inf
    %875 = vmax.xlane.f32.xlu0 %v874
    %v876 = vpop.xlane.xlu0 %875
    %v877 = vsel %vm452, %v873, -inf
    %878 = vmax.xlane.f32.xlu0 %v877
    %v879 = vpop.xlane.xlu0 %878
    %v880 = vsub.f32 %v872, %v876
    %v881 = vsub.f32 %v873, %v879
    %v882 = vmul.f32 %v880, 1.442695
    %v883 = vpow.pop %v882
    %v884 = vmul.f32 %v881, 1.442695
    %v885 = vpow.pop %v884
    %v886 = vsel %vm452, %v883, 0.0
    %887 = vadd.xlane.f32.xlu0 %v886
    %v888 = vpop.xlane.xlu0 %887
    %v889 = vsel %vm452, %v885, 0.0
    %890 = vadd.xlane.f32.xlu0 %v889
    %v891 = vpop.xlane.xlu0 %890
    %v892 = vrcp.pop %v888
    %v893 = vrcp.pop %v891
    %v894 = vmul.f32 %v883, %v892
    %v895 = vmul.f32 %v885, %v893
    %896 = vrot.lane.b32.xlu0 %v280, 48
    %v897 = vpop.permute.xlu0 %896
    %v900 = vsel %vm452, %v894, 0
    %902 = vmatprep.subr.mxu0 0.0
    %903 = vmatpush1.msra.mxu0 %v897
    %904 = vmatprep.subr.mxu0 0.0
    %905 = vmatpush1.msra.mxu0 0.0
    %906 = vmatprep.subr.mxu0 0.0
    %907 = vmatpush1.msra.mxu0 0.0
    %908 = vmatprep.subr.mxu0 0.0
    %909 = vmatpush1.msra.mxu0 0.0
    %910 = vmatprep.subr.mxu0 0.0
    %911 = vmatpush1.msra.mxu0 0.0
    %912 = vmatprep.subr.mxu0 0.0
    %913 = vmatpush1.msra.mxu0 0.0
    %914 = vmatprep.subr.mxu0 0.0
    %915 = vmatpush1.msra.mxu0 0.0
    %916 = vmatprep.subr.mxu0 0.0
    %917 = vmatpush1.msra.mxu0 0.0
    %918 = vmatprep.subr.mxu0 0.0
    %919 = vmatpush1.msra.mxu0 0.0
    %920 = vmatprep.subr.mxu0 0.0
    %921 = vmatpush1.msra.mxu0 0.0
    %922 = vmatprep.subr.mxu0 0.0
    %923 = vmatpush1.msra.mxu0 0.0
    %924 = vmatprep.subr.mxu0 0.0
    %925 = vmatpush1.msra.mxu0 0.0
    %926 = vmatprep.subr.mxu0 0.0
    %927 = vmatpush1.msra.mxu0 0.0
    %928 = vmatprep.subr.mxu0 0.0
    %929 = vmatpush1.msra.mxu0 0.0
    %930 = vmatprep.subr.mxu0 0.0
    %931 = vmatpush1.msra.mxu0 0.0
    %932 = vmatprep.subr.mxu0 0.0
    %933 = vmatpush1.msra.mxu0 0.0
    %934 = vmatprep.subr.mxu0 0.0
    %935 = vmatpush1.msra.mxu0 0.0
    %936 = vmatprep.subr.mxu0 0.0
    %937 = vmatpush1.msra.mxu0 0.0
    %938 = vmatprep.subr.mxu0 0.0
    %939 = vmatpush1.msra.mxu0 0.0
    %940 = vmatprep.subr.mxu0 0.0
    %941 = vmatpush1.msra.mxu0 0.0
    %942 = vmatprep.subr.mxu0 0.0
    %943 = vmatpush1.msra.mxu0 0.0
    %944 = vmatprep.subr.mxu0 0.0
    %945 = vmatpush1.msra.mxu0 0.0
    %946 = vmatprep.subr.mxu0 0.0
    %947 = vmatpush1.msra.mxu0 0.0
    %948 = vmatprep.subr.mxu0 0.0
    %949 = vmatpush1.msra.mxu0 0.0
    %950 = vmatprep.subr.mxu0 0.0
    %951 = vmatpush1.msra.mxu0 0.0
    %952 = vmatprep.subr.mxu0 0.0
    %953 = vmatpush1.msra.mxu0 0.0
    %954 = vmatprep.subr.mxu0 0.0
    %955 = vmatpush1.msra.mxu0 0.0
    %956 = vmatprep.subr.mxu0 0.0
    %957 = vmatpush1.msra.mxu0 0.0
    %958 = vmatprep.subr.mxu0 0.0
    %959 = vmatpush1.msra.mxu0 0.0
    %960 = vmatprep.subr.mxu0 0.0
    %961 = vmatpush1.msra.mxu0 0.0
    %962 = vmatprep.subr.mxu0 0.0
    %963 = vmatpush1.msra.mxu0 0.0
    %964 = vmatprep.subr.mxu0 0.0
    %965 = vmatpush1.msra.mxu0 0.0
    %966 = vmatprep.mubr.f32.mxu0 0.0
    %967 = vmatmul.mubr.f32.gmra.mrb[0].mxu0 %v900
    %v968 = vpop.f32.mrb[0].mxu0
    %v969 = vadd.f32 0.0, %v968
    %v970 = vpop.f32.mrb[0].mxu0
    %971 = vdwg.mxu0
    %972 = vrot.lane.b32.xlu0 %v285, 48
    %v973 = vpop.permute.xlu0 %972
    %v976 = vsel %vm452, %v895, 0
    %978 = vmatprep.subr.mxu0 0.0
    %979 = vmatpush1.msra.mxu0 %v973
    %980 = vmatprep.subr.mxu0 0.0
    %981 = vmatpush1.msra.mxu0 0.0
    %982 = vmatprep.subr.mxu0 0.0
    %983 = vmatpush1.msra.mxu0 0.0
    %984 = vmatprep.subr.mxu0 0.0
    %985 = vmatpush1.msra.mxu0 0.0
    %986 = vmatprep.subr.mxu0 0.0
    %987 = vmatpush1.msra.mxu0 0.0
    %988 = vmatprep.subr.mxu0 0.0
    %989 = vmatpush1.msra.mxu0 0.0
    %990 = vmatprep.subr.mxu0 0.0
    %991 = vmatpush1.msra.mxu0 0.0
    %992 = vmatprep.subr.mxu0 0.0
    %993 = vmatpush1.msra.mxu0 0.0
    %994 = vmatprep.subr.mxu0 0.0
    %995 = vmatpush1.msra.mxu0 0.0
    %996 = vmatprep.subr.mxu0 0.0
    %997 = vmatpush1.msra.mxu0 0.0
    %998 = vmatprep.subr.mxu0 0.0
    %999 = vmatpush1.msra.mxu0 0.0
    %1000 = vmatprep.subr.mxu0 0.0
    %1001 = vmatpush1.msra.mxu0 0.0
    %1002 = vmatprep.subr.mxu0 0.0
    %1003 = vmatpush1.msra.mxu0 0.0
    %1004 = vmatprep.subr.mxu0 0.0
    %1005 = vmatpush1.msra.mxu0 0.0
    %1006 = vmatprep.subr.mxu0 0.0
    %1007 = vmatpush1.msra.mxu0 0.0
    %1008 = vmatprep.subr.mxu0 0.0
    %1009 = vmatpush1.msra.mxu0 0.0
    %1010 = vmatprep.subr.mxu0 0.0
    %1011 = vmatpush1.msra.mxu0 0.0
    %1012 = vmatprep.subr.mxu0 0.0
    %1013 = vmatpush1.msra.mxu0 0.0
    %1014 = vmatprep.subr.mxu0 0.0
    %1015 = vmatpush1.msra.mxu0 0.0
    %1016 = vmatprep.subr.mxu0 0.0
    %1017 = vmatpush1.msra.mxu0 0.0
    %1018 = vmatprep.subr.mxu0 0.0
    %1019 = vmatpush1.msra.mxu0 0.0
    %1020 = vmatprep.subr.mxu0 0.0
    %1021 = vmatpush1.msra.mxu0 0.0
    %1022 = vmatprep.subr.mxu0 0.0
    %1023 = vmatpush1.msra.mxu0 0.0
    %1024 = vmatprep.subr.mxu0 0.0
    %1025 = vmatpush1.msra.mxu0 0.0
    %1026 = vmatprep.subr.mxu0 0.0
    %1027 = vmatpush1.msra.mxu0 0.0
    %1028 = vmatprep.subr.mxu0 0.0
    %1029 = vmatpush1.msra.mxu0 0.0
    %1030 = vmatprep.subr.mxu0 0.0
    %1031 = vmatpush1.msra.mxu0 0.0
    %1032 = vmatprep.subr.mxu0 0.0
    %1033 = vmatpush1.msra.mxu0 0.0
    %1034 = vmatprep.subr.mxu0 0.0
    %1035 = vmatpush1.msra.mxu0 0.0
    %1036 = vmatprep.subr.mxu0 0.0
    %1037 = vmatpush1.msra.mxu0 0.0
    %1038 = vmatprep.subr.mxu0 0.0
    %1039 = vmatpush1.msra.mxu0 0.0
    %1040 = vmatprep.subr.mxu0 0.0
    %1041 = vmatpush1.msra.mxu0 0.0
    %1042 = vmatprep.mubr.f32.mxu0 0.0
    %1043 = vmatmul.mubr.f32.gmra.mrb[0].mxu0 %v976
    %v1044 = vpop.f32.mrb[0].mxu0
    %v1045 = vadd.f32 0.0, %v1044
    %v1046 = vpop.f32.mrb[0].mxu0
    %1047 = vdwg.mxu0
    %v1049 = vsel %vm296, %v969, 0
    %v1052 = vsel %vm296, %v1045, 0
    %1054 = vmatprep.subr.mxu0 0.0
    %1055 = vmatpush1.msra.mxu0 %v290
    %1056 = vmatprep.subr.mxu0 0.0
    %1057 = vmatpush1.msra.mxu0 %v291
    %1058 = vmatprep.subr.mxu0 0.0
    %1059 = vmatpush1.msra.mxu0 0.0
    %1060 = vmatprep.subr.mxu0 0.0
    %1061 = vmatpush1.msra.mxu0 0.0
    %1062 = vmatprep.subr.mxu0 0.0
    %1063 = vmatpush1.msra.mxu0 0.0
    %1064 = vmatprep.subr.mxu0 0.0
    %1065 = vmatpush1.msra.mxu0 0.0
    %1066 = vmatprep.subr.mxu0 0.0
    %1067 = vmatpush1.msra.mxu0 0.0
    %1068 = vmatprep.subr.mxu0 0.0
    %1069 = vmatpush1.msra.mxu0 0.0
    %1070 = vmatprep.subr.mxu0 0.0
    %1071 = vmatpush1.msra.mxu0 0.0
    %1072 = vmatprep.subr.mxu0 0.0
    %1073 = vmatpush1.msra.mxu0 0.0
    %1074 = vmatprep.subr.mxu0 0.0
    %1075 = vmatpush1.msra.mxu0 0.0
    %1076 = vmatprep.subr.mxu0 0.0
    %1077 = vmatpush1.msra.mxu0 0.0
    %1078 = vmatprep.subr.mxu0 0.0
    %1079 = vmatpush1.msra.mxu0 0.0
    %1080 = vmatprep.subr.mxu0 0.0
    %1081 = vmatpush1.msra.mxu0 0.0
    %1082 = vmatprep.subr.mxu0 0.0
    %1083 = vmatpush1.msra.mxu0 0.0
    %1084 = vmatprep.subr.mxu0 0.0
    %1085 = vmatpush1.msra.mxu0 0.0
    %1086 = vmatprep.subr.mxu0 0.0
    %1087 = vmatpush1.msra.mxu0 0.0
    %1088 = vmatprep.subr.mxu0 0.0
    %1089 = vmatpush1.msra.mxu0 0.0
    %1090 = vmatprep.subr.mxu0 0.0
    %1091 = vmatpush1.msra.mxu0 0.0
    %1092 = vmatprep.subr.mxu0 0.0
    %1093 = vmatpush1.msra.mxu0 0.0
    %1094 = vmatprep.subr.mxu0 0.0
    %1095 = vmatpush1.msra.mxu0 0.0
    %1096 = vmatprep.subr.mxu0 0.0
    %1097 = vmatpush1.msra.mxu0 0.0
    %1098 = vmatprep.subr.mxu0 0.0
    %1099 = vmatpush1.msra.mxu0 0.0
    %1100 = vmatprep.subr.mxu0 0.0
    %1101 = vmatpush1.msra.mxu0 0.0
    %1102 = vmatprep.subr.mxu0 0.0
    %1103 = vmatpush1.msra.mxu0 0.0
    %1104 = vmatprep.subr.mxu0 0.0
    %1105 = vmatpush1.msra.mxu0 0.0
    %1106 = vmatprep.subr.mxu0 0.0
    %1107 = vmatpush1.msra.mxu0 0.0
    %1108 = vmatprep.subr.mxu0 0.0
    %1109 = vmatpush1.msra.mxu0 0.0
    %1110 = vmatprep.subr.mxu0 0.0
    %1111 = vmatpush1.msra.mxu0 0.0
    %1112 = vmatprep.subr.mxu0 0.0
    %1113 = vmatpush1.msra.mxu0 0.0
    %1114 = vmatprep.subr.mxu0 0.0
    %1115 = vmatpush1.msra.mxu0 0.0
    %1116 = vmatprep.subr.mxu0 0.0
    %1117 = vmatpush1.msra.mxu0 0.0
    %1118 = vmatprep.mubr.f32.mxu0 0.0
    %1119 = vmatmul.mubr.f32.gmra.mrb[0].mxu0 %v1049
    %v1120 = vpop.f32.mrb[0].mxu0
    %v1121 = vadd.f32 0.0, %v1120
    %v1122 = vpop.f32.mrb[0].mxu0
    %1123 = vmatprep.mubr.f32.mxu0 0.0
    %1124 = vmatmul.mubr.f32.gmra.mrb[0].mxu0 %v1052
    %v1125 = vpop.f32.mrb[0].mxu0
    %v1126 = vadd.f32 0.0, %v1125
    %v1127 = vpop.f32.mrb[0].mxu0
    %1128 = vdwg.mxu0
    %v1129 = vadd.f32 %v712, %v1121
    %v1130 = vadd.f32 %v713, %v1126
    %v1131 = vadd.f32 %v194, %v1129
    %v1132 = vadd.f32 %v195, %v1130
    %v1133 = vld [vmem:[%s6 + $0x4] sm:$0x1]
    %v1134 = vld [vmem:[%s6 + $0x5] sm:$0x1]
    %v1135 = vsel %vm156, %v1131, 0.0
    %1136 = vadd.xlane.f32.xlu0 %v1135
    %v1137 = vpop.xlane.xlu0 %1136
    %v1138 = vsel %vm156, %v1132, 0.0
    %1139 = vadd.xlane.f32.xlu0 %v1138
    %v1140 = vpop.xlane.xlu0 %1139
    %v1141 = vmul.f32 %v1137, %v163
    %v1142 = vmul.f32 %v1140, %v163
    %v1143 = vsub.f32 %v1131, %v1141
    %v1144 = vsub.f32 %v1132, %v1142
    %v1145 = vmul.f32 %v1143, %v1143
    %v1146 = vmul.f32 %v1144, %v1144
    %v1147 = vsel %vm156, %v1145, 0.0
    %1148 = vadd.xlane.f32.xlu0 %v1147
    %v1149 = vpop.xlane.xlu0 %1148
    %v1150 = vsel %vm156, %v1146, 0.0
    %1151 = vadd.xlane.f32.xlu0 %v1150
    %v1152 = vpop.xlane.xlu0 %1151
    %v1153 = vmul.f32 %v1149, %v163
    %v1154 = vmul.f32 %v1152, %v163
    %v1155 = vadd.f32 %v1153, 1e-12
    %v1156 = vadd.f32 %v1154, 1e-12
    %v1157 = vrsqrt.pop %v1155
    %v1158 = vrsqrt.pop %v1156
    %v1159 = vmul.f32 %v1143, %v1157
    %v1160 = vmul.f32 %v1144, %v1158
    %v1161 = vlaneseq
    %v1162 = vshrl.u32 %v1161, 7
    %v1163 = vsub.s32 0, %v1162
    %v1164 = vrot.slane %v1133, %v1163
    %v1165 = vmul.f32 %v1159, %v1164
    %v1166 = vmul.f32 %v1160, %v1164
    %v1167 = vlaneseq
    %v1168 = vshrl.u32 %v1167, 7
    %v1169 = vsub.s32 0, %v1168
    %v1170 = vrot.slane %v1134, %v1169
    %v1171 = vadd.f32 %v1165, %v1170
    %v1172 = vadd.f32 %v1166, %v1170
    %v1173 = vld [vmem:[#allocation2] sm:$0xff]
    %v1174 = vld [vmem:[#allocation2 + $0x8] sm:$0xff]
    %v1175 = vld [vmem:[#allocation2 + $0x10] sm:$0xff]
    %v1176 = vld [vmem:[#allocation2 + $0x18] sm:$0xff]
    %v1177 = vld [vmem:[%s6 + $0x6] sm:$0x1]
    %v1178 = vlaneseq
    %v1179 = vshrl.u32 %v1178, 7
    %v1180 = vsub.s32 0, %v1179
    %v1181 = vrot.slane %v1177, %v1180
    %v1183 = vsel %vm156, %v1171, 0
    %v1186 = vsel %vm156, %v1172, 0
    %1188 = vmatprep.subr.mxu0 0.0
    %1189 = vmatpush1.msra.mxu0 %v1173
    %1190 = vmatprep.subr.mxu0 0.0
    %1191 = vmatpush1.msra.mxu0 %v1174
    %1192 = vmatprep.subr.mxu0 0.0
    %1193 = vmatpush1.msra.mxu0 %v1175
    %1194 = vmatprep.subr.mxu0 0.0
    %1195 = vmatpush1.msra.mxu0 %v1176
    %1196 = vmatprep.subr.mxu0 0.0
    %1197 = vmatpush1.msra.mxu0 0.0
    %1198 = vmatprep.subr.mxu0 0.0
    %1199 = vmatpush1.msra.mxu0 0.0
    %1200 = vmatprep.subr.mxu0 0.0
    %1201 = vmatpush1.msra.mxu0 0.0
    %1202 = vmatprep.subr.mxu0 0.0
    %1203 = vmatpush1.msra.mxu0 0.0
    %1204 = vmatprep.subr.mxu0 0.0
    %1205 = vmatpush1.msra.mxu0 0.0
    %1206 = vmatprep.subr.mxu0 0.0
    %1207 = vmatpush1.msra.mxu0 0.0
    %1208 = vmatprep.subr.mxu0 0.0
    %1209 = vmatpush1.msra.mxu0 0.0
    %1210 = vmatprep.subr.mxu0 0.0
    %1211 = vmatpush1.msra.mxu0 0.0
    %1212 = vmatprep.subr.mxu0 0.0
    %1213 = vmatpush1.msra.mxu0 0.0
    %1214 = vmatprep.subr.mxu0 0.0
    %1215 = vmatpush1.msra.mxu0 0.0
    %1216 = vmatprep.subr.mxu0 0.0
    %1217 = vmatpush1.msra.mxu0 0.0
    %1218 = vmatprep.subr.mxu0 0.0
    %1219 = vmatpush1.msra.mxu0 0.0
    %1220 = vmatprep.subr.mxu0 0.0
    %1221 = vmatpush1.msra.mxu0 0.0
    %1222 = vmatprep.subr.mxu0 0.0
    %1223 = vmatpush1.msra.mxu0 0.0
    %1224 = vmatprep.subr.mxu0 0.0
    %1225 = vmatpush1.msra.mxu0 0.0
    %1226 = vmatprep.subr.mxu0 0.0
    %1227 = vmatpush1.msra.mxu0 0.0
    %1228 = vmatprep.subr.mxu0 0.0
    %1229 = vmatpush1.msra.mxu0 0.0
    %1230 = vmatprep.subr.mxu0 0.0
    %1231 = vmatpush1.msra.mxu0 0.0
    %1232 = vmatprep.subr.mxu0 0.0
    %1233 = vmatpush1.msra.mxu0 0.0
    %1234 = vmatprep.subr.mxu0 0.0
    %1235 = vmatpush1.msra.mxu0 0.0
    %1236 = vmatprep.subr.mxu0 0.0
    %1237 = vmatpush1.msra.mxu0 0.0
    %1238 = vmatprep.subr.mxu0 0.0
    %1239 = vmatpush1.msra.mxu0 0.0
    %1240 = vmatprep.subr.mxu0 0.0
    %1241 = vmatpush1.msra.mxu0 0.0
    %1242 = vmatprep.subr.mxu0 0.0
    %1243 = vmatpush1.msra.mxu0 0.0
    %1244 = vmatprep.subr.mxu0 0.0
    %1245 = vmatpush1.msra.mxu0 0.0
    %1246 = vmatprep.subr.mxu0 0.0
    %1247 = vmatpush1.msra.mxu0 0.0
    %1248 = vmatprep.subr.mxu0 0.0
    %1249 = vmatpush1.msra.mxu0 0.0
    %1250 = vmatprep.subr.mxu0 0.0
    %1251 = vmatpush1.msra.mxu0 0.0
    %1252 = vmatprep.mubr.f32.mxu0 0.0
    %1253 = vmatmul.mubr.f32.gmra.mrb[0].mxu0 %v1183
    %v1254 = vpop.f32.mrb[0].mxu0
    %v1255 = vadd.f32 %v1181, %v1254
    %v1256 = vpop.f32.mrb[0].mxu0
    %1257 = vmatprep.mubr.f32.mxu0 0.0
    %1258 = vmatmul.mubr.f32.gmra.mrb[0].mxu0 %v1186
    %v1259 = vpop.f32.mrb[0].mxu0
    %v1260 = vadd.f32 %v1181, %v1259
    %v1261 = vpop.f32.mrb[0].mxu0
    %1262 = vdwg.mxu0
    %v1263 = vmul.f32 %v1255, %v1255
    %v1264 = vmul.f32 %v1260, %v1260
    %v1265 = vmul.f32 %v1255, %v1263
    %v1266 = vmul.f32 %v1260, %v1264
    %v1267 = vmul.f32 %v1265, 0.044715
    %v1268 = vmul.f32 %v1266, 0.044715
    %v1269 = vadd.f32 %v1255, %v1267
    %v1270 = vadd.f32 %v1260, %v1268
    %v1271 = vmul.f32 %v1269, 0.7978846
    %v1272 = vmul.f32 %v1270, 0.7978846
    %v1273 = vtanh.pop %v1271
    %v1274 = vtanh.pop %v1272
    %v1275 = vadd.f32 %v1273, 1.0
    %v1276 = vadd.f32 %v1274, 1.0
    %v1277 = vmul.f32 %v1275, 0.5
    %v1278 = vmul.f32 %v1276, 0.5
    %v1279 = vmul.f32 %v1255, %v1277
    %v1280 = vmul.f32 %v1260, %v1278
    %v1281 = vld [vmem:[%s5] sm:$0xff]
    %v1282 = vld [vmem:[%s5 + $0x8] sm:$0xff]
    %v1283 = vld [vmem:[%s5 + $0x10] sm:$0xff]
    %v1284 = vld [vmem:[%s5 + $0x18] sm:$0xff]
    %v1285 = vld [vmem:[%s5 + $0x20] sm:$0xff]
    %v1286 = vld [vmem:[%s5 + $0x28] sm:$0xff]
    %v1287 = vld [vmem:[%s5 + $0x30] sm:$0xff]
    %v1288 = vld [vmem:[%s5 + $0x38] sm:$0xff]
    %v1289 = vld [vmem:[%s6 + $0x7] sm:$0x1]
    %v1290 = vlaneseq
    %v1291 = vshrl.u32 %v1290, 7
    %v1292 = vsub.s32 0, %v1291
    %v1293 = vrot.slane %v1289, %v1292
    %vm1294 = vcmask 523264
    %v1296 = vsel %vm1294, %v1279, 0
    %v1299 = vsel %vm1294, %v1280, 0
    %1301 = vmatprep.subr.mxu0 0.0
    %1302 = vmatpush1.msra.mxu0 %v1281
    %1303 = vmatprep.subr.mxu0 0.0
    %1304 = vmatpush1.msra.mxu0 %v1282
    %1305 = vmatprep.subr.mxu0 0.0
    %1306 = vmatpush1.msra.mxu0 %v1283
    %1307 = vmatprep.subr.mxu0 0.0
    %1308 = vmatpush1.msra.mxu0 %v1284
    %1309 = vmatprep.subr.mxu0 0.0
    %1310 = vmatpush1.msra.mxu0 %v1285
    %1311 = vmatprep.subr.mxu0 0.0
    %1312 = vmatpush1.msra.mxu0 %v1286
    %1313 = vmatprep.subr.mxu0 0.0
    %1314 = vmatpush1.msra.mxu0 %v1287
    %1315 = vmatprep.subr.mxu0 0.0
    %1316 = vmatpush1.msra.mxu0 %v1288
    %1317 = vmatprep.subr.mxu0 0.0
    %1318 = vmatpush1.msra.mxu0 0.0
    %1319 = vmatprep.subr.mxu0 0.0
    %1320 = vmatpush1.msra.mxu0 0.0
    %1321 = vmatprep.subr.mxu0 0.0
    %1322 = vmatpush1.msra.mxu0 0.0
    %1323 = vmatprep.subr.mxu0 0.0
    %1324 = vmatpush1.msra.mxu0 0.0
    %1325 = vmatprep.subr.mxu0 0.0
    %1326 = vmatpush1.msra.mxu0 0.0
    %1327 = vmatprep.subr.mxu0 0.0
    %1328 = vmatpush1.msra.mxu0 0.0
    %1329 = vmatprep.subr.mxu0 0.0
    %1330 = vmatpush1.msra.mxu0 0.0
    %1331 = vmatprep.subr.mxu0 0.0
    %1332 = vmatpush1.msra.mxu0 0.0
    %1333 = vmatprep.subr.mxu0 0.0
    %1334 = vmatpush1.msra.mxu0 0.0
    %1335 = vmatprep.subr.mxu0 0.0
    %1336 = vmatpush1.msra.mxu0 0.0
    %1337 = vmatprep.subr.mxu0 0.0
    %1338 = vmatpush1.msra.mxu0 0.0
    %1339 = vmatprep.subr.mxu0 0.0
    %1340 = vmatpush1.msra.mxu0 0.0
    %1341 = vmatprep.subr.mxu0 0.0
    %1342 = vmatpush1.msra.mxu0 0.0
    %1343 = vmatprep.subr.mxu0 0.0
    %1344 = vmatpush1.msra.mxu0 0.0
    %1345 = vmatprep.subr.mxu0 0.0
    %1346 = vmatpush1.msra.mxu0 0.0
    %1347 = vmatprep.subr.mxu0 0.0
    %1348 = vmatpush1.msra.mxu0 0.0
    %1349 = vmatprep.subr.mxu0 0.0
    %1350 = vmatpush1.msra.mxu0 0.0
    %1351 = vmatprep.subr.mxu0 0.0
    %1352 = vmatpush1.msra.mxu0 0.0
    %1353 = vmatprep.subr.mxu0 0.0
    %1354 = vmatpush1.msra.mxu0 0.0
    %1355 = vmatprep.subr.mxu0 0.0
    %1356 = vmatpush1.msra.mxu0 0.0
    %1357 = vmatprep.subr.mxu0 0.0
    %1358 = vmatpush1.msra.mxu0 0.0
    %1359 = vmatprep.subr.mxu0 0.0
    %1360 = vmatpush1.msra.mxu0 0.0
    %1361 = vmatprep.subr.mxu0 0.0
    %1362 = vmatpush1.msra.mxu0 0.0
    %1363 = vmatprep.subr.mxu0 0.0
    %1364 = vmatpush1.msra.mxu0 0.0
    %1365 = vmatprep.mubr.f32.mxu0 0.0
    %1366 = vmatmul.mubr.f32.gmra.mrb[0].mxu0 %v1296
    %v1367 = vpop.f32.mrb[0].mxu0
    %v1368 = vadd.f32 %v1293, %v1367
    %v1369 = vpop.f32.mrb[0].mxu0
    %1370 = vmatprep.mubr.f32.mxu0 0.0
    %1371 = vmatmul.mubr.f32.gmra.mrb[0].mxu0 %v1299
    %v1372 = vpop.f32.mrb[0].mxu0
    %v1373 = vadd.f32 %v1293, %v1372
    %v1374 = vpop.f32.mrb[0].mxu0
    %1375 = vdwg.mxu0
    %v1376 = vadd.f32 %v1171, %v1368
    %v1377 = vadd.f32 %v1172, %v1373
    %v1378 = vld [vmem:[%s6 + $0x8] sm:$0x1]
    %v1379 = vld [vmem:[%s6 + $0x9] sm:$0x1]
    %v1380 = vsel %vm156, %v1376, 0.0
    %1381 = vadd.xlane.f32.xlu0 %v1380
    %v1382 = vpop.xlane.xlu0 %1381
    %v1383 = vsel %vm156, %v1377, 0.0
    %1384 = vadd.xlane.f32.xlu0 %v1383
    %v1385 = vpop.xlane.xlu0 %1384
    %v1386 = vmul.f32 %v1382, %v163
    %v1387 = vmul.f32 %v1385, %v163
    %v1388 = vsub.f32 %v1376, %v1386
    %v1389 = vsub.f32 %v1377, %v1387
    %v1390 = vmul.f32 %v1388, %v1388
    %v1391 = vmul.f32 %v1389, %v1389
    %v1392 = vsel %vm156, %v1390, 0.0
    %1393 = vadd.xlane.f32.xlu0 %v1392
    %v1394 = vpop.xlane.xlu0 %1393
    %v1395 = vsel %vm156, %v1391, 0.0
    %1396 = vadd.xlane.f32.xlu0 %v1395
    %v1397 = vpop.xlane.xlu0 %1396
    %v1398 = vmul.f32 %v1394, %v163
    %v1399 = vmul.f32 %v1397, %v163
    %v1400 = vadd.f32 %v1398, 1e-12
    %v1401 = vadd.f32 %v1399, 1e-12
    %v1402 = vrsqrt.pop %v1400
    %v1403 = vrsqrt.pop %v1401
    %v1404 = vmul.f32 %v1388, %v1402
    %v1405 = vmul.f32 %v1389, %v1403
    %v1406 = vlaneseq
    %v1407 = vshrl.u32 %v1406, 7
    %v1408 = vsub.s32 0, %v1407
    %v1409 = vrot.slane %v1378, %v1408
    %v1410 = vmul.f32 %v1404, %v1409
    %v1411 = vmul.f32 %v1405, %v1409
    %v1412 = vlaneseq
    %v1413 = vshrl.u32 %v1412, 7
    %v1414 = vsub.s32 0, %v1413
    %v1415 = vrot.slane %v1379, %v1414
    %v1416 = vadd.f32 %v1410, %v1415
    %v1417 = vadd.f32 %v1411, %v1415
    %s1418 = scalar_lea.vmem %s2, 32
    %v1419 = vld [vmem:[%s1418] sm:$0xff]
    %v1420 = vld [vmem:[%s1418 + $0x8] sm:$0xff]
    %v1421 = vld [vmem:[%s1418 + $0x10] sm:$0xff]
    %v1422 = vld [vmem:[%s1418 + $0x18] sm:$0xff]
    %v1423 = vld [vmem:[%s6 + $0xa] sm:$0x1]
    %v1424 = vlaneseq
    %v1425 = vshrl.u32 %v1424, 7
    %v1426 = vsub.s32 0, %v1425
    %v1427 = vrot.slane %v1423, %v1426
    %v1429 = vsel %vm156, %v1416, 0
    %v1432 = vsel %vm156, %v1417, 0
    %1434 = vmatprep.subr.mxu0 0.0
    %1435 = vmatpush1.msra.mxu0 %v1419
    %1436 = vmatprep.subr.mxu0 0.0
    %1437 = vmatpush1.msra.mxu0 %v1420
    %1438 = vmatprep.subr.mxu0 0.0
    %1439 = vmatpush1.msra.mxu0 %v1421
    %1440 = vmatprep.subr.mxu0 0.0
    %1441 = vmatpush1.msra.mxu0 %v1422
    %1442 = vmatprep.subr.mxu0 0.0
    %1443 = vmatpush1.msra.mxu0 0.0
    %1444 = vmatprep.subr.mxu0 0.0
    %1445 = vmatpush1.msra.mxu0 0.0
    %1446 = vmatprep.subr.mxu0 0.0
    %1447 = vmatpush1.msra.mxu0 0.0
    %1448 = vmatprep.subr.mxu0 0.0
    %1449 = vmatpush1.msra.mxu0 0.0
    %1450 = vmatprep.subr.mxu0 0.0
    %1451 = vmatpush1.msra.mxu0 0.0
    %1452 = vmatprep.subr.mxu0 0.0
    %1453 = vmatpush1.msra.mxu0 0.0
    %1454 = vmatprep.subr.mxu0 0.0
    %1455 = vmatpush1.msra.mxu0 0.0
    %1456 = vmatprep.subr.mxu0 0.0
    %1457 = vmatpush1.msra.mxu0 0.0
    %1458 = vmatprep.subr.mxu0 0.0
    %1459 = vmatpush1.msra.mxu0 0.0
    %1460 = vmatprep.subr.mxu0 0.0
    %1461 = vmatpush1.msra.mxu0 0.0
    %1462 = vmatprep.subr.mxu0 0.0
    %1463 = vmatpush1.msra.mxu0 0.0
    %1464 = vmatprep.subr.mxu0 0.0
    %1465 = vmatpush1.msra.mxu0 0.0
    %1466 = vmatprep.subr.mxu0 0.0
    %1467 = vmatpush1.msra.mxu0 0.0
    %1468 = vmatprep.subr.mxu0 0.0
    %1469 = vmatpush1.msra.mxu0 0.0
    %1470 = vmatprep.subr.mxu0 0.0
    %1471 = vmatpush1.msra.mxu0 0.0
    %1472 = vmatprep.subr.mxu0 0.0
    %1473 = vmatpush1.msra.mxu0 0.0
    %1474 = vmatprep.subr.mxu0 0.0
    %1475 = vmatpush1.msra.mxu0 0.0
    %1476 = vmatprep.subr.mxu0 0.0
    %1477 = vmatpush1.msra.mxu0 0.0
    %1478 = vmatprep.subr.mxu0 0.0
    %1479 = vmatpush1.msra.mxu0 0.0
    %1480 = vmatprep.subr.mxu0 0.0
    %1481 = vmatpush1.msra.mxu0 0.0
    %1482 = vmatprep.subr.mxu0 0.0
    %1483 = vmatpush1.msra.mxu0 0.0
    %1484 = vmatprep.subr.mxu0 0.0
    %1485 = vmatpush1.msra.mxu0 0.0
    %1486 = vmatprep.subr.mxu0 0.0
    %1487 = vmatpush1.msra.mxu0 0.0
    %1488 = vmatprep.subr.mxu0 0.0
    %1489 = vmatpush1.msra.mxu0 0.0
    %1490 = vmatprep.subr.mxu0 0.0
    %1491 = vmatpush1.msra.mxu0 0.0
    %1492 = vmatprep.subr.mxu0 0.0
    %1493 = vmatpush1.msra.mxu0 0.0
    %1494 = vmatprep.subr.mxu0 0.0
    %1495 = vmatpush1.msra.mxu0 0.0
    %1496 = vmatprep.subr.mxu0 0.0
    %1497 = vmatpush1.msra.mxu0 0.0
    %1498 = vmatprep.mubr.f32.mxu0 0.0
    %1499 = vmatmul.mubr.f32.gmra.mrb[0].mxu0 %v1429
    %v1500 = vpop.f32.mrb[0].mxu0
    %v1501 = vadd.f32 %v1427, %v1500
    %v1502 = vpop.f32.mrb[0].mxu0
    %1503 = vmatprep.mubr.f32.mxu0 0.0
    %1504 = vmatmul.mubr.f32.gmra.mrb[0].mxu0 %v1432
    %v1505 = vpop.f32.mrb[0].mxu0
    %v1506 = vadd.f32 %v1427, %v1505
    %v1507 = vpop.f32.mrb[0].mxu0
    %1508 = vdwg.mxu0
    %s1509 = scalar_lea.vmem %s3, 32
    %v1510 = vld [vmem:[%s1509] sm:$0xff]
    %v1511 = vld [vmem:[%s1509 + $0x8] sm:$0xff]
    %v1512 = vld [vmem:[%s1509 + $0x10] sm:$0xff]
    %v1513 = vld [vmem:[%s1509 + $0x18] sm:$0xff]
    %v1514 = vld [vmem:[%s6 + $0xb] sm:$0x1]
    %1516 = vrot.lane.b32.xlu0 %v1501, 96
    %v1517 = vpop.permute.xlu0 %1516
    %v1518 = vsel %vm296, %v1501, 0
    %v1520 = vsel %vm296, %v1517, 0
    %1522 = vmatprep.subr.mxu0 0.0
    %1523 = vmatpush1.xpose.msra.mxu0 %v1520
    %1524 = vmatprep.subr.mxu0 0.0
    %1525 = vmatpush1.xpose.msra.mxu0 0.0
    %1526 = vmatprep.subr.mxu0 0.0
    %1527 = vmatpush1.xpose.msra.mxu0 0.0
    %1528 = vmatprep.subr.mxu0 0.0
    %1529 = vmatpush1.xpose.msra.mxu0 0.0
    %1530 = vmatprep.subr.mxu0 0.0
    %1531 = vmatpush1.xpose.msra.mxu0 0.0
    %1532 = vmatprep.subr.mxu0 0.0
    %1533 = vmatpush1.xpose.msra.mxu0 0.0
    %1534 = vmatprep.subr.mxu0 0.0
    %1535 = vmatpush1.xpose.msra.mxu0 0.0
    %1536 = vmatprep.subr.mxu0 0.0
    %1537 = vmatpush1.xpose.msra.mxu0 0.0
    %1538 = vmatprep.subr.mxu0 0.0
    %1539 = vmatpush1.xpose.msra.mxu0 0.0
    %1540 = vmatprep.subr.mxu0 0.0
    %1541 = vmatpush1.xpose.msra.mxu0 0.0
    %1542 = vmatprep.subr.mxu0 0.0
    %1543 = vmatpush1.xpose.msra.mxu0 0.0
    %1544 = vmatprep.subr.mxu0 0.0
    %1545 = vmatpush1.xpose.msra.mxu0 0.0
    %1546 = vmatprep.subr.mxu0 0.0
    %1547 = vmatpush1.xpose.msra.mxu0 0.0
    %1548 = vmatprep.subr.mxu0 0.0
    %1549 = vmatpush1.xpose.msra.mxu0 0.0
    %1550 = vmatprep.subr.mxu0 0.0
    %1551 = vmatpush1.xpose.msra.mxu0 0.0
    %1552 = vmatprep.subr.mxu0 0.0
    %1553 = vmatpush1.xpose.msra.mxu0 0.0
    %1554 = vmatprep.subr.mxu0 0.0
    %1555 = vmatpush1.xpose.msra.mxu0 0.0
    %1556 = vmatprep.subr.mxu0 0.0
    %1557 = vmatpush1.xpose.msra.mxu0 0.0
    %1558 = vmatprep.subr.mxu0 0.0
    %1559 = vmatpush1.xpose.msra.mxu0 0.0
    %1560 = vmatprep.subr.mxu0 0.0
    %1561 = vmatpush1.xpose.msra.mxu0 0.0
    %1562 = vmatprep.subr.mxu0 0.0
    %1563 = vmatpush1.xpose.msra.mxu0 0.0
    %1564 = vmatprep.subr.mxu0 0.0
    %1565 = vmatpush1.xpose.msra.mxu0 0.0
    %1566 = vmatprep.subr.mxu0 0.0
    %1567 = vmatpush1.xpose.msra.mxu0 0.0
    %1568 = vmatprep.subr.mxu0 0.0
    %1569 = vmatpush1.xpose.msra.mxu0 0.0
    %1570 = vmatprep.subr.mxu0 0.0
    %1571 = vmatpush1.xpose.msra.mxu0 0.0
    %1572 = vmatprep.subr.mxu0 0.0
    %1573 = vmatpush1.xpose.msra.mxu0 0.0
    %1574 = vmatprep.subr.mxu0 0.0
    %1575 = vmatpush1.xpose.msra.mxu0 0.0
    %1576 = vmatprep.subr.mxu0 0.0
    %1577 = vmatpush1.xpose.msra.mxu0 0.0
    %1578 = vmatprep.subr.mxu0 0.0
    %1579 = vmatpush1.xpose.msra.mxu0 0.0
    %1580 = vmatprep.subr.mxu0 0.0
    %1581 = vmatpush1.xpose.msra.mxu0 0.0
    %1582 = vmatprep.subr.mxu0 0.0
    %1583 = vmatpush1.xpose.msra.mxu0 0.0
    %1584 = vmatprep.subr.mxu0 0.0
    %1585 = vmatpush1.xpose.msra.mxu0 0.0
    %1586 = vmatprep.mubr.f32.mxu0 0.0
    %1587 = vmatmul.mubr.f32.gmra.mrb[0].mxu0 %v1518
    %v1588 = vpop.f32.mrb[0].mxu0
    %v1589 = vadd.f32 0.0, %v1588
    %v1590 = vpop.f32.mrb[0].mxu0
    %1591 = vdwg.mxu0
    %1593 = vrot.lane.b32.xlu0 %v1506, 96
    %v1594 = vpop.permute.xlu0 %1593
    %v1595 = vsel %vm296, %v1506, 0
    %v1597 = vsel %vm296, %v1594, 0
    %1599 = vmatprep.subr.mxu0 0.0
    %1600 = vmatpush1.xpose.msra.mxu0 %v1597
    %1601 = vmatprep.subr.mxu0 0.0
    %1602 = vmatpush1.xpose.msra.mxu0 0.0
    %1603 = vmatprep.subr.mxu0 0.0
    %1604 = vmatpush1.xpose.msra.mxu0 0.0
    %1605 = vmatprep.subr.mxu0 0.0
    %1606 = vmatpush1.xpose.msra.mxu0 0.0
    %1607 = vmatprep.subr.mxu0 0.0
    %1608 = vmatpush1.xpose.msra.mxu0 0.0
    %1609 = vmatprep.subr.mxu0 0.0
    %1610 = vmatpush1.xpose.msra.mxu0 0.0
    %1611 = vmatprep.subr.mxu0 0.0
    %1612 = vmatpush1.xpose.msra.mxu0 0.0
    %1613 = vmatprep.subr.mxu0 0.0
    %1614 = vmatpush1.xpose.msra.mxu0 0.0
    %1615 = vmatprep.subr.mxu0 0.0
    %1616 = vmatpush1.xpose.msra.mxu0 0.0
    %1617 = vmatprep.subr.mxu0 0.0
    %1618 = vmatpush1.xpose.msra.mxu0 0.0
    %1619 = vmatprep.subr.mxu0 0.0
    %1620 = vmatpush1.xpose.msra.mxu0 0.0
    %1621 = vmatprep.subr.mxu0 0.0
    %1622 = vmatpush1.xpose.msra.mxu0 0.0
    %1623 = vmatprep.subr.mxu0 0.0
    %1624 = vmatpush1.xpose.msra.mxu0 0.0
    %1625 = vmatprep.subr.mxu0 0.0
    %1626 = vmatpush1.xpose.msra.mxu0 0.0
    %1627 = vmatprep.subr.mxu0 0.0
    %1628 = vmatpush1.xpose.msra.mxu0 0.0
    %1629 = vmatprep.subr.mxu0 0.0
    %1630 = vmatpush1.xpose.msra.mxu0 0.0
    %1631 = vmatprep.subr.mxu0 0.0
    %1632 = vmatpush1.xpose.msra.mxu0 0.0
    %1633 = vmatprep.subr.mxu0 0.0
    %1634 = vmatpush1.xpose.msra.mxu0 0.0
    %1635 = vmatprep.subr.mxu0 0.0
    %1636 = vmatpush1.xpose.msra.mxu0 0.0
    %1637 = vmatprep.subr.mxu0 0.0
    %1638 = vmatpush1.xpose.msra.mxu0 0.0
    %1639 = vmatprep.subr.mxu0 0.0
    %1640 = vmatpush1.xpose.msra.mxu0 0.0
    %1641 = vmatprep.subr.mxu0 0.0
    %1642 = vmatpush1.xpose.msra.mxu0 0.0
    %1643 = vmatprep.subr.mxu0 0.0
    %1644 = vmatpush1.xpose.msra.mxu0 0.0
    %1645 = vmatprep.subr.mxu0 0.0
    %1646 = vmatpush1.xpose.msra.mxu0 0.0
    %1647 = vmatprep.subr.mxu0 0.0
    %1648 = vmatpush1.xpose.msra.mxu0 0.0
    %1649 = vmatprep.subr.mxu0 0.0
    %1650 = vmatpush1.xpose.msra.mxu0 0.0
    %1651 = vmatprep.subr.mxu0 0.0
    %1652 = vmatpush1.xpose.msra.mxu0 0.0
    %1653 = vmatprep.subr.mxu0 0.0
    %1654 = vmatpush1.xpose.msra.mxu0 0.0
    %1655 = vmatprep.subr.mxu0 0.0
    %1656 = vmatpush1.xpose.msra.mxu0 0.0
    %1657 = vmatprep.subr.mxu0 0.0
    %1658 = vmatpush1.xpose.msra.mxu0 0.0
    %1659 = vmatprep.subr.mxu0 0.0
    %1660 = vmatpush1.xpose.msra.mxu0 0.0
    %1661 = vmatprep.subr.mxu0 0.0
    %1662 = vmatpush1.xpose.msra.mxu0 0.0
    %1663 = vmatprep.mubr.f32.mxu0 0.0
    %1664 = vmatmul.mubr.f32.gmra.mrb[0].mxu0 %v1595
    %v1665 = vpop.f32.mrb[0].mxu0
    %v1666 = vadd.f32 0.0, %v1665
    %v1667 = vpop.f32.mrb[0].mxu0
    %1668 = vdwg.mxu0
    %v1669 = vmul.f32 %v1589, 0.25
    %v1670 = vmul.f32 %v1666, 0.25
    %v1671 = vadd.f32 %v1669, %v196
    %v1672 = vadd.f32 %v1670, %v197
    %v1673 = vsel %vm452, %v1671, -inf
    %1674 = vmax.xlane.f32.xlu0 %v1673
    %v1675 = vpop.xlane.xlu0 %1674
    %v1676 = vsel %vm452, %v1672, -inf
    %1677 = vmax.xlane.f32.xlu0 %v1676
    %v1678 = vpop.xlane.xlu0 %1677
    %v1679 = vsub.f32 %v1671, %v1675
    %v1680 = vsub.f32 %v1672, %v1678
    %v1681 = vmul.f32 %v1679, 1.442695
    %v1682 = vpow.pop %v1681
    %v1683 = vmul.f32 %v1680, 1.442695
    %v1684 = vpow.pop %v1683
    %v1685 = vsel %vm452, %v1682, 0.0
    %1686 = vadd.xlane.f32.xlu0 %v1685
    %v1687 = vpop.xlane.xlu0 %1686
    %v1688 = vsel %vm452, %v1684, 0.0
    %1689 = vadd.xlane.f32.xlu0 %v1688
    %v1690 = vpop.xlane.xlu0 %1689
    %v1691 = vrcp.pop %v1687
    %v1692 = vrcp.pop %v1690
    %v1693 = vmul.f32 %v1682, %v1691
    %v1694 = vmul.f32 %v1684, %v1692
    %1695 = vrot.lane.b32.xlu0 %v1501, 64
    %v1696 = vpop.permute.xlu0 %1695
    %v1699 = vsel %vm452, %v1693, 0
    %1701 = vmatprep.subr.mxu0 0.0
    %1702 = vmatpush1.msra.mxu0 %v1696
    %1703 = vmatprep.subr.mxu0 0.0
    %1704 = vmatpush1.msra.mxu0 0.0
    %1705 = vmatprep.subr.mxu0 0.0
    %1706 = vmatpush1.msra.mxu0 0.0
    %1707 = vmatprep.subr.mxu0 0.0
    %1708 = vmatpush1.msra.mxu0 0.0
    %1709 = vmatprep.subr.mxu0 0.0
    %1710 = vmatpush1.msra.mxu0 0.0
    %1711 = vmatprep.subr.mxu0 0.0
    %1712 = vmatpush1.msra.mxu0 0.0
    %1713 = vmatprep.subr.mxu0 0.0
    %1714 = vmatpush1.msra.mxu0 0.0
    %1715 = vmatprep.subr.mxu0 0.0
    %1716 = vmatpush1.msra.mxu0 0.0
    %1717 = vmatprep.subr.mxu0 0.0
    %1718 = vmatpush1.msra.mxu0 0.0
    %1719 = vmatprep.subr.mxu0 0.0
    %1720 = vmatpush1.msra.mxu0 0.0
    %1721 = vmatprep.subr.mxu0 0.0
    %1722 = vmatpush1.msra.mxu0 0.0
    %1723 = vmatprep.subr.mxu0 0.0
    %1724 = vmatpush1.msra.mxu0 0.0
    %1725 = vmatprep.subr.mxu0 0.0
    %1726 = vmatpush1.msra.mxu0 0.0
    %1727 = vmatprep.subr.mxu0 0.0
    %1728 = vmatpush1.msra.mxu0 0.0
    %1729 = vmatprep.subr.mxu0 0.0
    %1730 = vmatpush1.msra.mxu0 0.0
    %1731 = vmatprep.subr.mxu0 0.0
    %1732 = vmatpush1.msra.mxu0 0.0
    %1733 = vmatprep.subr.mxu0 0.0
    %1734 = vmatpush1.msra.mxu0 0.0
    %1735 = vmatprep.subr.mxu0 0.0
    %1736 = vmatpush1.msra.mxu0 0.0
    %1737 = vmatprep.subr.mxu0 0.0
    %1738 = vmatpush1.msra.mxu0 0.0
    %1739 = vmatprep.subr.mxu0 0.0
    %1740 = vmatpush1.msra.mxu0 0.0
    %1741 = vmatprep.subr.mxu0 0.0
    %1742 = vmatpush1.msra.mxu0 0.0
    %1743 = vmatprep.subr.mxu0 0.0
    %1744 = vmatpush1.msra.mxu0 0.0
    %1745 = vmatprep.subr.mxu0 0.0
    %1746 = vmatpush1.msra.mxu0 0.0
    %1747 = vmatprep.subr.mxu0 0.0
    %1748 = vmatpush1.msra.mxu0 0.0
    %1749 = vmatprep.subr.mxu0 0.0
    %1750 = vmatpush1.msra.mxu0 0.0
    %1751 = vmatprep.subr.mxu0 0.0
    %1752 = vmatpush1.msra.mxu0 0.0
    %1753 = vmatprep.subr.mxu0 0.0
    %1754 = vmatpush1.msra.mxu0 0.0
    %1755 = vmatprep.subr.mxu0 0.0
    %1756 = vmatpush1.msra.mxu0 0.0
    %1757 = vmatprep.subr.mxu0 0.0
    %1758 = vmatpush1.msra.mxu0 0.0
    %1759 = vmatprep.subr.mxu0 0.0
    %1760 = vmatpush1.msra.mxu0 0.0
    %1761 = vmatprep.subr.mxu0 0.0
    %1762 = vmatpush1.msra.mxu0 0.0
    %1763 = vmatprep.subr.mxu0 0.0
    %1764 = vmatpush1.msra.mxu0 0.0
    %1765 = vmatprep.mubr.f32.mxu0 0.0
    %1766 = vmatmul.mubr.f32.gmra.mrb[0].mxu0 %v1699
    %v1767 = vpop.f32.mrb[0].mxu0
    %v1768 = vadd.f32 0.0, %v1767
    %v1769 = vpop.f32.mrb[0].mxu0
    %1770 = vdwg.mxu0
    %1771 = vrot.lane.b32.xlu0 %v1506, 64
    %v1772 = vpop.permute.xlu0 %1771
    %v1775 = vsel %vm452, %v1694, 0
    %1777 = vmatprep.subr.mxu0 0.0
    %1778 = vmatpush1.msra.mxu0 %v1772
    %1779 = vmatprep.subr.mxu0 0.0
    %1780 = vmatpush1.msra.mxu0 0.0
    %1781 = vmatprep.subr.mxu0 0.0
    %1782 = vmatpush1.msra.mxu0 0.0
    %1783 = vmatprep.subr.mxu0 0.0
    %1784 = vmatpush1.msra.mxu0 0.0
    %1785 = vmatprep.subr.mxu0 0.0
    %1786 = vmatpush1.msra.mxu0 0.0
    %1787 = vmatprep.subr.mxu0 0.0
    %1788 = vmatpush1.msra.mxu0 0.0
    %1789 = vmatprep.subr.mxu0 0.0
    %1790 = vmatpush1.msra.mxu0 0.0
    %1791 = vmatprep.subr.mxu0 0.0
    %1792 = vmatpush1.msra.mxu0 0.0
    %1793 = vmatprep.subr.mxu0 0.0
    %1794 = vmatpush1.msra.mxu0 0.0
    %1795 = vmatprep.subr.mxu0 0.0
    %1796 = vmatpush1.msra.mxu0 0.0
    %1797 = vmatprep.subr.mxu0 0.0
    %1798 = vmatpush1.msra.mxu0 0.0
    %1799 = vmatprep.subr.mxu0 0.0
    %1800 = vmatpush1.msra.mxu0 0.0
    %1801 = vmatprep.subr.mxu0 0.0
    %1802 = vmatpush1.msra.mxu0 0.0
    %1803 = vmatprep.subr.mxu0 0.0
    %1804 = vmatpush1.msra.mxu0 0.0
    %1805 = vmatprep.subr.mxu0 0.0
    %1806 = vmatpush1.msra.mxu0 0.0
    %1807 = vmatprep.subr.mxu0 0.0
    %1808 = vmatpush1.msra.mxu0 0.0
    %1809 = vmatprep.subr.mxu0 0.0
    %1810 = vmatpush1.msra.mxu0 0.0
    %1811 = vmatprep.subr.mxu0 0.0
    %1812 = vmatpush1.msra.mxu0 0.0
    %1813 = vmatprep.subr.mxu0 0.0
    %1814 = vmatpush1.msra.mxu0 0.0
    %1815 = vmatprep.subr.mxu0 0.0
    %1816 = vmatpush1.msra.mxu0 0.0
    %1817 = vmatprep.subr.mxu0 0.0
    %1818 = vmatpush1.msra.mxu0 0.0
    %1819 = vmatprep.subr.mxu0 0.0
    %1820 = vmatpush1.msra.mxu0 0.0
    %1821 = vmatprep.subr.mxu0 0.0
    %1822 = vmatpush1.msra.mxu0 0.0
    %1823 = vmatprep.subr.mxu0 0.0
    %1824 = vmatpush1.msra.mxu0 0.0
    %1825 = vmatprep.subr.mxu0 0.0
    %1826 = vmatpush1.msra.mxu0 0.0
    %1827 = vmatprep.subr.mxu0 0.0
    %1828 = vmatpush1.msra.mxu0 0.0
    %1829 = vmatprep.subr.mxu0 0.0
    %1830 = vmatpush1.msra.mxu0 0.0
    %1831 = vmatprep.subr.mxu0 0.0
    %1832 = vmatpush1.msra.mxu0 0.0
    %1833 = vmatprep.subr.mxu0 0.0
    %1834 = vmatpush1.msra.mxu0 0.0
    %1835 = vmatprep.subr.mxu0 0.0
    %1836 = vmatpush1.msra.mxu0 0.0
    %1837 = vmatprep.subr.mxu0 0.0
    %1838 = vmatpush1.msra.mxu0 0.0
    %1839 = vmatprep.subr.mxu0 0.0
    %1840 = vmatpush1.msra.mxu0 0.0
    %1841 = vmatprep.mubr.f32.mxu0 0.0
    %1842 = vmatmul.mubr.f32.gmra.mrb[0].mxu0 %v1775
    %v1843 = vpop.f32.mrb[0].mxu0
    %v1844 = vadd.f32 0.0, %v1843
    %v1845 = vpop.f32.mrb[0].mxu0
    %1846 = vdwg.mxu0
    %v1848 = vsel %vm296, %v1768, 0
    %v1851 = vsel %vm296, %v1844, 0
    %1853 = vmatprep.subr.mxu0 0.0
    %1854 = vmatpush1.msra.mxu0 %v1510
    %1855 = vmatprep.subr.mxu0 0.0
    %1856 = vmatpush1.msra.mxu0 %v1511
    %1857 = vmatprep.subr.mxu0 0.0
    %1858 = vmatpush1.msra.mxu0 0.0
    %1859 = vmatprep.subr.mxu0 0.0
    %1860 = vmatpush1.msra.mxu0 0.0
    %1861 = vmatprep.subr.mxu0 0.0
    %1862 = vmatpush1.msra.mxu0 0.0
    %1863 = vmatprep.subr.mxu0 0.0
    %1864 = vmatpush1.msra.mxu0 0.0
    %1865 = vmatprep.subr.mxu0 0.0
    %1866 = vmatpush1.msra.mxu0 0.0
    %1867 = vmatprep.subr.mxu0 0.0
    %1868 = vmatpush1.msra.mxu0 0.0
    %1869 = vmatprep.subr.mxu0 0.0
    %1870 = vmatpush1.msra.mxu0 0.0
    %1871 = vmatprep.subr.mxu0 0.0
    %1872 = vmatpush1.msra.mxu0 0.0
    %1873 = vmatprep.subr.mxu0 0.0
    %1874 = vmatpush1.msra.mxu0 0.0
    %1875 = vmatprep.subr.mxu0 0.0
    %1876 = vmatpush1.msra.mxu0 0.0
    %1877 = vmatprep.subr.mxu0 0.0
    %1878 = vmatpush1.msra.mxu0 0.0
    %1879 = vmatprep.subr.mxu0 0.0
    %1880 = vmatpush1.msra.mxu0 0.0
    %1881 = vmatprep.subr.mxu0 0.0
    %1882 = vmatpush1.msra.mxu0 0.0
    %1883 = vmatprep.subr.mxu0 0.0
    %1884 = vmatpush1.msra.mxu0 0.0
    %1885 = vmatprep.subr.mxu0 0.0
    %1886 = vmatpush1.msra.mxu0 0.0
    %1887 = vmatprep.subr.mxu0 0.0
    %1888 = vmatpush1.msra.mxu0 0.0
    %1889 = vmatprep.subr.mxu0 0.0
    %1890 = vmatpush1.msra.mxu0 0.0
    %1891 = vmatprep.subr.mxu0 0.0
    %1892 = vmatpush1.msra.mxu0 0.0
    %1893 = vmatprep.subr.mxu0 0.0
    %1894 = vmatpush1.msra.mxu0 0.0
    %1895 = vmatprep.subr.mxu0 0.0
    %1896 = vmatpush1.msra.mxu0 0.0
    %1897 = vmatprep.subr.mxu0 0.0
    %1898 = vmatpush1.msra.mxu0 0.0
    %1899 = vmatprep.subr.mxu0 0.0
    %1900 = vmatpush1.msra.mxu0 0.0
    %1901 = vmatprep.subr.mxu0 0.0
    %1902 = vmatpush1.msra.mxu0 0.0
    %1903 = vmatprep.subr.mxu0 0.0
    %1904 = vmatpush1.msra.mxu0 0.0
    %1905 = vmatprep.subr.mxu0 0.0
    %1906 = vmatpush1.msra.mxu0 0.0
    %1907 = vmatprep.subr.mxu0 0.0
    %1908 = vmatpush1.msra.mxu0 0.0
    %1909 = vmatprep.subr.mxu0 0.0
    %1910 = vmatpush1.msra.mxu0 0.0
    %1911 = vmatprep.subr.mxu0 0.0
    %1912 = vmatpush1.msra.mxu0 0.0
    %1913 = vmatprep.subr.mxu0 0.0
    %1914 = vmatpush1.msra.mxu0 0.0
    %1915 = vmatprep.subr.mxu0 0.0
    %1916 = vmatpush1.msra.mxu0 0.0
    %1917 = vmatprep.mubr.f32.mxu0 0.0
    %1918 = vmatmul.mubr.f32.gmra.mrb[0].mxu0 %v1848
    %v1919 = vpop.f32.mrb[0].mxu0
    %v1920 = vadd.f32 0.0, %v1919
    %v1921 = vpop.f32.mrb[0].mxu0
    %1922 = vmatprep.mubr.f32.mxu0 0.0
    %1923 = vmatmul.mubr.f32.gmra.mrb[0].mxu0 %v1851
    %v1924 = vpop.f32.mrb[0].mxu0
    %v1925 = vadd.f32 0.0, %v1924
    %v1926 = vpop.f32.mrb[0].mxu0
    %1927 = vdwg.mxu0
    %v1928 = vlaneseq
    %v1929 = vshrl.u32 %v1928, 7
    %v1930 = vsub.s32 0, %v1929
    %v1931 = vrot.slane %v1514, %v1930
    %v1932 = vadd.f32 %v1931, %v1920
    %v1933 = vadd.f32 %v1931, %v1925
    %1934 = vrot.lane.b32.xlu0 %v1501, 112
    %v1935 = vpop.permute.xlu0 %1934
    %1936 = vrot.lane.b32.xlu0 %v1501, 80
    %v1937 = vpop.permute.xlu0 %1936
    %v1938 = vsel %vm296, %v1935, 0
    %v1940 = vsel %vm296, %v1937, 0
    %1942 = vmatprep.subr.mxu0 0.0
    %1943 = vmatpush1.xpose.msra.mxu0 %v1940
    %1944 = vmatprep.subr.mxu0 0.0
    %1945 = vmatpush1.xpose.msra.mxu0 0.0
    %1946 = vmatprep.subr.mxu0 0.0
    %1947 = vmatpush1.xpose.msra.mxu0 0.0
    %1948 = vmatprep.subr.mxu0 0.0
    %1949 = vmatpush1.xpose.msra.mxu0 0.0
    %1950 = vmatprep.subr.mxu0 0.0
    %1951 = vmatpush1.xpose.msra.mxu0 0.0
    %1952 = vmatprep.subr.mxu0 0.0
    %1953 = vmatpush1.xpose.msra.mxu0 0.0
    %1954 = vmatprep.subr.mxu0 0.0
    %1955 = vmatpush1.xpose.msra.mxu0 0.0
    %1956 = vmatprep.subr.mxu0 0.0
    %1957 = vmatpush1.xpose.msra.mxu0 0.0
    %1958 = vmatprep.subr.mxu0 0.0
    %1959 = vmatpush1.xpose.msra.mxu0 0.0
    %1960 = vmatprep.subr.mxu0 0.0
    %1961 = vmatpush1.xpose.msra.mxu0 0.0
    %1962 = vmatprep.subr.mxu0 0.0
    %1963 = vmatpush1.xpose.msra.mxu0 0.0
    %1964 = vmatprep.subr.mxu0 0.0
    %1965 = vmatpush1.xpose.msra.mxu0 0.0
    %1966 = vmatprep.subr.mxu0 0.0
    %1967 = vmatpush1.xpose.msra.mxu0 0.0
    %1968 = vmatprep.subr.mxu0 0.0
    %1969 = vmatpush1.xpose.msra.mxu0 0.0
    %1970 = vmatprep.subr.mxu0 0.0
    %1971 = vmatpush1.xpose.msra.mxu0 0.0
    %1972 = vmatprep.subr.mxu0 0.0
    %1973 = vmatpush1.xpose.msra.mxu0 0.0
    %1974 = vmatprep.subr.mxu0 0.0
    %1975 = vmatpush1.xpose.msra.mxu0 0.0
    %1976 = vmatprep.subr.mxu0 0.0
    %1977 = vmatpush1.xpose.msra.mxu0 0.0
    %1978 = vmatprep.subr.mxu0 0.0
    %1979 = vmatpush1.xpose.msra.mxu0 0.0
    %1980 = vmatprep.subr.mxu0 0.0
    %1981 = vmatpush1.xpose.msra.mxu0 0.0
    %1982 = vmatprep.subr.mxu0 0.0
    %1983 = vmatpush1.xpose.msra.mxu0 0.0
    %1984 = vmatprep.subr.mxu0 0.0
    %1985 = vmatpush1.xpose.msra.mxu0 0.0
    %1986 = vmatprep.subr.mxu0 0.0
    %1987 = vmatpush1.xpose.msra.mxu0 0.0
    %1988 = vmatprep.subr.mxu0 0.0
    %1989 = vmatpush1.xpose.msra.mxu0 0.0
    %1990 = vmatprep.subr.mxu0 0.0
    %1991 = vmatpush1.xpose.msra.mxu0 0.0
    %1992 = vmatprep.subr.mxu0 0.0
    %1993 = vmatpush1.xpose.msra.mxu0 0.0
    %1994 = vmatprep.subr.mxu0 0.0
    %1995 = vmatpush1.xpose.msra.mxu0 0.0
    %1996 = vmatprep.subr.mxu0 0.0
    %1997 = vmatpush1.xpose.msra.mxu0 0.0
    %1998 = vmatprep.subr.mxu0 0.0
    %1999 = vmatpush1.xpose.msra.mxu0 0.0
    %2000 = vmatprep.subr.mxu0 0.0
    %2001 = vmatpush1.xpose.msra.mxu0 0.0
    %2002 = vmatprep.subr.mxu0 0.0
    %2003 = vmatpush1.xpose.msra.mxu0 0.0
    %2004 = vmatprep.subr.mxu0 0.0
    %2005 = vmatpush1.xpose.msra.mxu0 0.0
    %2006 = vmatprep.mubr.f32.mxu0 0.0
    %2007 = vmatmul.mubr.f32.gmra.mrb[0].mxu0 %v1938
    %v2008 = vpop.f32.mrb[0].mxu0
    %v2009 = vadd.f32 0.0, %v2008
    %v2010 = vpop.f32.mrb[0].mxu0
    %2011 = vdwg.mxu0
    %2012 = vrot.lane.b32.xlu0 %v1506, 112
    %v2013 = vpop.permute.xlu0 %2012
    %2014 = vrot.lane.b32.xlu0 %v1506, 80
    %v2015 = vpop.permute.xlu0 %2014
    %v2016 = vsel %vm296, %v2013, 0
    %v2018 = vsel %vm296, %v2015, 0
    %2020 = vmatprep.subr.mxu0 0.0
    %2021 = vmatpush1.xpose.msra.mxu0 %v2018
    %2022 = vmatprep.subr.mxu0 0.0
    %2023 = vmatpush1.xpose.msra.mxu0 0.0
    %2024 = vmatprep.subr.mxu0 0.0
    %2025 = vmatpush1.xpose.msra.mxu0 0.0
    %2026 = vmatprep.subr.mxu0 0.0
    %2027 = vmatpush1.xpose.msra.mxu0 0.0
    %2028 = vmatprep.subr.mxu0 0.0
    %2029 = vmatpush1.xpose.msra.mxu0 0.0
    %2030 = vmatprep.subr.mxu0 0.0
    %2031 = vmatpush1.xpose.msra.mxu0 0.0
    %2032 = vmatprep.subr.mxu0 0.0
    %2033 = vmatpush1.xpose.msra.mxu0 0.0
    %2034 = vmatprep.subr.mxu0 0.0
    %2035 = vmatpush1.xpose.msra.mxu0 0.0
    %2036 = vmatprep.subr.mxu0 0.0
    %2037 = vmatpush1.xpose.msra.mxu0 0.0
    %2038 = vmatprep.subr.mxu0 0.0
    %2039 = vmatpush1.xpose.msra.mxu0 0.0
    %2040 = vmatprep.subr.mxu0 0.0
    %2041 = vmatpush1.xpose.msra.mxu0 0.0
    %2042 = vmatprep.subr.mxu0 0.0
    %2043 = vmatpush1.xpose.msra.mxu0 0.0
    %2044 = vmatprep.subr.mxu0 0.0
    %2045 = vmatpush1.xpose.msra.mxu0 0.0
    %2046 = vmatprep.subr.mxu0 0.0
    %2047 = vmatpush1.xpose.msra.mxu0 0.0
    %2048 = vmatprep.subr.mxu0 0.0
    %2049 = vmatpush1.xpose.msra.mxu0 0.0
    %2050 = vmatprep.subr.mxu0 0.0
    %2051 = vmatpush1.xpose.msra.mxu0 0.0
    %2052 = vmatprep.subr.mxu0 0.0
    %2053 = vmatpush1.xpose.msra.mxu0 0.0
    %2054 = vmatprep.subr.mxu0 0.0
    %2055 = vmatpush1.xpose.msra.mxu0 0.0
    %2056 = vmatprep.subr.mxu0 0.0
    %2057 = vmatpush1.xpose.msra.mxu0 0.0
    %2058 = vmatprep.subr.mxu0 0.0
    %2059 = vmatpush1.xpose.msra.mxu0 0.0
    %2060 = vmatprep.subr.mxu0 0.0
    %2061 = vmatpush1.xpose.msra.mxu0 0.0
    %2062 = vmatprep.subr.mxu0 0.0
    %2063 = vmatpush1.xpose.msra.mxu0 0.0
    %2064 = vmatprep.subr.mxu0 0.0
    %2065 = vmatpush1.xpose.msra.mxu0 0.0
    %2066 = vmatprep.subr.mxu0 0.0
    %2067 = vmatpush1.xpose.msra.mxu0 0.0
    %2068 = vmatprep.subr.mxu0 0.0
    %2069 = vmatpush1.xpose.msra.mxu0 0.0
    %2070 = vmatprep.subr.mxu0 0.0
    %2071 = vmatpush1.xpose.msra.mxu0 0.0
    %2072 = vmatprep.subr.mxu0 0.0
    %2073 = vmatpush1.xpose.msra.mxu0 0.0
    %2074 = vmatprep.subr.mxu0 0.0
    %2075 = vmatpush1.xpose.msra.mxu0 0.0
    %2076 = vmatprep.subr.mxu0 0.0
    %2077 = vmatpush1.xpose.msra.mxu0 0.0
    %2078 = vmatprep.subr.mxu0 0.0
    %2079 = vmatpush1.xpose.msra.mxu0 0.0
    %2080 = vmatprep.subr.mxu0 0.0
    %2081 = vmatpush1.xpose.msra.mxu0 0.0
    %2082 = vmatprep.subr.mxu0 0.0
    %2083 = vmatpush1.xpose.msra.mxu0 0.0
    %2084 = vmatprep.mubr.f32.mxu0 0.0
    %2085 = vmatmul.mubr.f32.gmra.mrb[0].mxu0 %v2016
    %v2086 = vpop.f32.mrb[0].mxu0
    %v2087 = vadd.f32 0.0, %v2086
    %v2088 = vpop.f32.mrb[0].mxu0
    %2089 = vdwg.mxu0
    %v2090 = vmul.f32 %v2009, 0.25
    %v2091 = vmul.f32 %v2087, 0.25
    %v2092 = vadd.f32 %v2090, %v196
    %v2093 = vadd.f32 %v2091, %v197
    %v2094 = vsel %vm452, %v2092, -inf
    %2095 = vmax.xlane.f32.xlu0 %v2094
    %v2096 = vpop.xlane.xlu0 %2095
    %v2097 = vsel %vm452, %v2093, -inf
    %2098 = vmax.xlane.f32.xlu0 %v2097
    %v2099 = vpop.xlane.xlu0 %2098
    %v2100 = vsub.f32 %v2092, %v2096
    %v2101 = vsub.f32 %v2093, %v2099
    %v2102 = vmul.f32 %v2100, 1.442695
    %v2103 = vpow.pop %v2102
    %v2104 = vmul.f32 %v2101, 1.442695
    %v2105 = vpow.pop %v2104
    %v2106 = vsel %vm452, %v2103, 0.0
    %2107 = vadd.xlane.f32.xlu0 %v2106
    %v2108 = vpop.xlane.xlu0 %2107
    %v2109 = vsel %vm452, %v2105, 0.0
    %2110 = vadd.xlane.f32.xlu0 %v2109
    %v2111 = vpop.xlane.xlu0 %2110
    %v2112 = vrcp.pop %v2108
    %v2113 = vrcp.pop %v2111
    %v2114 = vmul.f32 %v2103, %v2112
    %v2115 = vmul.f32 %v2105, %v2113
    %2116 = vrot.lane.b32.xlu0 %v1501, 48
    %v2117 = vpop.permute.xlu0 %2116
    %v2120 = vsel %vm452, %v2114, 0
    %2122 = vmatprep.subr.mxu0 0.0
    %2123 = vmatpush1.msra.mxu0 %v2117
    %2124 = vmatprep.subr.mxu0 0.0
    %2125 = vmatpush1.msra.mxu0 0.0
    %2126 = vmatprep.subr.mxu0 0.0
    %2127 = vmatpush1.msra.mxu0 0.0
    %2128 = vmatprep.subr.mxu0 0.0
    %2129 = vmatpush1.msra.mxu0 0.0
    %2130 = vmatprep.subr.mxu0 0.0
    %2131 = vmatpush1.msra.mxu0 0.0
    %2132 = vmatprep.subr.mxu0 0.0
    %2133 = vmatpush1.msra.mxu0 0.0
    %2134 = vmatprep.subr.mxu0 0.0
    %2135 = vmatpush1.msra.mxu0 0.0
    %2136 = vmatprep.subr.mxu0 0.0
    %2137 = vmatpush1.msra.mxu0 0.0
    %2138 = vmatprep.subr.mxu0 0.0
    %2139 = vmatpush1.msra.mxu0 0.0
    %2140 = vmatprep.subr.mxu0 0.0
    %2141 = vmatpush1.msra.mxu0 0.0
    %2142 = vmatprep.subr.mxu0 0.0
    %2143 = vmatpush1.msra.mxu0 0.0
    %2144 = vmatprep.subr.mxu0 0.0
    %2145 = vmatpush1.msra.mxu0 0.0
    %2146 = vmatprep.subr.mxu0 0.0
    %2147 = vmatpush1.msra.mxu0 0.0
    %2148 = vmatprep.subr.mxu0 0.0
    %2149 = vmatpush1.msra.mxu0 0.0
    %2150 = vmatprep.subr.mxu0 0.0
    %2151 = vmatpush1.msra.mxu0 0.0
    %2152 = vmatprep.subr.mxu0 0.0
    %2153 = vmatpush1.msra.mxu0 0.0
    %2154 = vmatprep.subr.mxu0 0.0
    %2155 = vmatpush1.msra.mxu0 0.0
    %2156 = vmatprep.subr.mxu0 0.0
    %2157 = vmatpush1.msra.mxu0 0.0
    %2158 = vmatprep.subr.mxu0 0.0
    %2159 = vmatpush1.msra.mxu0 0.0
    %2160 = vmatprep.subr.mxu0 0.0
    %2161 = vmatpush1.msra.mxu0 0.0
    %2162 = vmatprep.subr.mxu0 0.0
    %2163 = vmatpush1.msra.mxu0 0.0
    %2164 = vmatprep.subr.mxu0 0.0
    %2165 = vmatpush1.msra.mxu0 0.0
    %2166 = vmatprep.subr.mxu0 0.0
    %2167 = vmatpush1.msra.mxu0 0.0
    %2168 = vmatprep.subr.mxu0 0.0
    %2169 = vmatpush1.msra.mxu0 0.0
    %2170 = vmatprep.subr.mxu0 0.0
    %2171 = vmatpush1.msra.mxu0 0.0
    %2172 = vmatprep.subr.mxu0 0.0
    %2173 = vmatpush1.msra.mxu0 0.0
    %2174 = vmatprep.subr.mxu0 0.0
    %2175 = vmatpush1.msra.mxu0 0.0
    %2176 = vmatprep.subr.mxu0 0.0
    %2177 = vmatpush1.msra.mxu0 0.0
    %2178 = vmatprep.subr.mxu0 0.0
    %2179 = vmatpush1.msra.mxu0 0.0
    %2180 = vmatprep.subr.mxu0 0.0
    %2181 = vmatpush1.msra.mxu0 0.0
    %2182 = vmatprep.subr.mxu0 0.0
    %2183 = vmatpush1.msra.mxu0 0.0
    %2184 = vmatprep.subr.mxu0 0.0
    %2185 = vmatpush1.msra.mxu0 0.0
    %2186 = vmatprep.mubr.f32.mxu0 0.0
    %2187 = vmatmul.mubr.f32.gmra.mrb[0].mxu0 %v2120
    %v2188 = vpop.f32.mrb[0].mxu0
    %v2189 = vadd.f32 0.0, %v2188
    %v2190 = vpop.f32.mrb[0].mxu0
    %2191 = vdwg.mxu0
    %2192 = vrot.lane.b32.xlu0 %v1506, 48
    %v2193 = vpop.permute.xlu0 %2192
    %v2196 = vsel %vm452, %v2115, 0
    %2198 = vmatprep.subr.mxu0 0.0
    %2199 = vmatpush1.msra.mxu0 %v2193
    %2200 = vmatprep.subr.mxu0 0.0
    %2201 = vmatpush1.msra.mxu0 0.0
    %2202 = vmatprep.subr.mxu0 0.0
    %2203 = vmatpush1.msra.mxu0 0.0
    %2204 = vmatprep.subr.mxu0 0.0
    %2205 = vmatpush1.msra.mxu0 0.0
    %2206 = vmatprep.subr.mxu0 0.0
    %2207 = vmatpush1.msra.mxu0 0.0
    %2208 = vmatprep.subr.mxu0 0.0
    %2209 = vmatpush1.msra.mxu0 0.0
    %2210 = vmatprep.subr.mxu0 0.0
    %2211 = vmatpush1.msra.mxu0 0.0
    %2212 = vmatprep.subr.mxu0 0.0
    %2213 = vmatpush1.msra.mxu0 0.0
    %2214 = vmatprep.subr.mxu0 0.0
    %2215 = vmatpush1.msra.mxu0 0.0
    %2216 = vmatprep.subr.mxu0 0.0
    %2217 = vmatpush1.msra.mxu0 0.0
    %2218 = vmatprep.subr.mxu0 0.0
    %2219 = vmatpush1.msra.mxu0 0.0
    %2220 = vmatprep.subr.mxu0 0.0
    %2221 = vmatpush1.msra.mxu0 0.0
    %2222 = vmatprep.subr.mxu0 0.0
    %2223 = vmatpush1.msra.mxu0 0.0
    %2224 = vmatprep.subr.mxu0 0.0
    %2225 = vmatpush1.msra.mxu0 0.0
    %2226 = vmatprep.subr.mxu0 0.0
    %2227 = vmatpush1.msra.mxu0 0.0
    %2228 = vmatprep.subr.mxu0 0.0
    %2229 = vmatpush1.msra.mxu0 0.0
    %2230 = vmatprep.subr.mxu0 0.0
    %2231 = vmatpush1.msra.mxu0 0.0
    %2232 = vmatprep.subr.mxu0 0.0
    %2233 = vmatpush1.msra.mxu0 0.0
    %2234 = vmatprep.subr.mxu0 0.0
    %2235 = vmatpush1.msra.mxu0 0.0
    %2236 = vmatprep.subr.mxu0 0.0
    %2237 = vmatpush1.msra.mxu0 0.0
    %2238 = vmatprep.subr.mxu0 0.0
    %2239 = vmatpush1.msra.mxu0 0.0
    %2240 = vmatprep.subr.mxu0 0.0
    %2241 = vmatpush1.msra.mxu0 0.0
    %2242 = vmatprep.subr.mxu0 0.0
    %2243 = vmatpush1.msra.mxu0 0.0
    %2244 = vmatprep.subr.mxu0 0.0
    %2245 = vmatpush1.msra.mxu0 0.0
    %2246 = vmatprep.subr.mxu0 0.0
    %2247 = vmatpush1.msra.mxu0 0.0
    %2248 = vmatprep.subr.mxu0 0.0
    %2249 = vmatpush1.msra.mxu0 0.0
    %2250 = vmatprep.subr.mxu0 0.0
    %2251 = vmatpush1.msra.mxu0 0.0
    %2252 = vmatprep.subr.mxu0 0.0
    %2253 = vmatpush1.msra.mxu0 0.0
    %2254 = vmatprep.subr.mxu0 0.0
    %2255 = vmatpush1.msra.mxu0 0.0
    %2256 = vmatprep.subr.mxu0 0.0
    %2257 = vmatpush1.msra.mxu0 0.0
    %2258 = vmatprep.subr.mxu0 0.0
    %2259 = vmatpush1.msra.mxu0 0.0
    %2260 = vmatprep.subr.mxu0 0.0
    %2261 = vmatpush1.msra.mxu0 0.0
    %2262 = vmatprep.mubr.f32.mxu0 0.0
    %2263 = vmatmul.mubr.f32.gmra.mrb[0].mxu0 %v2196
    %v2264 = vpop.f32.mrb[0].mxu0
    %v2265 = vadd.f32 0.0, %v2264
    %v2266 = vpop.f32.mrb[0].mxu0
    %2267 = vdwg.mxu0
    %v2269 = vsel %vm296, %v2189, 0
    %v2272 = vsel %vm296, %v2265, 0
    %2274 = vmatprep.subr.mxu0 0.0
    %2275 = vmatpush1.msra.mxu0 %v1512
    %2276 = vmatprep.subr.mxu0 0.0
    %2277 = vmatpush1.msra.mxu0 %v1513
    %2278 = vmatprep.subr.mxu0 0.0
    %2279 = vmatpush1.msra.mxu0 0.0
    %2280 = vmatprep.subr.mxu0 0.0
    %2281 = vmatpush1.msra.mxu0 0.0
    %2282 = vmatprep.subr.mxu0 0.0
    %2283 = vmatpush1.msra.mxu0 0.0
    %2284 = vmatprep.subr.mxu0 0.0
    %2285 = vmatpush1.msra.mxu0 0.0
    %2286 = vmatprep.subr.mxu0 0.0
    %2287 = vmatpush1.msra.mxu0 0.0
    %2288 = vmatprep.subr.mxu0 0.0
    %2289 = vmatpush1.msra.mxu0 0.0
    %2290 = vmatprep.subr.mxu0 0.0
    %2291 = vmatpush1.msra.mxu0 0.0
    %2292 = vmatprep.subr.mxu0 0.0
    %2293 = vmatpush1.msra.mxu0 0.0
    %2294 = vmatprep.subr.mxu0 0.0
    %2295 = vmatpush1.msra.mxu0 0.0
    %2296 = vmatprep.subr.mxu0 0.0
    %2297 = vmatpush1.msra.mxu0 0.0
    %2298 = vmatprep.subr.mxu0 0.0
    %2299 = vmatpush1.msra.mxu0 0.0
    %2300 = vmatprep.subr.mxu0 0.0
    %2301 = vmatpush1.msra.mxu0 0.0
    %2302 = vmatprep.subr.mxu0 0.0
    %2303 = vmatpush1.msra.mxu0 0.0
    %2304 = vmatprep.subr.mxu0 0.0
    %2305 = vmatpush1.msra.mxu0 0.0
    %2306 = vmatprep.subr.mxu0 0.0
    %2307 = vmatpush1.msra.mxu0 0.0
    %2308 = vmatprep.subr.mxu0 0.0
    %2309 = vmatpush1.msra.mxu0 0.0
    %2310 = vmatprep.subr.mxu0 0.0
    %2311 = vmatpush1.msra.mxu0 0.0
    %2312 = vmatprep.subr.mxu0 0.0
    %2313 = vmatpush1.msra.mxu0 0.0
    %2314 = vmatprep.subr.mxu0 0.0
    %2315 = vmatpush1.msra.mxu0 0.0
    %2316 = vmatprep.subr.mxu0 0.0
    %2317 = vmatpush1.msra.mxu0 0.0
    %2318 = vmatprep.subr.mxu0 0.0
    %2319 = vmatpush1.msra.mxu0 0.0
    %2320 = vmatprep.subr.mxu0 0.0
    %2321 = vmatpush1.msra.mxu0 0.0
    %2322 = vmatprep.subr.mxu0 0.0
    %2323 = vmatpush1.msra.mxu0 0.0
    %2324 = vmatprep.subr.mxu0 0.0
    %2325 = vmatpush1.msra.mxu0 0.0
    %2326 = vmatprep.subr.mxu0 0.0
    %2327 = vmatpush1.msra.mxu0 0.0
    %2328 = vmatprep.subr.mxu0 0.0
    %2329 = vmatpush1.msra.mxu0 0.0
    %2330 = vmatprep.subr.mxu0 0.0
    %2331 = vmatpush1.msra.mxu0 0.0
    %2332 = vmatprep.subr.mxu0 0.0
    %2333 = vmatpush1.msra.mxu0 0.0
    %2334 = vmatprep.subr.mxu0 0.0
    %2335 = vmatpush1.msra.mxu0 0.0
    %2336 = vmatprep.subr.mxu0 0.0
    %2337 = vmatpush1.msra.mxu0 0.0
    %2338 = vmatprep.mubr.f32.mxu0 0.0
    %2339 = vmatmul.mubr.f32.gmra.mrb[0].mxu0 %v2269
    %v2340 = vpop.f32.mrb[0].mxu0
    %v2341 = vadd.f32 0.0, %v2340
    %v2342 = vpop.f32.mrb[0].mxu0
    %2343 = vmatprep.mubr.f32.mxu0 0.0
    %2344 = vmatmul.mubr.f32.gmra.mrb[0].mxu0 %v2272
    %v2345 = vpop.f32.mrb[0].mxu0
    %v2346 = vadd.f32 0.0, %v2345
    %v2347 = vpop.f32.mrb[0].mxu0
    %2348 = vdwg.mxu0
    %v2349 = vadd.f32 %v1932, %v2341
    %v2350 = vadd.f32 %v1933, %v2346
    %v2351 = vadd.f32 %v1416, %v2349
    %v2352 = vadd.f32 %v1417, %v2350
    %v2353 = vld [vmem:[%s6 + $0xc] sm:$0x1]
    %v2354 = vld [vmem:[%s6 + $0xd] sm:$0x1]
    %v2355 = vsel %vm156, %v2351, 0.0
    %2356 = vadd.xlane.f32.xlu0 %v2355
    %v2357 = vpop.xlane.xlu0 %2356
    %v2358 = vsel %vm156, %v2352, 0.0
    %2359 = vadd.xlane.f32.xlu0 %v2358
    %v2360 = vpop.xlane.xlu0 %2359
    %v2361 = vmul.f32 %v2357, %v163
    %v2362 = vmul.f32 %v2360, %v163
    %v2363 = vsub.f32 %v2351, %v2361
    %v2364 = vsub.f32 %v2352, %v2362
    %v2365 = vmul.f32 %v2363, %v2363
    %v2366 = vmul.f32 %v2364, %v2364
    %v2367 = vsel %vm156, %v2365, 0.0
    %2368 = vadd.xlane.f32.xlu0 %v2367
    %v2369 = vpop.xlane.xlu0 %2368
    %v2370 = vsel %vm156, %v2366, 0.0
    %2371 = vadd.xlane.f32.xlu0 %v2370
    %v2372 = vpop.xlane.xlu0 %2371
    %v2373 = vmul.f32 %v2369, %v163
    %v2374 = vmul.f32 %v2372, %v163
    %v2375 = vadd.f32 %v2373, 1e-12
    %v2376 = vadd.f32 %v2374, 1e-12
    %v2377 = vrsqrt.pop %v2375
    %v2378 = vrsqrt.pop %v2376
    %v2379 = vmul.f32 %v2363, %v2377
    %v2380 = vmul.f32 %v2364, %v2378
    %v2381 = vlaneseq
    %v2382 = vshrl.u32 %v2381, 7
    %v2383 = vsub.s32 0, %v2382
    %v2384 = vrot.slane %v2353, %v2383
    %v2385 = vmul.f32 %v2379, %v2384
    %v2386 = vmul.f32 %v2380, %v2384
    %v2387 = vlaneseq
    %v2388 = vshrl.u32 %v2387, 7
    %v2389 = vsub.s32 0, %v2388
    %v2390 = vrot.slane %v2354, %v2389
    %v2391 = vadd.f32 %v2385, %v2390
    %v2392 = vadd.f32 %v2386, %v2390
    %s2393 = scalar_lea.vmem [#allocation2], 32
    %v2394 = vld [vmem:[%s2393] sm:$0xff]
    %v2395 = vld [vmem:[%s2393 + $0x8] sm:$0xff]
    %v2396 = vld [vmem:[%s2393 + $0x10] sm:$0xff]
    %v2397 = vld [vmem:[%s2393 + $0x18] sm:$0xff]
    %v2398 = vld [vmem:[%s6 + $0xe] sm:$0x1]
    %v2399 = vlaneseq
    %v2400 = vshrl.u32 %v2399, 7
    %v2401 = vsub.s32 0, %v2400
    %v2402 = vrot.slane %v2398, %v2401
    %v2404 = vsel %vm156, %v2391, 0
    %v2407 = vsel %vm156, %v2392, 0
    %2409 = vmatprep.subr.mxu0 0.0
    %2410 = vmatpush1.msra.mxu0 %v2394
    %2411 = vmatprep.subr.mxu0 0.0
    %2412 = vmatpush1.msra.mxu0 %v2395
    %2413 = vmatprep.subr.mxu0 0.0
    %2414 = vmatpush1.msra.mxu0 %v2396
    %2415 = vmatprep.subr.mxu0 0.0
    %2416 = vmatpush1.msra.mxu0 %v2397
    %2417 = vmatprep.subr.mxu0 0.0
    %2418 = vmatpush1.msra.mxu0 0.0
    %2419 = vmatprep.subr.mxu0 0.0
    %2420 = vmatpush1.msra.mxu0 0.0
    %2421 = vmatprep.subr.mxu0 0.0
    %2422 = vmatpush1.msra.mxu0 0.0
    %2423 = vmatprep.subr.mxu0 0.0
    %2424 = vmatpush1.msra.mxu0 0.0
    %2425 = vmatprep.subr.mxu0 0.0
    %2426 = vmatpush1.msra.mxu0 0.0
    %2427 = vmatprep.subr.mxu0 0.0
    %2428 = vmatpush1.msra.mxu0 0.0
    %2429 = vmatprep.subr.mxu0 0.0
    %2430 = vmatpush1.msra.mxu0 0.0
    %2431 = vmatprep.subr.mxu0 0.0
    %2432 = vmatpush1.msra.mxu0 0.0
    %2433 = vmatprep.subr.mxu0 0.0
    %2434 = vmatpush1.msra.mxu0 0.0
    %2435 = vmatprep.subr.mxu0 0.0
    %2436 = vmatpush1.msra.mxu0 0.0
    %2437 = vmatprep.subr.mxu0 0.0
    %2438 = vmatpush1.msra.mxu0 0.0
    %2439 = vmatprep.subr.mxu0 0.0
    %2440 = vmatpush1.msra.mxu0 0.0
    %2441 = vmatprep.subr.mxu0 0.0
    %2442 = vmatpush1.msra.mxu0 0.0
    %2443 = vmatprep.subr.mxu0 0.0
    %2444 = vmatpush1.msra.mxu0 0.0
    %2445 = vmatprep.subr.mxu0 0.0
    %2446 = vmatpush1.msra.mxu0 0.0
    %2447 = vmatprep.subr.mxu0 0.0
    %2448 = vmatpush1.msra.mxu0 0.0
    %2449 = vmatprep.subr.mxu0 0.0
    %2450 = vmatpush1.msra.mxu0 0.0
    %2451 = vmatprep.subr.mxu0 0.0
    %2452 = vmatpush1.msra.mxu0 0.0
    %2453 = vmatprep.subr.mxu0 0.0
    %2454 = vmatpush1.msra.mxu0 0.0
    %2455 = vmatprep.subr.mxu0 0.0
    %2456 = vmatpush1.msra.mxu0 0.0
    %2457 = vmatprep.subr.mxu0 0.0
    %2458 = vmatpush1.msra.mxu0 0.0
    %2459 = vmatprep.subr.mxu0 0.0
    %2460 = vmatpush1.msra.mxu0 0.0
    %2461 = vmatprep.subr.mxu0 0.0
    %2462 = vmatpush1.msra.mxu0 0.0
    %2463 = vmatprep.subr.mxu0 0.0
    %2464 = vmatpush1.msra.mxu0 0.0
    %2465 = vmatprep.subr.mxu0 0.0
    %2466 = vmatpush1.msra.mxu0 0.0
    %2467 = vmatprep.subr.mxu0 0.0
    %2468 = vmatpush1.msra.mxu0 0.0
    %2469 = vmatprep.subr.mxu0 0.0
    %2470 = vmatpush1.msra.mxu0 0.0
    %2471 = vmatprep.subr.mxu0 0.0
    %2472 = vmatpush1.msra.mxu0 0.0
    %2473 = vmatprep.mubr.f32.mxu0 0.0
    %2474 = vmatmul.mubr.f32.gmra.mrb[0].mxu0 %v2404
    %v2475 = vpop.f32.mrb[0].mxu0
    %v2476 = vadd.f32 %v2402, %v2475
    %v2477 = vpop.f32.mrb[0].mxu0
    %2478 = vmatprep.mubr.f32.mxu0 0.0
    %2479 = vmatmul.mubr.f32.gmra.mrb[0].mxu0 %v2407
    %v2480 = vpop.f32.mrb[0].mxu0
    %v2481 = vadd.f32 %v2402, %v2480
    %v2482 = vpop.f32.mrb[0].mxu0
    %2483 = vdwg.mxu0
    %v2484 = vmul.f32 %v2476, %v2476
    %v2485 = vmul.f32 %v2481, %v2481
    %v2486 = vmul.f32 %v2476, %v2484
    %v2487 = vmul.f32 %v2481, %v2485
    %v2488 = vmul.f32 %v2486, 0.044715
    %v2489 = vmul.f32 %v2487, 0.044715
    %v2490 = vadd.f32 %v2476, %v2488
    %v2491 = vadd.f32 %v2481, %v2489
    %v2492 = vmul.f32 %v2490, 0.7978846
    %v2493 = vmul.f32 %v2491, 0.7978846
    %v2494 = vtanh.pop %v2492
    %v2495 = vtanh.pop %v2493
    %v2496 = vadd.f32 %v2494, 1.0
    %v2497 = vadd.f32 %v2495, 1.0
    %v2498 = vmul.f32 %v2496, 0.5
    %v2499 = vmul.f32 %v2497, 0.5
    %v2500 = vmul.f32 %v2476, %v2498
    %v2501 = vmul.f32 %v2481, %v2499
    %s2502 = scalar_lea.vmem %s5, 64
    %v2503 = vld [vmem:[%s2502] sm:$0xff]
    %v2504 = vld [vmem:[%s2502 + $0x8] sm:$0xff]
    %v2505 = vld [vmem:[%s2502 + $0x10] sm:$0xff]
    %v2506 = vld [vmem:[%s2502 + $0x18] sm:$0xff]
    %v2507 = vld [vmem:[%s2502 + $0x20] sm:$0xff]
    %v2508 = vld [vmem:[%s2502 + $0x28] sm:$0xff]
    %v2509 = vld [vmem:[%s2502 + $0x30] sm:$0xff]
    %v2510 = vld [vmem:[%s2502 + $0x38] sm:$0xff]
    %v2511 = vld [vmem:[%s6 + $0xf] sm:$0x1]
    %v2512 = vlaneseq
    %v2513 = vshrl.u32 %v2512, 7
    %v2514 = vsub.s32 0, %v2513
    %v2515 = vrot.slane %v2511, %v2514
    %v2517 = vsel %vm1294, %v2500, 0
    %v2520 = vsel %vm1294, %v2501, 0
    %2522 = vmatprep.subr.mxu0 0.0
    %2523 = vmatpush1.msra.mxu0 %v2503
    %2524 = vmatprep.subr.mxu0 0.0
    %2525 = vmatpush1.msra.mxu0 %v2504
    %2526 = vmatprep.subr.mxu0 0.0
    %2527 = vmatpush1.msra.mxu0 %v2505
    %2528 = vmatprep.subr.mxu0 0.0
    %2529 = vmatpush1.msra.mxu0 %v2506
    %2530 = vmatprep.subr.mxu0 0.0
    %2531 = vmatpush1.msra.mxu0 %v2507
    %2532 = vmatprep.subr.mxu0 0.0
    %2533 = vmatpush1.msra.mxu0 %v2508
    %2534 = vmatprep.subr.mxu0 0.0
    %2535 = vmatpush1.msra.mxu0 %v2509
    %2536 = vmatprep.subr.mxu0 0.0
    %2537 = vmatpush1.msra.mxu0 %v2510
    %2538 = vmatprep.subr.mxu0 0.0
    %2539 = vmatpush1.msra.mxu0 0.0
    %2540 = vmatprep.subr.mxu0 0.0
    %2541 = vmatpush1.msra.mxu0 0.0
    %2542 = vmatprep.subr.mxu0 0.0
    %2543 = vmatpush1.msra.mxu0 0.0
    %2544 = vmatprep.subr.mxu0 0.0
    %2545 = vmatpush1.msra.mxu0 0.0
    %2546 = vmatprep.subr.mxu0 0.0
    %2547 = vmatpush1.msra.mxu0 0.0
    %2548 = vmatprep.subr.mxu0 0.0
    %2549 = vmatpush1.msra.mxu0 0.0
    %2550 = vmatprep.subr.mxu0 0.0
    %2551 = vmatpush1.msra.mxu0 0.0
    %2552 = vmatprep.subr.mxu0 0.0
    %2553 = vmatpush1.msra.mxu0 0.0
    %2554 = vmatprep.subr.mxu0 0.0
    %2555 = vmatpush1.msra.mxu0 0.0
    %2556 = vmatprep.subr.mxu0 0.0
    %2557 = vmatpush1.msra.mxu0 0.0
    %2558 = vmatprep.subr.mxu0 0.0
    %2559 = vmatpush1.msra.mxu0 0.0
    %2560 = vmatprep.subr.mxu0 0.0
    %2561 = vmatpush1.msra.mxu0 0.0
    %2562 = vmatprep.subr.mxu0 0.0
    %2563 = vmatpush1.msra.mxu0 0.0
    %2564 = vmatprep.subr.mxu0 0.0
    %2565 = vmatpush1.msra.mxu0 0.0
    %2566 = vmatprep.subr.mxu0 0.0
    %2567 = vmatpush1.msra.mxu0 0.0
    %2568 = vmatprep.subr.mxu0 0.0
    %2569 = vmatpush1.msra.mxu0 0.0
    %2570 = vmatprep.subr.mxu0 0.0
    %2571 = vmatpush1.msra.mxu0 0.0
    %2572 = vmatprep.subr.mxu0 0.0
    %2573 = vmatpush1.msra.mxu0 0.0
    %2574 = vmatprep.subr.mxu0 0.0
    %2575 = vmatpush1.msra.mxu0 0.0
    %2576 = vmatprep.subr.mxu0 0.0
    %2577 = vmatpush1.msra.mxu0 0.0
    %2578 = vmatprep.subr.mxu0 0.0
    %2579 = vmatpush1.msra.mxu0 0.0
    %2580 = vmatprep.subr.mxu0 0.0
    %2581 = vmatpush1.msra.mxu0 0.0
    %2582 = vmatprep.subr.mxu0 0.0
    %2583 = vmatpush1.msra.mxu0 0.0
    %2584 = vmatprep.subr.mxu0 0.0
    %2585 = vmatpush1.msra.mxu0 0.0
    %2586 = vmatprep.mubr.f32.mxu0 0.0
    %2587 = vmatmul.mubr.f32.gmra.mrb[0].mxu0 %v2517
    %v2588 = vpop.f32.mrb[0].mxu0
    %v2589 = vadd.f32 %v2515, %v2588
    %v2590 = vpop.f32.mrb[0].mxu0
    %2591 = vmatprep.mubr.f32.mxu0 0.0
    %2592 = vmatmul.mubr.f32.gmra.mrb[0].mxu0 %v2520
    %v2593 = vpop.f32.mrb[0].mxu0
    %v2594 = vadd.f32 %v2515, %v2593
    %v2595 = vpop.f32.mrb[0].mxu0
    %2596 = vdwg.mxu0
    %v2597 = vadd.f32 %v2391, %v2589
    %v2598 = vadd.f32 %v2392, %v2594
    %v2599 = vld [vmem:[%s6 + $0x10] sm:$0x1]
    %v2600 = vld [vmem:[%s6 + $0x11] sm:$0x1]
    %v2601 = vsel %vm156, %v2597, 0.0
    %2602 = vadd.xlane.f32.xlu0 %v2601
    %v2603 = vpop.xlane.xlu0 %2602
    %v2604 = vsel %vm156, %v2598, 0.0
    %2605 = vadd.xlane.f32.xlu0 %v2604
    %v2606 = vpop.xlane.xlu0 %2605
    %v2607 = vmul.f32 %v2603, %v163
    %v2608 = vmul.f32 %v2606, %v163
    %v2609 = vsub.f32 %v2597, %v2607
    %v2610 = vsub.f32 %v2598, %v2608
    %v2611 = vmul.f32 %v2609, %v2609
    %v2612 = vmul.f32 %v2610, %v2610
    %v2613 = vsel %vm156, %v2611, 0.0
    %2614 = vadd.xlane.f32.xlu0 %v2613
    %v2615 = vpop.xlane.xlu0 %2614
    %v2616 = vsel %vm156, %v2612, 0.0
    %2617 = vadd.xlane.f32.xlu0 %v2616
    %v2618 = vpop.xlane.xlu0 %2617
    %v2619 = vmul.f32 %v2615, %v163
    %v2620 = vmul.f32 %v2618, %v163
    %v2621 = vadd.f32 %v2619, 1e-12
    %v2622 = vadd.f32 %v2620, 1e-12
    %v2623 = vrsqrt.pop %v2621
    %v2624 = vrsqrt.pop %v2622
    %v2625 = vmul.f32 %v2609, %v2623
    %v2626 = vmul.f32 %v2610, %v2624
    %v2627 = vlaneseq
    %v2628 = vshrl.u32 %v2627, 7
    %v2629 = vsub.s32 0, %v2628
    %v2630 = vrot.slane %v2599, %v2629
    %v2631 = vmul.f32 %v2625, %v2630
    %v2632 = vmul.f32 %v2626, %v2630
    %v2633 = vlaneseq
    %v2634 = vshrl.u32 %v2633, 7
    %v2635 = vsub.s32 0, %v2634
    %v2636 = vrot.slane %v2600, %v2635
    %v2637 = vadd.f32 %v2631, %v2636
    %v2638 = vadd.f32 %v2632, %v2636
    %v2639 = vlaneseq
    %v2640 = vshrl.u32 %v2639, 7
    %vm2641 = vcmp.lt.s32.totalorder %v2640, 2
    %v2642 = vsub.s32 %v2640, 2
    %v2643 = vsel %vm2641, %v2640, %v2642
    %v2644 = vmul.u32 %v2643, 8
    %vm2645 = vcmp.eq.s32.totalorder %v46, %v2644
    %vm2646 = vcmp.lt.s32.totalorder %v2640, 4
    %vm2647 = vmand %vm2645, %vm2646
    %v2648 = vsel %vm2647, 1, 0
    %v2649 = vcvt.s32.f32 %v2648
    %v2651 = vsel %vm296, %v2649, 0
    %2653 = vmatprep.subr.mxu0 0.0
    %2654 = vmatpush1.msra.mxu0 %v2637
    %2655 = vmatprep.subr.mxu0 0.0
    %2656 = vmatpush1.msra.mxu0 %v2638
    %2657 = vmatprep.subr.mxu0 0.0
    %2658 = vmatpush1.msra.mxu0 0.0
    %2659 = vmatprep.subr.mxu0 0.0
    %2660 = vmatpush1.msra.mxu0 0.0
    %2661 = vmatprep.subr.mxu0 0.0
    %2662 = vmatpush1.msra.mxu0 0.0
    %2663 = vmatprep.subr.mxu0 0.0
    %2664 = vmatpush1.msra.mxu0 0.0
    %2665 = vmatprep.subr.mxu0 0.0
    %2666 = vmatpush1.msra.mxu0 0.0
    %2667 = vmatprep.subr.mxu0 0.0
    %2668 = vmatpush1.msra.mxu0 0.0
    %2669 = vmatprep.subr.mxu0 0.0
    %2670 = vmatpush1.msra.mxu0 0.0
    %2671 = vmatprep.subr.mxu0 0.0
    %2672 = vmatpush1.msra.mxu0 0.0
    %2673 = vmatprep.subr.mxu0 0.0
    %2674 = vmatpush1.msra.mxu0 0.0
    %2675 = vmatprep.subr.mxu0 0.0
    %2676 = vmatpush1.msra.mxu0 0.0
    %2677 = vmatprep.subr.mxu0 0.0
    %2678 = vmatpush1.msra.mxu0 0.0
    %2679 = vmatprep.subr.mxu0 0.0
    %2680 = vmatpush1.msra.mxu0 0.0
    %2681 = vmatprep.subr.mxu0 0.0
    %2682 = vmatpush1.msra.mxu0 0.0
    %2683 = vmatprep.subr.mxu0 0.0
    %2684 = vmatpush1.msra.mxu0 0.0
    %2685 = vmatprep.subr.mxu0 0.0
    %2686 = vmatpush1.msra.mxu0 0.0
    %2687 = vmatprep.subr.mxu0 0.0
    %2688 = vmatpush1.msra.mxu0 0.0
    %2689 = vmatprep.subr.mxu0 0.0
    %2690 = vmatpush1.msra.mxu0 0.0
    %2691 = vmatprep.subr.mxu0 0.0
    %2692 = vmatpush1.msra.mxu0 0.0
    %2693 = vmatprep.subr.mxu0 0.0
    %2694 = vmatpush1.msra.mxu0 0.0
    %2695 = vmatprep.subr.mxu0 0.0
    %2696 = vmatpush1.msra.mxu0 0.0
    %2697 = vmatprep.subr.mxu0 0.0
    %2698 = vmatpush1.msra.mxu0 0.0
    %2699 = vmatprep.subr.mxu0 0.0
    %2700 = vmatpush1.msra.mxu0 0.0
    %2701 = vmatprep.subr.mxu0 0.0
    %2702 = vmatpush1.msra.mxu0 0.0
    %2703 = vmatprep.subr.mxu0 0.0
    %2704 = vmatpush1.msra.mxu0 0.0
    %2705 = vmatprep.subr.mxu0 0.0
    %2706 = vmatpush1.msra.mxu0 0.0
    %2707 = vmatprep.subr.mxu0 0.0
    %2708 = vmatpush1.msra.mxu0 0.0
    %2709 = vmatprep.subr.mxu0 0.0
    %2710 = vmatpush1.msra.mxu0 0.0
    %2711 = vmatprep.subr.mxu0 0.0
    %2712 = vmatpush1.msra.mxu0 0.0
    %2713 = vmatprep.subr.mxu0 0.0
    %2714 = vmatpush1.msra.mxu0 0.0
    %2715 = vmatprep.subr.mxu0 0.0
    %2716 = vmatpush1.msra.mxu0 0.0
    %2717 = vmatprep.mubr.f32.mxu0 0.0
    %2718 = vmatmul.mubr.f32.gmra.mrb[0].mxu0 %v2651
    %v2719 = vpop.f32.mrb[0].mxu0
    %v2720 = vadd.f32 0.0, %v2719
    %v2721 = vpop.f32.mrb[0].mxu0
    %2722 = vdwg.mxu0
    %v2723 = vld [vmem:[%s6 + $0x12] sm:$0xff]
    %v2724 = vld [vmem:[%s6 + $0x1a] sm:$0xff]
    %v2725 = vld [vmem:[%s6 + $0x22] sm:$0xff]
    %v2726 = vld [vmem:[%s6 + $0x2a] sm:$0xff]
    %v2727 = vld [vmem:[%s6 + $0x32] sm:$0x1]
    %v2728 = vlaneseq
    %v2729 = vshrl.u32 %v2728, 7
    %v2730 = vsub.s32 0, %v2729
    %v2731 = vrot.slane %v2727, %v2730
    %v2733 = vsel %vm156, %v2720, 0
    %2735 = vmatprep.subr.mxu0 0.0
    %2736 = vmatpush1.msra.mxu0 %v2723
    %2737 = vmatprep.subr.mxu0 0.0
    %2738 = vmatpush1.msra.mxu0 %v2724
    %2739 = vmatprep.subr.mxu0 0.0
    %2740 = vmatpush1.msra.mxu0 %v2725
    %2741 = vmatprep.subr.mxu0 0.0
    %2742 = vmatpush1.msra.mxu0 %v2726
    %2743 = vmatprep.subr.mxu0 0.0
    %2744 = vmatpush1.msra.mxu0 0.0
    %2745 = vmatprep.subr.mxu0 0.0
    %2746 = vmatpush1.msra.mxu0 0.0
    %2747 = vmatprep.subr.mxu0 0.0
    %2748 = vmatpush1.msra.mxu0 0.0
    %2749 = vmatprep.subr.mxu0 0.0
    %2750 = vmatpush1.msra.mxu0 0.0
    %2751 = vmatprep.subr.mxu0 0.0
    %2752 = vmatpush1.msra.mxu0 0.0
    %2753 = vmatprep.subr.mxu0 0.0
    %2754 = vmatpush1.msra.mxu0 0.0
    %2755 = vmatprep.subr.mxu0 0.0
    %2756 = vmatpush1.msra.mxu0 0.0
    %2757 = vmatprep.subr.mxu0 0.0
    %2758 = vmatpush1.msra.mxu0 0.0
    %2759 = vmatprep.subr.mxu0 0.0
    %2760 = vmatpush1.msra.mxu0 0.0
    %2761 = vmatprep.subr.mxu0 0.0
    %2762 = vmatpush1.msra.mxu0 0.0
    %2763 = vmatprep.subr.mxu0 0.0
    %2764 = vmatpush1.msra.mxu0 0.0
    %2765 = vmatprep.subr.mxu0 0.0
    %2766 = vmatpush1.msra.mxu0 0.0
    %2767 = vmatprep.subr.mxu0 0.0
    %2768 = vmatpush1.msra.mxu0 0.0
    %2769 = vmatprep.subr.mxu0 0.0
    %2770 = vmatpush1.msra.mxu0 0.0
    %2771 = vmatprep.subr.mxu0 0.0
    %2772 = vmatpush1.msra.mxu0 0.0
    %2773 = vmatprep.subr.mxu0 0.0
    %2774 = vmatpush1.msra.mxu0 0.0
    %2775 = vmatprep.subr.mxu0 0.0
    %2776 = vmatpush1.msra.mxu0 0.0
    %2777 = vmatprep.subr.mxu0 0.0
    %2778 = vmatpush1.msra.mxu0 0.0
    %2779 = vmatprep.subr.mxu0 0.0
    %2780 = vmatpush1.msra.mxu0 0.0
    %2781 = vmatprep.subr.mxu0 0.0
    %2782 = vmatpush1.msra.mxu0 0.0
    %2783 = vmatprep.subr.mxu0 0.0
    %2784 = vmatpush1.msra.mxu0 0.0
    %2785 = vmatprep.subr.mxu0 0.0
    %2786 = vmatpush1.msra.mxu0 0.0
    %2787 = vmatprep.subr.mxu0 0.0
    %2788 = vmatpush1.msra.mxu0 0.0
    %2789 = vmatprep.subr.mxu0 0.0
    %2790 = vmatpush1.msra.mxu0 0.0
    %2791 = vmatprep.subr.mxu0 0.0
    %2792 = vmatpush1.msra.mxu0 0.0
    %2793 = vmatprep.subr.mxu0 0.0
    %2794 = vmatpush1.msra.mxu0 0.0
    %2795 = vmatprep.subr.mxu0 0.0
    %2796 = vmatpush1.msra.mxu0 0.0
    %2797 = vmatprep.subr.mxu0 0.0
    %2798 = vmatpush1.msra.mxu0 0.0
    %2799 = vmatprep.mubr.f32.mxu0 0.0
    %2800 = vmatmul.mubr.f32.gmra.mrb[0].mxu0 %v2733
    %v2801 = vpop.f32.mrb[0].mxu0
    %v2802 = vadd.f32 %v2731, %v2801
    %v2803 = vpop.f32.mrb[0].mxu0
    %2804 = vdwg.mxu0
    %v2805 = vtanh.pop %v2802
    %v2806 = vld [vmem:[%s6 + $0x33] sm:$0xff]
    %v2807 = vld [vmem:[%s6 + $0x3b] sm:$0xff]
    %v2808 = vld [vmem:[%s6 + $0x43] sm:$0xff]
    %v2809 = vld [vmem:[%s6 + $0x4b] sm:$0xff]
    %v2810 = vld [vmem:[%s6 + $0x53] sm:$0x1]
    %v2811 = vlaneseq
    %v2812 = vshrl.u32 %v2811, 7
    %v2813 = vsub.s32 0, %v2812
    %v2814 = vrot.slane %v2810, %v2813
    %v2816 = vsel %vm156, %v2805, 0
    %2818 = vmatprep.subr.mxu0 0.0
    %2819 = vmatpush1.msra.mxu0 %v2806
    %2820 = vmatprep.subr.mxu0 0.0
    %2821 = vmatpush1.msra.mxu0 %v2807
    %2822 = vmatprep.subr.mxu0 0.0
    %2823 = vmatpush1.msra.mxu0 %v2808
    %2824 = vmatprep.subr.mxu0 0.0
    %2825 = vmatpush1.msra.mxu0 %v2809
    %2826 = vmatprep.subr.mxu0 0.0
    %2827 = vmatpush1.msra.mxu0 0.0
    %2828 = vmatprep.subr.mxu0 0.0
    %2829 = vmatpush1.msra.mxu0 0.0
    %2830 = vmatprep.subr.mxu0 0.0
    %2831 = vmatpush1.msra.mxu0 0.0
    %2832 = vmatprep.subr.mxu0 0.0
    %2833 = vmatpush1.msra.mxu0 0.0
    %2834 = vmatprep.subr.mxu0 0.0
    %2835 = vmatpush1.msra.mxu0 0.0
    %2836 = vmatprep.subr.mxu0 0.0
    %2837 = vmatpush1.msra.mxu0 0.0
    %2838 = vmatprep.subr.mxu0 0.0
    %2839 = vmatpush1.msra.mxu0 0.0
    %2840 = vmatprep.subr.mxu0 0.0
    %2841 = vmatpush1.msra.mxu0 0.0
    %2842 = vmatprep.subr.mxu0 0.0
    %2843 = vmatpush1.msra.mxu0 0.0
    %2844 = vmatprep.subr.mxu0 0.0
    %2845 = vmatpush1.msra.mxu0 0.0
    %2846 = vmatprep.subr.mxu0 0.0
    %2847 = vmatpush1.msra.mxu0 0.0
    %2848 = vmatprep.subr.mxu0 0.0
    %2849 = vmatpush1.msra.mxu0 0.0
    %2850 = vmatprep.subr.mxu0 0.0
    %2851 = vmatpush1.msra.mxu0 0.0
    %2852 = vmatprep.subr.mxu0 0.0
    %2853 = vmatpush1.msra.mxu0 0.0
    %2854 = vmatprep.subr.mxu0 0.0
    %2855 = vmatpush1.msra.mxu0 0.0
    %2856 = vmatprep.subr.mxu0 0.0
    %2857 = vmatpush1.msra.mxu0 0.0
    %2858 = vmatprep.subr.mxu0 0.0
    %2859 = vmatpush1.msra.mxu0 0.0
    %2860 = vmatprep.subr.mxu0 0.0
    %2861 = vmatpush1.msra.mxu0 0.0
    %2862 = vmatprep.subr.mxu0 0.0
    %2863 = vmatpush1.msra.mxu0 0.0
    %2864 = vmatprep.subr.mxu0 0.0
    %2865 = vmatpush1.msra.mxu0 0.0
    %2866 = vmatprep.subr.mxu0 0.0
    %2867 = vmatpush1.msra.mxu0 0.0
    %2868 = vmatprep.subr.mxu0 0.0
    %2869 = vmatpush1.msra.mxu0 0.0
    %2870 = vmatprep.subr.mxu0 0.0
    %2871 = vmatpush1.msra.mxu0 0.0
    %2872 = vmatprep.subr.mxu0 0.0
    %2873 = vmatpush1.msra.mxu0 0.0
    %2874 = vmatprep.subr.mxu0 0.0
    %2875 = vmatpush1.msra.mxu0 0.0
    %2876 = vmatprep.subr.mxu0 0.0
    %2877 = vmatpush1.msra.mxu0 0.0
    %2878 = vmatprep.subr.mxu0 0.0
    %2879 = vmatpush1.msra.mxu0 0.0
    %2880 = vmatprep.subr.mxu0 0.0
    %2881 = vmatpush1.msra.mxu0 0.0
    %2882 = vmatprep.mubr.f32.mxu0 0.0
    %2883 = vmatmul.mubr.f32.gmra.mrb[0].mxu0 %v2816
    %v2884 = vpop.f32.mrb[0].mxu0
    %v2885 = vadd.f32 %v2814, %v2884
    %v2886 = vpop.f32.mrb[0].mxu0
    %2887 = vdwg.mxu0
    %v2888 = vld [vmem:[%s6 + $0x54] sm:$0xff]
    %v2889 = vld [vmem:[%s6 + $0x5c] sm:$0xff]
    %v2890 = vld [vmem:[%s6 + $0x64] sm:$0xff]
    %v2891 = vld [vmem:[%s6 + $0x6c] sm:$0xff]
    %v2892 = vld [vmem:[%s6 + $0x74] sm:$0x1]
    %v2893 = vlaneseq
    %v2894 = vshrl.u32 %v2893, 7
    %v2895 = vsub.s32 0, %v2894
    %v2896 = vrot.slane %v2892, %v2895
    %2897 = vmatprep.subr.mxu0 0.0
    %2898 = vmatpush1.msra.mxu0 %v2888
    %2899 = vmatprep.subr.mxu0 0.0
    %2900 = vmatpush1.msra.mxu0 %v2889
    %2901 = vmatprep.subr.mxu0 0.0
    %2902 = vmatpush1.msra.mxu0 %v2890
    %2903 = vmatprep.subr.mxu0 0.0
    %2904 = vmatpush1.msra.mxu0 %v2891
    %2905 = vmatprep.subr.mxu0 0.0
    %2906 = vmatpush1.msra.mxu0 0.0
    %2907 = vmatprep.subr.mxu0 0.0
    %2908 = vmatpush1.msra.mxu0 0.0
    %2909 = vmatprep.subr.mxu0 0.0
    %2910 = vmatpush1.msra.mxu0 0.0
    %2911 = vmatprep.subr.mxu0 0.0
    %2912 = vmatpush1.msra.mxu0 0.0
    %2913 = vmatprep.subr.mxu0 0.0
    %2914 = vmatpush1.msra.mxu0 0.0
    %2915 = vmatprep.subr.mxu0 0.0
    %2916 = vmatpush1.msra.mxu0 0.0
    %2917 = vmatprep.subr.mxu0 0.0
    %2918 = vmatpush1.msra.mxu0 0.0
    %2919 = vmatprep.subr.mxu0 0.0
    %2920 = vmatpush1.msra.mxu0 0.0
    %2921 = vmatprep.subr.mxu0 0.0
    %2922 = vmatpush1.msra.mxu0 0.0
    %2923 = vmatprep.subr.mxu0 0.0
    %2924 = vmatpush1.msra.mxu0 0.0
    %2925 = vmatprep.subr.mxu0 0.0
    %2926 = vmatpush1.msra.mxu0 0.0
    %2927 = vmatprep.subr.mxu0 0.0
    %2928 = vmatpush1.msra.mxu0 0.0
    %2929 = vmatprep.subr.mxu0 0.0
    %2930 = vmatpush1.msra.mxu0 0.0
    %2931 = vmatprep.subr.mxu0 0.0
    %2932 = vmatpush1.msra.mxu0 0.0
    %2933 = vmatprep.subr.mxu0 0.0
    %2934 = vmatpush1.msra.mxu0 0.0
    %2935 = vmatprep.subr.mxu0 0.0
    %2936 = vmatpush1.msra.mxu0 0.0
    %2937 = vmatprep.subr.mxu0 0.0
    %2938 = vmatpush1.msra.mxu0 0.0
    %2939 = vmatprep.subr.mxu0 0.0
    %2940 = vmatpush1.msra.mxu0 0.0
    %2941 = vmatprep.subr.mxu0 0.0
    %2942 = vmatpush1.msra.mxu0 0.0
    %2943 = vmatprep.subr.mxu0 0.0
    %2944 = vmatpush1.msra.mxu0 0.0
    %2945 = vmatprep.subr.mxu0 0.0
    %2946 = vmatpush1.msra.mxu0 0.0
    %2947 = vmatprep.subr.mxu0 0.0
    %2948 = vmatpush1.msra.mxu0 0.0
    %2949 = vmatprep.subr.mxu0 0.0
    %2950 = vmatpush1.msra.mxu0 0.0
    %2951 = vmatprep.subr.mxu0 0.0
    %2952 = vmatpush1.msra.mxu0 0.0
    %2953 = vmatprep.subr.mxu0 0.0
    %2954 = vmatpush1.msra.mxu0 0.0
    %2955 = vmatprep.subr.mxu0 0.0
    %2956 = vmatpush1.msra.mxu0 0.0
    %2957 = vmatprep.subr.mxu0 0.0
    %2958 = vmatpush1.msra.mxu0 0.0
    %2959 = vmatprep.subr.mxu0 0.0
    %2960 = vmatpush1.msra.mxu0 0.0
    %2961 = vmatprep.mubr.f32.mxu0 0.0
    %2962 = vmatmul.mubr.f32.gmra.mrb[0].mxu0 %v2816
    %v2963 = vpop.f32.mrb[0].mxu0
    %v2964 = vadd.f32 %v2896, %v2963
    %v2965 = vpop.f32.mrb[0].mxu0
    %2966 = vdwg.mxu0
    %v2967 = vld [vmem:[%s7 + $0x10] sm:$0x3]
    %vm2968 = vcmask 17408
    %v2969 = vsel %vm2968, %v2885, -inf
    %2970 = vmax.xlane.f32.xlu0 %v2969
    %v2971 = vpop.xlane.xlu0 %2970
    %v2972 = vsub.f32 %v2885, %v2971
    %v2973 = vmul.f32 %v2972, 1.442695
    %v2974 = vpow.pop %v2973
    %v2975 = vsel %vm2968, %v2974, 0.0
    %2976 = vadd.xlane.f32.xlu0 %v2975
    %v2977 = vpop.xlane.xlu0 %2976
    %v2978 = vlog2.pop %v2977
    %v2979 = vmul.f32 %v2978, 0.6931472
    %v2980 = vadd.f32 %v2979, %v2971
    %v2981 = vmul.f32 %v2885, %v2967
    %v2982 = vsel %vm2968, %v2981, 0.0
    %2983 = vadd.xlane.f32.xlu0 %v2982
    %v2984 = vpop.xlane.xlu0 %2983
    %v2985 = vsub.f32 %v2980, %v2984
    %v2986 = vsel %vm75, %v2985, 0.0
    %v2987 = vrot.slane %v2986, 4
    %v2988 = vadd.f32 %v2986, %v2987
    %v2989 = vrot.slane %v2988, 2
    %v2990 = vadd.f32 %v2988, %v2989
    %v2991 = vrot.slane %v2990, 1
    %v2992 = vadd.f32 %v2990, %v2991
    %v2993 = vmul.f32 %v2992, 0.5
    %v2994 = vld [vmem:[%s7 + $0x12] sm:$0x3]
    %vm2995 = vcmask 27650
    %v2996 = vsel %vm2995, %v2964, -inf
    %2997 = vmax.xlane.f32.xlu0 %v2996
    %v2998 = vpop.xlane.xlu0 %2997
    %v2999 = vsub.f32 %v2964, %v2998
    %v3000 = vmul.f32 %v2999, 1.442695
    %v3001 = vpow.pop %v3000
    %v3002 = vsel %vm2995, %v3001, 0.0
    %3003 = vadd.xlane.f32.xlu0 %v3002
    %v3004 = vpop.xlane.xlu0 %3003
    %v3005 = vlog2.pop %v3004
    %v3006 = vmul.f32 %v3005, 0.6931472
    %v3007 = vadd.f32 %v3006, %v2998
    %v3009 = vrot.slane %v2994, 6
    %v3011 = vmul.f32 %v2964, %v3009
    %v3012 = vsel %vm2995, %v3011, 0.0
    %3013 = vadd.xlane.f32.xlu0 %v3012
    %v3014 = vpop.xlane.xlu0 %3013
    %v3015 = vsub.f32 %v3007, %v3014
    %v3017 = vrot.slane %v3015, 2
    %v3019 = vsel %vm75, %v3017, 0.0
    %v3020 = vrot.slane %v3019, 4
    %v3021 = vadd.f32 %v3019, %v3020
    %v3022 = vrot.slane %v3021, 2
    %v3023 = vadd.f32 %v3021, %v3022
    %v3024 = vrot.slane %v3023, 1
    %v3025 = vadd.f32 %v3023, %v3024
    %v3026 = vmul.f32 %v3025, 0.5
    %v3027 = vmul.f32 %v2993, 0.45
    %v3028 = vmul.f32 %v3026, 0.55
    %v3029 = vadd.f32 %v3027, %v3028
    %vm3030 = vcmp.eq.s32.totalorder %v2640, 4
    %vm3031 = vcmp.eq.s32.totalorder %v46, 0
    %vm3032 = vmand %vm3030, %vm3031
    %v3033 = vsel %vm3032, %v3029, 0.0
    %v3034 = vsel %vm2646, %v2964, %v3033
    %v3035 = vsel %vm2641, %v2885, %v3034
    %3036 = vst [vmem:[%s8] sm:$0xff] %v3035
    // Predicated region
    $region38: #{multitask_forward.1} parent=1 // pred_check
      _
    $region39: #{multitask_forward.1} parent=1 // pred_check_branch
      %3038 = sbr.rel (0) target = $region41
    $region40: #{multitask_forward.1} parent=1 // pred_region
      _
    $region41: #{multitask_forward.1} parent=1 // pred_fallthru
      _
    // Predicated region
    $region42: #{multitask_forward.1} parent=1 // pred_check
      _
    $region43: #{multitask_forward.1} parent=1 // pred_check_branch
      %3040 = sbr.rel (0) target = $region45
    $region44: #{multitask_forward.1} parent=1 // pred_region
      _
    $region45: #{multitask_forward.1} parent=1 // pred_fallthru
      _
    %3041 = vsyncpa [#allocation3], 1

</llo_original>
